<compile_context>
chip_gen: v7x
topology: tpu7x:2x2x1
jax: 0.10.0
libtpu: 0.0.40
codegen_flags: <defaults>
</compile_context>

<pallas_src>
import functools

import jax
import jax.numpy as jnp
from jax.experimental import pallas as pl
from jax.experimental.pallas import tpu as pltpu


# --------------------------- fused conv + epilogue kernel ---------------------------
# One grid step == one sample.  Refs:
#   mode == "in_relu":  (patches, weight, gamma, beta, out)          out = relu(IN(conv))
#   mode == "in_res":   (patches, weight, gamma, beta, res, out)     out = res + IN(conv)
#   mode == "tanh_add": (patches, weight, skip, out)                 out = tanh(conv) + skip
# `groups` > 1 folds InstanceNorm statistics across sub-pixel groups (up-conv); the
# output columns are laid out as [g0 | g1 | ... | g_{groups-1}] x Cout.

def _conv_fused_kernel(*refs, mode, groups):
    eps = 1e-5
    if mode == "in_relu":
        p_ref, w_ref, g_ref, b_ref, o_ref = refs
    elif mode == "in_res":
        p_ref, w_ref, g_ref, b_ref, r_ref, o_ref = refs
    elif mode == "tanh_add":
        p_ref, w_ref, s_ref, o_ref = refs
    else:
        raise ValueError(mode)

    # bf16 x bf16 operands, f32 accumulate on the MXU.
    y = jnp.dot(p_ref[0], w_ref[...], preferred_element_type=jnp.float32)   # (M, N)

    if mode == "tanh_add":
        o_ref[0] = jnp.tanh(y) + s_ref[0]
        return

    M, N = y.shape

    def _channel_mean(v):
        s = jnp.sum(v, axis=0, keepdims=True)                                # (1, N)
        if groups > 1:                                                       # fold sub-pixel groups
            nc = N // groups
            acc = s[:, 0:nc]
            for g in range(1, groups):
                acc = acc + s[:, g * nc:(g + 1) * nc]
            s = jnp.concatenate([acc] * groups, axis=1)                      # broadcast back
        return s * (1.0 / (M * groups))

    mean = _channel_mean(y)
    var = _channel_mean((y - mean) ** 2)           # biased variance (PyTorch train mode)
    out = (y - mean) * jax.lax.rsqrt(var + eps) * g_ref[...] + b_ref[...]
    if mode == "in_relu":
        out = jnp.maximum(out, 0.0)
    else:  # "in_res"
        out = out + r_ref[0]
    o_ref[0] = out


def conv_fused(patches, w, gamma=None, beta=None, extra=None, *, mode, groups=1):
    """patches: (B, M, K) bf16, w: (K, N) bf16, extra/skip: (B, M, N) f32."""
    B, M, K = patches.shape
    N = w.shape[1]

    inputs = [patches, w]
    in_specs = [pl.BlockSpec((1, M, K), lambda b: (b, 0, 0)),
                pl.BlockSpec((K, N), lambda b: (0, 0))]
    if mode in ("in_relu", "in_res"):
        inputs += [gamma.reshape(1, N).astype(jnp.float32),
                   beta.reshape(1, N).astype(jnp.float32)]
        in_specs += [pl.BlockSpec((1, N), lambda b: (0, 0))] * 2
    if mode in ("in_res", "tanh_add"):
        inputs.append(extra)
        in_specs.append(pl.BlockSpec((1, M, N), lambda b: (b, 0, 0)))

    flops = 2 * B * M * K * N
    bytes_accessed = (patches.size * 2 + w.size * 2 + B * M * N * 4
                      + (extra.size * 4 if extra is not None else 0))
    transcendentals = B * M * N if mode == "tanh_add" else B * N

    return pl.pallas_call(
        functools.partial(_conv_fused_kernel, mode=mode, groups=groups),
        out_shape=jax.ShapeDtypeStruct((B, M, N), jnp.float32),
        grid=(B,),
        in_specs=in_specs,
        out_specs=pl.BlockSpec((1, M, N), lambda b: (b, 0, 0)),
        compiler_params=pltpu.CompilerParams(
            dimension_semantics=("parallel",),
            vmem_limit_bytes=32 * 1024 * 1024),
        cost_estimate=pl.CostEstimate(flops=flops,
                                      transcendentals=transcendentals,
                                      bytes_accessed=bytes_accessed),
    )(*inputs)


# ------------------------------ conv glue (NHWC im2col) ------------------------------

def _im2col_nhwc(x, kh, kw, stride, padding):
    # x: (B, H, W, C) -> (B, Ho*Wo, kh*kw*C), tap-major columns (i, j, c).
    B, H, W, C = x.shape
    xp = jnp.pad(x, ((0, 0), (padding, padding), (padding, padding), (0, 0)))
    Ho = (H + 2 * padding - kh) // stride + 1
    Wo = (W + 2 * padding - kw) // stride + 1
    cols = []
    for i in range(kh):
        for j in range(kw):
            cols.append(xp[:, i:i + stride * Ho:stride, j:j + stride * Wo:stride, :])
    patches = jnp.concatenate(cols, axis=-1)                   # (B, Ho, Wo, kh*kw*C)
    return patches.reshape(B, Ho * Wo, kh * kw * C), Ho, Wo


def _conv_weight_matrix(w):
    # PyTorch OIHW (Cout, Cin, kh, kw) -> (kh*kw*Cin, Cout), rows match im2col columns.
    Cout, Cin, kh, kw = w.shape
    return w.transpose(2, 3, 1, 0).reshape(kh * kw * Cin, Cout)


def _convT_subpixel_weight(w_t):
    # ConvTranspose2d weight (Cin, Cout, 4, 4), stride=2, pad=1 -> equivalent 3x3 conv
    # (pad=1) producing 4*Cout sub-pixel groups (g = dy*2 + dx); the upsampled map is
    # recovered with a depth-to-space shuffle.  No zero-stuffed input, 4x fewer taps.
    Cin, Cout, kh, kw = w_t.shape
    assert (kh, kw) == (4, 4)
    taps = {0: ((0, 3), (1, 1)),      # even output rows/cols: window offsets / ky taps
            1: ((1, 2), (2, 0))}      # odd  output rows/cols
    w_eff = jnp.zeros((3, 3, Cin, 4 * Cout), dtype=w_t.dtype)
    for dy in (0, 1):
        for dx in (0, 1):
            g = dy * 2 + dx
            for (r, ky) in taps[dy]:
                for (s, kx) in taps[dx]:
                    w_eff = w_eff.at[r, s, :, g * Cout:(g + 1) * Cout].set(
                        w_t[:, :, ky, kx])
    return w_eff.reshape(3 * 3 * Cin, 4 * Cout)


# ------------------------------- Generator forward -------------------------------

def init_params(key, in_dim=3, conv_dim=16, c_dim=1):
    ks = jax.random.split(key, 13)

    def w(k, shape):
        fan_in = shape[1] * shape[2] * shape[3]
        return (jax.random.normal(k, shape, jnp.float32)
                * (1.0 / jnp.sqrt(jnp.float32(fan_in))))

    extra = 2 * c_dim + 2
    p = {
        # input stem: Conv7x7(in_dim->conv_dim) + IN + ReLU
        "w_in": w(ks[0], (conv_dim, in_dim, 7, 7)),
        "g_in": 1.0 + 0.1 * jax.random.normal(ks[1], (conv_dim,), jnp.float32),
        "b_in": 0.1 * jax.random.normal(ks[2], (conv_dim,), jnp.float32),
        # down: Conv4x4 s2 (conv_dim+extra -> 2*conv_dim) + IN + ReLU
        "w_down": w(ks[3], (2 * conv_dim, conv_dim + extra, 4, 4)),
        "g_down": 1.0 + 0.1 * jax.random.normal(ks[4], (2 * conv_dim,), jnp.float32),
        "b_down": 0.1 * jax.random.normal(ks[5], (2 * conv_dim,), jnp.float32),
        # residual block: Conv3x3 (2c -> 2c) + IN
        "w_res": w(ks[6], (2 * conv_dim, 2 * conv_dim, 3, 3)),
        "g_res": 1.0 + 0.1 * jax.random.normal(ks[7], (2 * conv_dim,), jnp.float32),
        "b_res": 0.1 * jax.random.normal(ks[8], (2 * conv_dim,), jnp.float32),
        # up: ConvTranspose4x4 s2 (2c -> c) + IN + ReLU   (weights are (Cin,Cout,kh,kw))
        "w_up": w(ks[9], (2 * conv_dim, conv_dim, 4, 4)),
        "g_up": 1.0 + 0.1 * jax.random.normal(ks[10], (conv_dim,), jnp.float32),
        "b_up": 0.1 * jax.random.normal(ks[11], (conv_dim,), jnp.float32),
        # output: Conv7x7 (c -> in_dim) + Tanh
        "w_out": w(ks[12], (in_dim, conv_dim, 7, 7)),
    }
    return p


def generator_forward(params, x, c, n):
    B, Cx, H, W = x.shape
    f32 = jnp.float32
    bf16 = jnp.bfloat16

    xh = x.transpose(0, 2, 3, 1).astype(f32)                       # NHWC once, up front

    # ---- input stem: Conv7x7 s1 p3 -> IN -> ReLU (fused)
    p, Ho, Wo = _im2col_nhwc(xh.astype(bf16), 7, 7, 1, 3)
    w = _conv_weight_matrix(params["w_in"]).astype(bf16)
    h = conv_fused(p, w, params["g_in"], params["b_in"], mode="in_relu")
    h = h.reshape(B, Ho, Wo, -1)

    # ---- broadcast c, n to spatial maps; concat along channels (NHWC last axis)
    c_map = jnp.broadcast_to(c[:, None, None, :].astype(f32), (B, Ho, Wo, c.shape[1]))
    n_map = jnp.broadcast_to(n[:, None, None, :].astype(f32), (B, Ho, Wo, n.shape[1]))
    h = jnp.concatenate([h, c_map, n_map], axis=-1)

    # ---- down: Conv4x4 s2 p1 -> IN -> ReLU (fused)
    p, Ho, Wo = _im2col_nhwc(h.astype(bf16), 4, 4, 2, 1)
    w = _conv_weight_matrix(params["w_down"]).astype(bf16)
    h = conv_fused(p, w, params["g_down"], params["b_down"], mode="in_relu")
    h = h.reshape(B, Ho, Wo, -1)

    # ---- residual block: h + IN(Conv3x3(h)), one fused kernel
    p, _, _ = _im2col_nhwc(h.astype(bf16), 3, 3, 1, 1)
    w = _conv_weight_matrix(params["w_res"]).astype(bf16)
    h = conv_fused(p, w, params["g_res"], params["b_res"],
                   extra=h.reshape(B, Ho * Wo, -1), mode="in_res")
    h = h.reshape(B, Ho, Wo, -1)

    # ---- up: ConvTranspose4x4 s2 p1 -> IN -> ReLU, sub-pixel conv + depth-to-space
    Cup = params["w_up"].shape[1]
    p, _, _ = _im2col_nhwc(h.astype(bf16), 3, 3, 1, 1)
    w = _convT_subpixel_weight(params["w_up"]).astype(bf16)
    g4 = jnp.tile(params["g_up"], 4)
    b4 = jnp.tile(params["b_up"], 4)
    u = conv_fused(p, w, g4, b4, mode="in_relu", groups=4)         # (B, Ho*Wo, 4*Cup)
    u = u.reshape(B, Ho, Wo, 2, 2, Cup).transpose(0, 1, 3, 2, 4, 5)
    h = u.reshape(B, 2 * Ho, 2 * Wo, Cup)

    # ---- output: Conv7x7 s1 p3 -> tanh, + x  (fused)
    p, Ho2, Wo2 = _im2col_nhwc(h.astype(bf16), 7, 7, 1, 3)
    w = _conv_weight_matrix(params["w_out"]).astype(bf16)
    out = conv_fused(p, w, extra=xh.reshape(B, H * W, Cx), mode="tanh_add")

    return out.reshape(B, H, W, Cx).transpose(0, 3, 1, 2)          # back to NCHW


if __name__ == "__main__":
    key = jax.random.PRNGKey(0)
    kx, kc, kn, kp = jax.random.split(key, 4)

    # in_dim=3, conv_dim=16, c_dim=1  =>  c and n each carry (c_dim+1)=2 channels
    x = jax.random.normal(kx, (2, 3, 16, 16), jnp.float32)
    c = jax.random.normal(kc, (2, 2), jnp.float32)
    n = jax.random.normal(kn, (2, 2), jnp.float32)

    params = init_params(kp)
    out = jax.jit(generator_forward)(params, x, c, n)
    jax.block_until_ready(out)

    assert out.shape == x.shape and out.dtype == jnp.float32
    print("KERNEL_OK")
</pallas_src>

<mosaic_0001>
module attributes {stable_mosaic.version = 11 : i64} {
  func.func @_conv_fused_kernel(%arg0: i32, %arg1: memref<1x256x147xbf16, #tpu.memory_space<vmem>>, %arg2: memref<147x16xbf16, #tpu.memory_space<vmem>>, %arg3: memref<1x16xf32, #tpu.memory_space<vmem>>, %arg4: memref<1x16xf32, #tpu.memory_space<vmem>>, %arg5: memref<1x256x16xf32, #tpu.memory_space<vmem>>) attributes {dimension_semantics = [#tpu.dimension_semantics<parallel>], iteration_bounds = array<i64: 2>, scalar_prefetch = 0 : i64, scratch_operands = 0 : i64, tpu.core_type = #tpu.core_type<tc>, window_params = [{transform_indices = @transform_0, window_bounds = array<i64: 1, 256, 147>}, {pipeline_mode = #tpu.pipeline_mode<synchronous>, transform_indices = @transform_1, window_bounds = array<i64: 147, 16>}, {pipeline_mode = #tpu.pipeline_mode<synchronous>, transform_indices = @transform_2, window_bounds = array<i64: 1, 16>}, {pipeline_mode = #tpu.pipeline_mode<synchronous>, transform_indices = @transform_3, window_bounds = array<i64: 1, 16>}, {transform_indices = @transform_4, window_bounds = array<i64: 1, 256, 16>}]} {
    %c0 = arith.constant 0 : index
    %c0_0 = arith.constant 0 : index
    %c0_1 = arith.constant 0 : index
    %0 = vector.load %arg1[%c0, %c0_0, %c0_1] : memref<1x256x147xbf16, #tpu.memory_space<vmem>>, vector<1x256x147xbf16>
    %1 = vector.shape_cast %0 : vector<1x256x147xbf16> to vector<256x147xbf16>
    %c0_2 = arith.constant 0 : index
    %c0_3 = arith.constant 0 : index
    %2 = vector.load %arg2[%c0_2, %c0_3] : memref<147x16xbf16, #tpu.memory_space<vmem>>, vector<147x16xbf16>
    %cst = arith.constant dense<0.000000e+00> : vector<256x16xf32>
    %3 = tpu.matmul %1, %2, %cst {dimension_numbers = #tpu.dot_dimension_numbers<[1], [0], [0], [1], [0, 0, 1, 1], [], []>} : vector<256x147xbf16>, vector<147x16xbf16>, vector<256x16xf32> -> vector<256x16xf32>
    %cst_4 = arith.constant dense<0.000000e+00> : vector<16xf32>
    %4 = vector.multi_reduction <add>, %3, %cst_4 [0] : vector<256x16xf32> to vector<16xf32>
    %5 = vector.shape_cast %4 : vector<16xf32> to vector<1x16xf32>
    %cst_5 = arith.constant 3.906250e-03 : f32
    %6 = vector.broadcast %cst_5 : f32 to vector<1x16xf32>
    %7 = arith.mulf %5, %6 : vector<1x16xf32>
    %8 = vector.broadcast %7 : vector<1x16xf32> to vector<256x16xf32>
    %9 = arith.subf %3, %8 : vector<256x16xf32>
    %10 = arith.mulf %9, %9 : vector<256x16xf32>
    %cst_6 = arith.constant dense<0.000000e+00> : vector<16xf32>
    %11 = vector.multi_reduction <add>, %10, %cst_6 [0] : vector<256x16xf32> to vector<16xf32>
    %12 = vector.shape_cast %11 : vector<16xf32> to vector<1x16xf32>
    %cst_7 = arith.constant 3.906250e-03 : f32
    %13 = vector.broadcast %cst_7 : f32 to vector<1x16xf32>
    %14 = arith.mulf %12, %13 : vector<1x16xf32>
    %15 = vector.broadcast %7 : vector<1x16xf32> to vector<256x16xf32>
    %16 = arith.subf %3, %15 : vector<256x16xf32>
    %cst_8 = arith.constant 9.99999974E-6 : f32
    %17 = vector.broadcast %cst_8 : f32 to vector<1x16xf32>
    %18 = arith.addf %14, %17 : vector<1x16xf32>
    %19 = math.rsqrt %18 : vector<1x16xf32>
    %20 = vector.broadcast %19 : vector<1x16xf32> to vector<256x16xf32>
    %21 = arith.mulf %16, %20 : vector<256x16xf32>
    %c0_9 = arith.constant 0 : index
    %c0_10 = arith.constant 0 : index
    %22 = vector.load %arg3[%c0_9, %c0_10] : memref<1x16xf32, #tpu.memory_space<vmem>>, vector<1x16xf32>
    %23 = vector.broadcast %22 : vector<1x16xf32> to vector<256x16xf32>
    %24 = arith.mulf %21, %23 : vector<256x16xf32>
    %c0_11 = arith.constant 0 : index
    %c0_12 = arith.constant 0 : index
    %25 = vector.load %arg4[%c0_11, %c0_12] : memref<1x16xf32, #tpu.memory_space<vmem>>, vector<1x16xf32>
    %26 = vector.broadcast %25 : vector<1x16xf32> to vector<256x16xf32>
    %27 = arith.addf %24, %26 : vector<256x16xf32>
    %cst_13 = arith.constant 0.000000e+00 : f32
    %28 = vector.broadcast %cst_13 : f32 to vector<256x16xf32>
    %29 = arith.maximumf %27, %28 : vector<256x16xf32>
    %c0_14 = arith.constant 0 : index
    %c0_15 = arith.constant 0 : index
    %c0_16 = arith.constant 0 : index
    %30 = vector.load %arg5[%c0_14, %c0_15, %c0_16] : memref<1x256x16xf32, #tpu.memory_space<vmem>>, vector<1x256x16xf32>
    %31 = vector.shape_cast %30 : vector<1x256x16xf32> to vector<256x16xf32>
    %32 = vector.shape_cast %29 : vector<256x16xf32> to vector<1x256x16xf32>
    tpu.vector_store %arg5[%c0_14, %c0_15, %c0_16], %32 {strides = array<i32>} : memref<1x256x16xf32, #tpu.memory_space<vmem>>, vector<1x256x16xf32>,
    return
  }
  func.func @transform_0(%arg0: i32) -> (i32, i32, i32) {
    %c0_i32 = arith.constant 0 : i32
    %c0_i32_0 = arith.constant 0 : i32
    %c0_i32_1 = arith.constant 0 : i32
    return %arg0, %c0_i32, %c0_i32_0 : i32, i32, i32
  }
  func.func @transform_1(%arg0: i32) -> (i32, i32) {
    %c0_i32 = arith.constant 0 : i32
    %c0_i32_0 = arith.constant 0 : i32
    %c0_i32_1 = arith.constant 0 : i32
    return %c0_i32, %c0_i32_0 : i32, i32
  }
  func.func @transform_2(%arg0: i32) -> (i32, i32) {
    %c0_i32 = arith.constant 0 : i32
    %c0_i32_0 = arith.constant 0 : i32
    %c0_i32_1 = arith.constant 0 : i32
    return %c0_i32, %c0_i32_0 : i32, i32
  }
  func.func @transform_3(%arg0: i32) -> (i32, i32) {
    %c0_i32 = arith.constant 0 : i32
    %c0_i32_0 = arith.constant 0 : i32
    %c0_i32_1 = arith.constant 0 : i32
    return %c0_i32, %c0_i32_0 : i32, i32
  }
  func.func @transform_4(%arg0: i32) -> (i32, i32, i32) {
    %c0_i32 = arith.constant 0 : i32
    %c0_i32_0 = arith.constant 0 : i32
    %c0_i32_1 = arith.constant 0 : i32
    return %arg0, %c0_i32, %c0_i32_0 : i32, i32, i32
  }
}

module attributes {stable_mosaic.version = 11 : i64} {
  func.func @_conv_fused_kernel(%arg0: i32, %arg1: memref<1x64x320xbf16, #tpu.memory_space<vmem>>, %arg2: memref<320x32xbf16, #tpu.memory_space<vmem>>, %arg3: memref<1x32xf32, #tpu.memory_space<vmem>>, %arg4: memref<1x32xf32, #tpu.memory_space<vmem>>, %arg5: memref<1x64x32xf32, #tpu.memory_space<vmem>>) attributes {dimension_semantics = [#tpu.dimension_semantics<parallel>], iteration_bounds = array<i64: 2>, scalar_prefetch = 0 : i64, scratch_operands = 0 : i64, tpu.core_type = #tpu.core_type<tc>, window_params = [{transform_indices = @transform_0, window_bounds = array<i64: 1, 64, 320>}, {pipeline_mode = #tpu.pipeline_mode<synchronous>, transform_indices = @transform_1, window_bounds = array<i64: 320, 32>}, {pipeline_mode = #tpu.pipeline_mode<synchronous>, transform_indices = @transform_2, window_bounds = array<i64: 1, 32>}, {pipeline_mode = #tpu.pipeline_mode<synchronous>, transform_indices = @transform_3, window_bounds = array<i64: 1, 32>}, {transform_indices = @transform_4, window_bounds = array<i64: 1, 64, 32>}]} {
    %c0 = arith.constant 0 : index
    %c0_0 = arith.constant 0 : index
    %c0_1 = arith.constant 0 : index
    %0 = vector.load %arg1[%c0, %c0_0, %c0_1] : memref<1x64x320xbf16, #tpu.memory_space<vmem>>, vector<1x64x320xbf16>
    %1 = vector.shape_cast %0 : vector<1x64x320xbf16> to vector<64x320xbf16>
    %c0_2 = arith.constant 0 : index
    %c0_3 = arith.constant 0 : index
    %2 = vector.load %arg2[%c0_2, %c0_3] : memref<320x32xbf16, #tpu.memory_space<vmem>>, vector<320x32xbf16>
    %cst = arith.constant dense<0.000000e+00> : vector<64x32xf32>
    %3 = tpu.matmul %1, %2, %cst {dimension_numbers = #tpu.dot_dimension_numbers<[1], [0], [0], [1], [0, 0, 1, 1], [], []>} : vector<64x320xbf16>, vector<320x32xbf16>, vector<64x32xf32> -> vector<64x32xf32>
    %cst_4 = arith.constant dense<0.000000e+00> : vector<32xf32>
    %4 = vector.multi_reduction <add>, %3, %cst_4 [0] : vector<64x32xf32> to vector<32xf32>
    %5 = vector.shape_cast %4 : vector<32xf32> to vector<1x32xf32>
    %cst_5 = arith.constant 1.562500e-02 : f32
    %6 = vector.broadcast %cst_5 : f32 to vector<1x32xf32>
    %7 = arith.mulf %5, %6 : vector<1x32xf32>
    %8 = vector.broadcast %7 : vector<1x32xf32> to vector<64x32xf32>
    %9 = arith.subf %3, %8 : vector<64x32xf32>
    %10 = arith.mulf %9, %9 : vector<64x32xf32>
    %cst_6 = arith.constant dense<0.000000e+00> : vector<32xf32>
    %11 = vector.multi_reduction <add>, %10, %cst_6 [0] : vector<64x32xf32> to vector<32xf32>
    %12 = vector.shape_cast %11 : vector<32xf32> to vector<1x32xf32>
    %cst_7 = arith.constant 1.562500e-02 : f32
    %13 = vector.broadcast %cst_7 : f32 to vector<1x32xf32>
    %14 = arith.mulf %12, %13 : vector<1x32xf32>
    %15 = vector.broadcast %7 : vector<1x32xf32> to vector<64x32xf32>
    %16 = arith.subf %3, %15 : vector<64x32xf32>
    %cst_8 = arith.constant 9.99999974E-6 : f32
    %17 = vector.broadcast %cst_8 : f32 to vector<1x32xf32>
    %18 = arith.addf %14, %17 : vector<1x32xf32>
    %19 = math.rsqrt %18 : vector<1x32xf32>
    %20 = vector.broadcast %19 : vector<1x32xf32> to vector<64x32xf32>
    %21 = arith.mulf %16, %20 : vector<64x32xf32>
    %c0_9 = arith.constant 0 : index
    %c0_10 = arith.constant 0 : index
    %22 = vector.load %arg3[%c0_9, %c0_10] : memref<1x32xf32, #tpu.memory_space<vmem>>, vector<1x32xf32>
    %23 = vector.broadcast %22 : vector<1x32xf32> to vector<64x32xf32>
    %24 = arith.mulf %21, %23 : vector<64x32xf32>
    %c0_11 = arith.constant 0 : index
    %c0_12 = arith.constant 0 : index
    %25 = vector.load %arg4[%c0_11, %c0_12] : memref<1x32xf32, #tpu.memory_space<vmem>>, vector<1x32xf32>
    %26 = vector.broadcast %25 : vector<1x32xf32> to vector<64x32xf32>
    %27 = arith.addf %24, %26 : vector<64x32xf32>
    %cst_13 = arith.constant 0.000000e+00 : f32
    %28 = vector.broadcast %cst_13 : f32 to vector<64x32xf32>
    %29 = arith.maximumf %27, %28 : vector<64x32xf32>
    %c0_14 = arith.constant 0 : index
    %c0_15 = arith.constant 0 : index
    %c0_16 = arith.constant 0 : index
    %30 = vector.load %arg5[%c0_14, %c0_15, %c0_16] : memref<1x64x32xf32, #tpu.memory_space<vmem>>, vector<1x64x32xf32>
    %31 = vector.shape_cast %30 : vector<1x64x32xf32> to vector<64x32xf32>
    %32 = vector.shape_cast %29 : vector<64x32xf32> to vector<1x64x32xf32>
    tpu.vector_store %arg5[%c0_14, %c0_15, %c0_16], %32 {strides = array<i32>} : memref<1x64x32xf32, #tpu.memory_space<vmem>>, vector<1x64x32xf32>,
    return
  }
  func.func @transform_0(%arg0: i32) -> (i32, i32, i32) {
    %c0_i32 = arith.constant 0 : i32
    %c0_i32_0 = arith.constant 0 : i32
    %c0_i32_1 = arith.constant 0 : i32
    return %arg0, %c0_i32, %c0_i32_0 : i32, i32, i32
  }
  func.func @transform_1(%arg0: i32) -> (i32, i32) {
    %c0_i32 = arith.constant 0 : i32
    %c0_i32_0 = arith.constant 0 : i32
    %c0_i32_1 = arith.constant 0 : i32
    return %c0_i32, %c0_i32_0 : i32, i32
  }
  func.func @transform_2(%arg0: i32) -> (i32, i32) {
    %c0_i32 = arith.constant 0 : i32
    %c0_i32_0 = arith.constant 0 : i32
    %c0_i32_1 = arith.constant 0 : i32
    return %c0_i32, %c0_i32_0 : i32, i32
  }
  func.func @transform_3(%arg0: i32) -> (i32, i32) {
    %c0_i32 = arith.constant 0 : i32
    %c0_i32_0 = arith.constant 0 : i32
    %c0_i32_1 = arith.constant 0 : i32
    return %c0_i32, %c0_i32_0 : i32, i32
  }
  func.func @transform_4(%arg0: i32) -> (i32, i32, i32) {
    %c0_i32 = arith.constant 0 : i32
    %c0_i32_0 = arith.constant 0 : i32
    %c0_i32_1 = arith.constant 0 : i32
    return %arg0, %c0_i32, %c0_i32_0 : i32, i32, i32
  }
}

module attributes {stable_mosaic.version = 11 : i64} {
  func.func @_conv_fused_kernel(%arg0: i32, %arg1: memref<1x64x288xbf16, #tpu.memory_space<vmem>>, %arg2: memref<288x32xbf16, #tpu.memory_space<vmem>>, %arg3: memref<1x32xf32, #tpu.memory_space<vmem>>, %arg4: memref<1x32xf32, #tpu.memory_space<vmem>>, %arg5: memref<1x64x32xf32, #tpu.memory_space<vmem>>, %arg6: memref<1x64x32xf32, #tpu.memory_space<vmem>>) attributes {dimension_semantics = [#tpu.dimension_semantics<parallel>], iteration_bounds = array<i64: 2>, scalar_prefetch = 0 : i64, scratch_operands = 0 : i64, tpu.core_type = #tpu.core_type<tc>, window_params = [{transform_indices = @transform_0, window_bounds = array<i64: 1, 64, 288>}, {pipeline_mode = #tpu.pipeline_mode<synchronous>, transform_indices = @transform_1, window_bounds = array<i64: 288, 32>}, {pipeline_mode = #tpu.pipeline_mode<synchronous>, transform_indices = @transform_2, window_bounds = array<i64: 1, 32>}, {pipeline_mode = #tpu.pipeline_mode<synchronous>, transform_indices = @transform_3, window_bounds = array<i64: 1, 32>}, {transform_indices = @transform_4, window_bounds = array<i64: 1, 64, 32>}, {transform_indices = @transform_5, window_bounds = array<i64: 1, 64, 32>}]} {
    %c0 = arith.constant 0 : index
    %c0_0 = arith.constant 0 : index
    %c0_1 = arith.constant 0 : index
    %0 = vector.load %arg1[%c0, %c0_0, %c0_1] : memref<1x64x288xbf16, #tpu.memory_space<vmem>>, vector<1x64x288xbf16>
    %1 = vector.shape_cast %0 : vector<1x64x288xbf16> to vector<64x288xbf16>
    %c0_2 = arith.constant 0 : index
    %c0_3 = arith.constant 0 : index
    %2 = vector.load %arg2[%c0_2, %c0_3] : memref<288x32xbf16, #tpu.memory_space<vmem>>, vector<288x32xbf16>
    %cst = arith.constant dense<0.000000e+00> : vector<64x32xf32>
    %3 = tpu.matmul %1, %2, %cst {dimension_numbers = #tpu.dot_dimension_numbers<[1], [0], [0], [1], [0, 0, 1, 1], [], []>} : vector<64x288xbf16>, vector<288x32xbf16>, vector<64x32xf32> -> vector<64x32xf32>
    %cst_4 = arith.constant dense<0.000000e+00> : vector<32xf32>
    %4 = vector.multi_reduction <add>, %3, %cst_4 [0] : vector<64x32xf32> to vector<32xf32>
    %5 = vector.shape_cast %4 : vector<32xf32> to vector<1x32xf32>
    %cst_5 = arith.constant 1.562500e-02 : f32
    %6 = vector.broadcast %cst_5 : f32 to vector<1x32xf32>
    %7 = arith.mulf %5, %6 : vector<1x32xf32>
    %8 = vector.broadcast %7 : vector<1x32xf32> to vector<64x32xf32>
    %9 = arith.subf %3, %8 : vector<64x32xf32>
    %10 = arith.mulf %9, %9 : vector<64x32xf32>
    %cst_6 = arith.constant dense<0.000000e+00> : vector<32xf32>
    %11 = vector.multi_reduction <add>, %10, %cst_6 [0] : vector<64x32xf32> to vector<32xf32>
    %12 = vector.shape_cast %11 : vector<32xf32> to vector<1x32xf32>
    %cst_7 = arith.constant 1.562500e-02 : f32
    %13 = vector.broadcast %cst_7 : f32 to vector<1x32xf32>
    %14 = arith.mulf %12, %13 : vector<1x32xf32>
    %15 = vector.broadcast %7 : vector<1x32xf32> to vector<64x32xf32>
    %16 = arith.subf %3, %15 : vector<64x32xf32>
    %cst_8 = arith.constant 9.99999974E-6 : f32
    %17 = vector.broadcast %cst_8 : f32 to vector<1x32xf32>
    %18 = arith.addf %14, %17 : vector<1x32xf32>
    %19 = math.rsqrt %18 : vector<1x32xf32>
    %20 = vector.broadcast %19 : vector<1x32xf32> to vector<64x32xf32>
    %21 = arith.mulf %16, %20 : vector<64x32xf32>
    %c0_9 = arith.constant 0 : index
    %c0_10 = arith.constant 0 : index
    %22 = vector.load %arg3[%c0_9, %c0_10] : memref<1x32xf32, #tpu.memory_space<vmem>>, vector<1x32xf32>
    %23 = vector.broadcast %22 : vector<1x32xf32> to vector<64x32xf32>
    %24 = arith.mulf %21, %23 : vector<64x32xf32>
    %c0_11 = arith.constant 0 : index
    %c0_12 = arith.constant 0 : index
    %25 = vector.load %arg4[%c0_11, %c0_12] : memref<1x32xf32, #tpu.memory_space<vmem>>, vector<1x32xf32>
    %26 = vector.broadcast %25 : vector<1x32xf32> to vector<64x32xf32>
    %27 = arith.addf %24, %26 : vector<64x32xf32>
    %c0_13 = arith.constant 0 : index
    %c0_14 = arith.constant 0 : index
    %c0_15 = arith.constant 0 : index
    %28 = vector.load %arg5[%c0_13, %c0_14, %c0_15] : memref<1x64x32xf32, #tpu.memory_space<vmem>>, vector<1x64x32xf32>
    %29 = vector.shape_cast %28 : vector<1x64x32xf32> to vector<64x32xf32>
    %30 = arith.addf %27, %29 : vector<64x32xf32>
    %c0_16 = arith.constant 0 : index
    %c0_17 = arith.constant 0 : index
    %c0_18 = arith.constant 0 : index
    %31 = vector.load %arg6[%c0_16, %c0_17, %c0_18] : memref<1x64x32xf32, #tpu.memory_space<vmem>>, vector<1x64x32xf32>
    %32 = vector.shape_cast %31 : vector<1x64x32xf32> to vector<64x32xf32>
    %33 = vector.shape_cast %30 : vector<64x32xf32> to vector<1x64x32xf32>
    tpu.vector_store %arg6[%c0_16, %c0_17, %c0_18], %33 {strides = array<i32>} : memref<1x64x32xf32, #tpu.memory_space<vmem>>, vector<1x64x32xf32>,
    return
  }
  func.func @transform_0(%arg0: i32) -> (i32, i32, i32) {
    %c0_i32 = arith.constant 0 : i32
    %c0_i32_0 = arith.constant 0 : i32
    %c0_i32_1 = arith.constant 0 : i32
    return %arg0, %c0_i32, %c0_i32_0 : i32, i32, i32
  }
  func.func @transform_1(%arg0: i32) -> (i32, i32) {
    %c0_i32 = arith.constant 0 : i32
    %c0_i32_0 = arith.constant 0 : i32
    %c0_i32_1 = arith.constant 0 : i32
    return %c0_i32, %c0_i32_0 : i32, i32
  }
  func.func @transform_2(%arg0: i32) -> (i32, i32) {
    %c0_i32 = arith.constant 0 : i32
    %c0_i32_0 = arith.constant 0 : i32
    %c0_i32_1 = arith.constant 0 : i32
    return %c0_i32, %c0_i32_0 : i32, i32
  }
  func.func @transform_3(%arg0: i32) -> (i32, i32) {
    %c0_i32 = arith.constant 0 : i32
    %c0_i32_0 = arith.constant 0 : i32
    %c0_i32_1 = arith.constant 0 : i32
    return %c0_i32, %c0_i32_0 : i32, i32
  }
  func.func @transform_4(%arg0: i32) -> (i32, i32, i32) {
    %c0_i32 = arith.constant 0 : i32
    %c0_i32_0 = arith.constant 0 : i32
    %c0_i32_1 = arith.constant 0 : i32
    return %arg0, %c0_i32, %c0_i32_0 : i32, i32, i32
  }
  func.func @transform_5(%arg0: i32) -> (i32, i32, i32) {
    %c0_i32 = arith.constant 0 : i32
    %c0_i32_0 = arith.constant 0 : i32
    %c0_i32_1 = arith.constant 0 : i32
    return %arg0, %c0_i32, %c0_i32_0 : i32, i32, i32
  }
}

module attributes {stable_mosaic.version = 11 : i64} {
  func.func @_conv_fused_kernel(%arg0: i32, %arg1: memref<1x64x288xbf16, #tpu.memory_space<vmem>>, %arg2: memref<288x64xbf16, #tpu.memory_space<vmem>>, %arg3: memref<1x64xf32, #tpu.memory_space<vmem>>, %arg4: memref<1x64xf32, #tpu.memory_space<vmem>>, %arg5: memref<1x64x64xf32, #tpu.memory_space<vmem>>) attributes {dimension_semantics = [#tpu.dimension_semantics<parallel>], iteration_bounds = array<i64: 2>, scalar_prefetch = 0 : i64, scratch_operands = 0 : i64, tpu.core_type = #tpu.core_type<tc>, window_params = [{transform_indices = @transform_0, window_bounds = array<i64: 1, 64, 288>}, {pipeline_mode = #tpu.pipeline_mode<synchronous>, transform_indices = @transform_1, window_bounds = array<i64: 288, 64>}, {pipeline_mode = #tpu.pipeline_mode<synchronous>, transform_indices = @transform_2, window_bounds = array<i64: 1, 64>}, {pipeline_mode = #tpu.pipeline_mode<synchronous>, transform_indices = @transform_3, window_bounds = array<i64: 1, 64>}, {transform_indices = @transform_4, window_bounds = array<i64: 1, 64, 64>}]} {
    %c0 = arith.constant 0 : index
    %c0_0 = arith.constant 0 : index
    %c0_1 = arith.constant 0 : index
    %0 = vector.load %arg1[%c0, %c0_0, %c0_1] : memref<1x64x288xbf16, #tpu.memory_space<vmem>>, vector<1x64x288xbf16>
    %1 = vector.shape_cast %0 : vector<1x64x288xbf16> to vector<64x288xbf16>
    %c0_2 = arith.constant 0 : index
    %c0_3 = arith.constant 0 : index
    %2 = vector.load %arg2[%c0_2, %c0_3] : memref<288x64xbf16, #tpu.memory_space<vmem>>, vector<288x64xbf16>
    %cst = arith.constant dense<0.000000e+00> : vector<64x64xf32>
    %3 = tpu.matmul %1, %2, %cst {dimension_numbers = #tpu.dot_dimension_numbers<[1], [0], [0], [1], [0, 0, 1, 1], [], []>} : vector<64x288xbf16>, vector<288x64xbf16>, vector<64x64xf32> -> vector<64x64xf32>
    %cst_4 = arith.constant dense<0.000000e+00> : vector<64xf32>
    %4 = vector.multi_reduction <add>, %3, %cst_4 [0] : vector<64x64xf32> to vector<64xf32>
    %5 = vector.shape_cast %4 : vector<64xf32> to vector<1x64xf32>
    %6 = vector.extract_strided_slice %5 {offsets = [0, 0], sizes = [1, 16], strides = [1, 1]} : vector<1x64xf32> to vector<1x16xf32>
    %7 = vector.extract_strided_slice %5 {offsets = [0, 16], sizes = [1, 16], strides = [1, 1]} : vector<1x64xf32> to vector<1x16xf32>
    %8 = arith.addf %6, %7 : vector<1x16xf32>
    %9 = vector.extract_strided_slice %5 {offsets = [0, 32], sizes = [1, 16], strides = [1, 1]} : vector<1x64xf32> to vector<1x16xf32>
    %10 = arith.addf %8, %9 : vector<1x16xf32>
    %11 = vector.extract_strided_slice %5 {offsets = [0, 48], sizes = [1, 16], strides = [1, 1]} : vector<1x64xf32> to vector<1x16xf32>
    %12 = arith.addf %10, %11 : vector<1x16xf32>
    %13 = tpu.concatenate %12, %12, %12, %12 in 1 : vector<1x16xf32>, vector<1x16xf32>, vector<1x16xf32>, vector<1x16xf32> -> vector<1x64xf32>
    %cst_5 = arith.constant 3.906250e-03 : f32
    %14 = vector.broadcast %cst_5 : f32 to vector<1x64xf32>
    %15 = arith.mulf %13, %14 : vector<1x64xf32>
    %16 = vector.broadcast %15 : vector<1x64xf32> to vector<64x64xf32>
    %17 = arith.subf %3, %16 : vector<64x64xf32>
    %18 = arith.mulf %17, %17 : vector<64x64xf32>
    %cst_6 = arith.constant dense<0.000000e+00> : vector<64xf32>
    %19 = vector.multi_reduction <add>, %18, %cst_6 [0] : vector<64x64xf32> to vector<64xf32>
    %20 = vector.shape_cast %19 : vector<64xf32> to vector<1x64xf32>
    %21 = vector.extract_strided_slice %20 {offsets = [0, 0], sizes = [1, 16], strides = [1, 1]} : vector<1x64xf32> to vector<1x16xf32>
    %22 = vector.extract_strided_slice %20 {offsets = [0, 16], sizes = [1, 16], strides = [1, 1]} : vector<1x64xf32> to vector<1x16xf32>
    %23 = arith.addf %21, %22 : vector<1x16xf32>
    %24 = vector.extract_strided_slice %20 {offsets = [0, 32], sizes = [1, 16], strides = [1, 1]} : vector<1x64xf32> to vector<1x16xf32>
    %25 = arith.addf %23, %24 : vector<1x16xf32>
    %26 = vector.extract_strided_slice %20 {offsets = [0, 48], sizes = [1, 16], strides = [1, 1]} : vector<1x64xf32> to vector<1x16xf32>
    %27 = arith.addf %25, %26 : vector<1x16xf32>
    %28 = tpu.concatenate %27, %27, %27, %27 in 1 : vector<1x16xf32>, vector<1x16xf32>, vector<1x16xf32>, vector<1x16xf32> -> vector<1x64xf32>
    %cst_7 = arith.constant 3.906250e-03 : f32
    %29 = vector.broadcast %cst_7 : f32 to vector<1x64xf32>
    %30 = arith.mulf %28, %29 : vector<1x64xf32>
    %31 = vector.broadcast %15 : vector<1x64xf32> to vector<64x64xf32>
    %32 = arith.subf %3, %31 : vector<64x64xf32>
    %cst_8 = arith.constant 9.99999974E-6 : f32
    %33 = vector.broadcast %cst_8 : f32 to vector<1x64xf32>
    %34 = arith.addf %30, %33 : vector<1x64xf32>
    %35 = math.rsqrt %34 : vector<1x64xf32>
    %36 = vector.broadcast %35 : vector<1x64xf32> to vector<64x64xf32>
    %37 = arith.mulf %32, %36 : vector<64x64xf32>
    %c0_9 = arith.constant 0 : index
    %c0_10 = arith.constant 0 : index
    %38 = vector.load %arg3[%c0_9, %c0_10] : memref<1x64xf32, #tpu.memory_space<vmem>>, vector<1x64xf32>
    %39 = vector.broadcast %38 : vector<1x64xf32> to vector<64x64xf32>
    %40 = arith.mulf %37, %39 : vector<64x64xf32>
    %c0_11 = arith.constant 0 : index
    %c0_12 = arith.constant 0 : index
    %41 = vector.load %arg4[%c0_11, %c0_12] : memref<1x64xf32, #tpu.memory_space<vmem>>, vector<1x64xf32>
    %42 = vector.broadcast %41 : vector<1x64xf32> to vector<64x64xf32>
    %43 = arith.addf %40, %42 : vector<64x64xf32>
    %cst_13 = arith.constant 0.000000e+00 : f32
    %44 = vector.broadcast %cst_13 : f32 to vector<64x64xf32>
    %45 = arith.maximumf %43, %44 : vector<64x64xf32>
    %c0_14 = arith.constant 0 : index
    %c0_15 = arith.constant 0 : index
    %c0_16 = arith.constant 0 : index
    %46 = vector.load %arg5[%c0_14, %c0_15, %c0_16] : memref<1x64x64xf32, #tpu.memory_space<vmem>>, vector<1x64x64xf32>
    %47 = vector.shape_cast %46 : vector<1x64x64xf32> to vector<64x64xf32>
    %48 = vector.shape_cast %45 : vector<64x64xf32> to vector<1x64x64xf32>
    tpu.vector_store %arg5[%c0_14, %c0_15, %c0_16], %48 {strides = array<i32>} : memref<1x64x64xf32, #tpu.memory_space<vmem>>, vector<1x64x64xf32>,
    return
  }
  func.func @transform_0(%arg0: i32) -> (i32, i32, i32) {
    %c0_i32 = arith.constant 0 : i32
    %c0_i32_0 = arith.constant 0 : i32
    %c0_i32_1 = arith.constant 0 : i32
    return %arg0, %c0_i32, %c0_i32_0 : i32, i32, i32
  }
  func.func @transform_1(%arg0: i32) -> (i32, i32) {
    %c0_i32 = arith.constant 0 : i32
    %c0_i32_0 = arith.constant 0 : i32
    %c0_i32_1 = arith.constant 0 : i32
    return %c0_i32, %c0_i32_0 : i32, i32
  }
  func.func @transform_2(%arg0: i32) -> (i32, i32) {
    %c0_i32 = arith.constant 0 : i32
    %c0_i32_0 = arith.constant 0 : i32
    %c0_i32_1 = arith.constant 0 : i32
    return %c0_i32, %c0_i32_0 : i32, i32
  }
  func.func @transform_3(%arg0: i32) -> (i32, i32) {
    %c0_i32 = arith.constant 0 : i32
    %c0_i32_0 = arith.constant 0 : i32
    %c0_i32_1 = arith.constant 0 : i32
    return %c0_i32, %c0_i32_0 : i32, i32
  }
  func.func @transform_4(%arg0: i32) -> (i32, i32, i32) {
    %c0_i32 = arith.constant 0 : i32
    %c0_i32_0 = arith.constant 0 : i32
    %c0_i32_1 = arith.constant 0 : i32
    return %arg0, %c0_i32, %c0_i32_0 : i32, i32, i32
  }
}

module attributes {stable_mosaic.version = 11 : i64} {
  func.func @_conv_fused_kernel(%arg0: i32, %arg1: memref<1x256x784xbf16, #tpu.memory_space<vmem>>, %arg2: memref<784x3xbf16, #tpu.memory_space<vmem>>, %arg3: memref<1x256x3xf32, #tpu.memory_space<vmem>>, %arg4: memref<1x256x3xf32, #tpu.memory_space<vmem>>) attributes {dimension_semantics = [#tpu.dimension_semantics<parallel>], iteration_bounds = array<i64: 2>, scalar_prefetch = 0 : i64, scratch_operands = 0 : i64, tpu.core_type = #tpu.core_type<tc>, window_params = [{transform_indices = @transform_0, window_bounds = array<i64: 1, 256, 784>}, {pipeline_mode = #tpu.pipeline_mode<synchronous>, transform_indices = @transform_1, window_bounds = array<i64: 784, 3>}, {transform_indices = @transform_2, window_bounds = array<i64: 1, 256, 3>}, {transform_indices = @transform_3, window_bounds = array<i64: 1, 256, 3>}]} {
    %c0 = arith.constant 0 : index
    %c0_0 = arith.constant 0 : index
    %c0_1 = arith.constant 0 : index
    %0 = vector.load %arg1[%c0, %c0_0, %c0_1] : memref<1x256x784xbf16, #tpu.memory_space<vmem>>, vector<1x256x784xbf16>
    %1 = vector.shape_cast %0 : vector<1x256x784xbf16> to vector<256x784xbf16>
    %c0_2 = arith.constant 0 : index
    %c0_3 = arith.constant 0 : index
    %2 = vector.load %arg2[%c0_2, %c0_3] : memref<784x3xbf16, #tpu.memory_space<vmem>>, vector<784x3xbf16>
    %cst = arith.constant dense<0.000000e+00> : vector<256x3xf32>
    %3 = tpu.matmul %1, %2, %cst {dimension_numbers = #tpu.dot_dimension_numbers<[1], [0], [0], [1], [0, 0, 1, 1], [], []>} : vector<256x784xbf16>, vector<784x3xbf16>, vector<256x3xf32> -> vector<256x3xf32>
    %4 = math.tanh %3 : vector<256x3xf32>
    %c0_4 = arith.constant 0 : index
    %c0_5 = arith.constant 0 : index
    %c0_6 = arith.constant 0 : index
    %5 = vector.load %arg3[%c0_4, %c0_5, %c0_6] : memref<1x256x3xf32, #tpu.memory_space<vmem>>, vector<1x256x3xf32>
    %6 = vector.shape_cast %5 : vector<1x256x3xf32> to vector<256x3xf32>
    %7 = arith.addf %4, %6 : vector<256x3xf32>
    %c0_7 = arith.constant 0 : index
    %c0_8 = arith.constant 0 : index
    %c0_9 = arith.constant 0 : index
    %8 = vector.load %arg4[%c0_7, %c0_8, %c0_9] : memref<1x256x3xf32, #tpu.memory_space<vmem>>, vector<1x256x3xf32>
    %9 = vector.shape_cast %8 : vector<1x256x3xf32> to vector<256x3xf32>
    %10 = vector.shape_cast %7 : vector<256x3xf32> to vector<1x256x3xf32>
    tpu.vector_store %arg4[%c0_7, %c0_8, %c0_9], %10 {strides = array<i32>} : memref<1x256x3xf32, #tpu.memory_space<vmem>>, vector<1x256x3xf32>,
    return
  }
  func.func @transform_0(%arg0: i32) -> (i32, i32, i32) {
    %c0_i32 = arith.constant 0 : i32
    %c0_i32_0 = arith.constant 0 : i32
    %c0_i32_1 = arith.constant 0 : i32
    return %arg0, %c0_i32, %c0_i32_0 : i32, i32, i32
  }
  func.func @transform_1(%arg0: i32) -> (i32, i32) {
    %c0_i32 = arith.constant 0 : i32
    %c0_i32_0 = arith.constant 0 : i32
    %c0_i32_1 = arith.constant 0 : i32
    return %c0_i32, %c0_i32_0 : i32, i32
  }
  func.func @transform_2(%arg0: i32) -> (i32, i32, i32) {
    %c0_i32 = arith.constant 0 : i32
    %c0_i32_0 = arith.constant 0 : i32
    %c0_i32_1 = arith.constant 0 : i32
    return %arg0, %c0_i32, %c0_i32_0 : i32, i32, i32
  }
  func.func @transform_3(%arg0: i32) -> (i32, i32, i32) {
    %c0_i32 = arith.constant 0 : i32
    %c0_i32_0 = arith.constant 0 : i32
    %c0_i32_1 = arith.constant 0 : i32
    return %arg0, %c0_i32, %c0_i32_0 : i32, i32, i32
  }
}

</mosaic_0001>

<llo_original>
// kernel: generator_forward.5
$region0: #{generator_forward.5}
  #allocation0 [shape = 'u32[]', space=smem, size = 0x4, offset = 0x4, fixed_abs, tag = 'smem constant byte address 0x4 - core index']
  #allocation1 [shape = 'u32[144,128]{1,0:T(1,128)}', space=vmem, size = 0x12000, scoped, tag = 'internal scratch']
  %s0 = inlined_call_operand.vmem [shape: bf16[2,256,147], index: 0, kind: input, shape index: {}]
  %s1 = inlined_call_operand.vmem [shape: bf16[147,16], index: 1, kind: input, shape index: {}]
  %s2 = inlined_call_operand.vmem [shape: f32[1,16], index: 2, kind: input, shape index: {}]
  %s3 = inlined_call_operand.vmem [shape: f32[1,16], index: 3, kind: input, shape index: {}]
  %s4 = inlined_call_operand.vmem [shape: f32[2,256,16], index: 4, kind: output, shape index: {}]
  %s5 = sld [smem:[#allocation0]]
  $region49: #{generator_forward.5} parent=0
    _
  %s7 = ssub.s32 1, %s5
  %s8 = scalar_select 0, %s7, %s5
  loop: start=0, step=1, limit=4
  $region2: #{generator_forward.5} parent=0 // loop_pre_header
    _
  $region3: #{generator_forward.5} parent=0 // loop_header
    %s10 = sphi 0, %s14
    %p11 = scmp.ge.s32.totalorder %s10, 4
    %s20 = sphi 0, %s22
    %s23 = sphi 0, %s20
    %s24 = sphi 0, %s23
    %s40 = sphi 0, %s24
    %s44 = sphi 0, %s44
    %s46 = sphi 0, %s44
    %s47 = sphi 0, %s46
    %s61 = sphi 0, %s47
    %s65 = sphi 0, %s65
    %s67 = sphi 0, %s65
    %s68 = sphi 0, %s67
    %s82 = sphi 0, %s68
    %s86 = sphi 0, %s86
    %s88 = sphi 0, %s86
    %s89 = sphi 0, %s88
    %s103 = sphi 0, %s89
    %s109 = sphi 0, %s111
    %s112 = sphi 0, %s109
    %s113 = sphi 0, %s112
    %s129 = sphi 0, %s113
  $region4: #{generator_forward.5} parent=0 // loop_header_branch
    %13 = sbr.rel (%p11) target = $region8
  $region5: #{generator_forward.5} parent=0 // loop_body
    %s15 = ssub.s32 %s10, 1
    %s16 = ssub.s32 %s10, 2
    %s17 = sadd.s32 %s10, 1
    %s18 = ssub.s32 %s10, %s17
    %p19 = scmp.eq.s32.totalorder %s18, 0
    %s21 = sadd.s32 %s20, 1
    %s22 = scalar_select %p19, %s20, %s21
    %p25 = pneg %p19
    %p26 = scmp.eq.s32.totalorder %s10, 1
    %p27 = por %p25, %p26
    %p28 = scmp.ne.s32.totalorder %s20, %s23
    %p29 = scmp.eq.s32.totalorder %s10, 0
    %p30 = por %p28, %p29
    %p31 = scmp.ne.s32.totalorder %s20, %s23
    %p32 = scmp.eq.s32.totalorder %s15, 1
    %p33 = por %p31, %p32
    %p34 = scmp.ne.s32.totalorder %s23, %s24
    %p35 = scmp.eq.s32.totalorder %s15, 0
    %p36 = por %p34, %p35
    %p37 = scmp.ne.s32.totalorder %s23, %s24
    %p38 = scmp.eq.s32.totalorder %s16, 1
    %p39 = por %p37, %p38
    %p41 = scmp.ne.s32.totalorder %s24, %s40
    %p42 = scmp.eq.s32.totalorder %s16, 0
    %p43 = por %p41, %p42
    %s45 = sadd.s32 %s44, 1
    %p48 = scmp.eq.s32.totalorder %s10, 1
    %p49 = scmp.ne.s32.totalorder %s44, %s46
    %p50 = scmp.eq.s32.totalorder %s10, 0
    %p51 = por %p49, %p50
    %p52 = scmp.ne.s32.totalorder %s44, %s46
    %p53 = scmp.eq.s32.totalorder %s15, 1
    %p54 = por %p52, %p53
    %p55 = scmp.ne.s32.totalorder %s46, %s47
    %p56 = scmp.eq.s32.totalorder %s15, 0
    %p57 = por %p55, %p56
    %p58 = scmp.ne.s32.totalorder %s46, %s47
    %p59 = scmp.eq.s32.totalorder %s16, 1
    %p60 = por %p58, %p59
    %p62 = scmp.ne.s32.totalorder %s47, %s61
    %p63 = scmp.eq.s32.totalorder %s16, 0
    %p64 = por %p62, %p63
    %s66 = sadd.s32 %s65, 1
    %p69 = scmp.eq.s32.totalorder %s10, 1
    %p70 = scmp.ne.s32.totalorder %s65, %s67
    %p71 = scmp.eq.s32.totalorder %s10, 0
    %p72 = por %p70, %p71
    %p73 = scmp.ne.s32.totalorder %s65, %s67
    %p74 = scmp.eq.s32.totalorder %s15, 1
    %p75 = por %p73, %p74
    %p76 = scmp.ne.s32.totalorder %s67, %s68
    %p77 = scmp.eq.s32.totalorder %s15, 0
    %p78 = por %p76, %p77
    %p79 = scmp.ne.s32.totalorder %s67, %s68
    %p80 = scmp.eq.s32.totalorder %s16, 1
    %p81 = por %p79, %p80
    %p83 = scmp.ne.s32.totalorder %s68, %s82
    %p84 = scmp.eq.s32.totalorder %s16, 0
    %p85 = por %p83, %p84
    %s87 = sadd.s32 %s86, 1
    %p90 = scmp.eq.s32.totalorder %s10, 1
    %p91 = scmp.ne.s32.totalorder %s86, %s88
    %p92 = scmp.eq.s32.totalorder %s10, 0
    %p93 = por %p91, %p92
    %p94 = scmp.ne.s32.totalorder %s86, %s88
    %p95 = scmp.eq.s32.totalorder %s15, 1
    %p96 = por %p94, %p95
    %p97 = scmp.ne.s32.totalorder %s88, %s89
    %p98 = scmp.eq.s32.totalorder %s15, 0
    %p99 = por %p97, %p98
    %p100 = scmp.ne.s32.totalorder %s88, %s89
    %p101 = scmp.eq.s32.totalorder %s16, 1
    %p102 = por %p100, %p101
    %p104 = scmp.ne.s32.totalorder %s89, %s103
    %p105 = scmp.eq.s32.totalorder %s16, 0
    %p106 = por %p104, %p105
    %s107 = ssub.s32 %s10, %s17
    %p108 = scmp.eq.s32.totalorder %s107, 0
    %s110 = sadd.s32 %s109, 1
    %s111 = scalar_select %p108, %s109, %s110
    %p114 = pneg %p108
    %p115 = scmp.eq.s32.totalorder %s10, 1
    %p116 = por %p114, %p115
    %p117 = scmp.ne.s32.totalorder %s109, %s112
    %p118 = scmp.eq.s32.totalorder %s10, 0
    %p119 = por %p117, %p118
    %p120 = scmp.ne.s32.totalorder %s109, %s112
    %p121 = scmp.eq.s32.totalorder %s15, 1
    %p122 = por %p120, %p121
    %p123 = scmp.ne.s32.totalorder %s112, %s113
    %p124 = scmp.eq.s32.totalorder %s15, 0
    %p125 = por %p123, %p124
    %p126 = scmp.ne.s32.totalorder %s112, %s113
    %p127 = scmp.eq.s32.totalorder %s16, 1
    %p128 = por %p126, %p127
    %p130 = scmp.ne.s32.totalorder %s113, %s129
    %p131 = scmp.eq.s32.totalorder %s16, 0
    %p132 = por %p130, %p131
    %p133 = scmp.le.s32.totalorder 1, %s10
    %p134 = scmp.lt.s32.totalorder %s10, 3
    %p135 = pnand %p133, %p134
    %p136 = pneg %p135
    // Predicated region
    $region9: #{generator_forward.5} parent=5 // pred_check
      _
    $region10: #{generator_forward.5} parent=5 // pred_check_branch
      %138 = sbr.rel (%p135) target = $region12
    $region11: #{generator_forward.5} parent=5 // pred_region
      %s139 = ssub.s32 %s10, 1
      // Predicated region
      $region13: #{generator_forward.5} parent=11 // pred_check
        %p140 = pneg %p57
      $region14: #{generator_forward.5} parent=11 // pred_check_branch
        %142 = sbr.rel (%p140) target = $region16
      $region15: #{generator_forward.5} parent=11 // pred_region
        _
      $region16: #{generator_forward.5} parent=11 // pred_fallthru
        _
      // Predicated region
      $region17: #{generator_forward.5} parent=11 // pred_check
        %p143 = pneg %p78
      $region18: #{generator_forward.5} parent=11 // pred_check_branch
        %145 = sbr.rel (%p143) target = $region20
      $region19: #{generator_forward.5} parent=11 // pred_region
        _
      $region20: #{generator_forward.5} parent=11 // pred_fallthru
        _
      // Predicated region
      $region21: #{generator_forward.5} parent=11 // pred_check
        %p146 = pneg %p99
      $region22: #{generator_forward.5} parent=11 // pred_check_branch
        %148 = sbr.rel (%p146) target = $region24
      $region23: #{generator_forward.5} parent=11 // pred_region
        _
      $region24: #{generator_forward.5} parent=11 // pred_fallthru
        _
    $region12: #{generator_forward.5} parent=5 // pred_fallthru
      _
    %p149 = scmp.lt.s32.totalorder %s10, 2
    // Predicated region
    $region25: #{generator_forward.5} parent=5 // pred_check
      %p150 = pneg %p149
    $region26: #{generator_forward.5} parent=5 // pred_check_branch
      %152 = sbr.rel (%p150) target = $region28
    $region27: #{generator_forward.5} parent=5 // pred_region
      // Predicated region
      $region29: #{generator_forward.5} parent=27 // pred_check
        %p153 = pneg %p30
      $region30: #{generator_forward.5} parent=27 // pred_check_branch
        %155 = sbr.rel (%p153) target = $region32
      $region31: #{generator_forward.5} parent=27 // pred_region
        %p156 = scmp.lt.s32.totalorder %s10, 1
        %s157 = scalar_select %p156, %s10, 1
        %s158 = smul.addr %s157, 64
        %s159 = smul.addr %s158, 4
        %s160 = scalar_lea.vmem %s0, %s159
      $region32: #{generator_forward.5} parent=27 // pred_fallthru
        _
    $region28: #{generator_forward.5} parent=5 // pred_fallthru
      _
    %p161 = scmp.le.s32.totalorder 1, %s10
    %p162 = scmp.lt.s32.totalorder %s10, 3
    %p163 = pnand %p161, %p162
    %p164 = pneg %p163
    // Predicated region
    $region33: #{generator_forward.5} parent=5 // pred_check
      _
    $region34: #{generator_forward.5} parent=5 // pred_check_branch
      %166 = sbr.rel (%p163) target = $region36
    $region35: #{generator_forward.5} parent=5 // pred_region
      %s167 = ssub.s32 %s10, 1
      %p168 = scmp.lt.s32.totalorder %s15, 1
      %s169 = scalar_select %p168, %s15, 1
      %s170 = smul.addr %s169, 64
      %s171 = smul.addr %s170, 4
      %s172 = scalar_lea.vmem %s0, %s171
      %p173 = pneg %p36
      %p174 = pneg %p33
      %p175 = pneg %p57
      %p176 = pneg %p54
      %p177 = pneg %p78
      %p178 = pneg %p75
      %p179 = pneg %p99
      %p180 = pneg %p96
      %p181 = pneg %p125
      %p182 = pneg %p122
      %p183 = scmp.lt.s32.totalorder %s15, 1
      %s184 = scalar_select %p183, %s15, 1
      %s185 = smul.addr %s184, 32
      %s186 = smul.addr %s185, 8
      %s187 = scalar_lea.vmem %s4, %s186
      %p188 = scmp.lt.s32.totalorder %s15, 1
      %s189 = scalar_select %p188, %s15, 1
      %s190 = smul.addr %s189, 64
      %s191 = smul.addr %s190, 4
      %s192 = scalar_lea.vmem %s0, %s191
      %p193 = scmp.lt.s32.totalorder %s15, 1
      %s194 = scalar_select %p193, %s15, 1
      %s195 = smul.addr %s194, 32
      %s196 = smul.addr %s195, 8
      %s197 = scalar_lea.vmem %s4, %s196
      %v199 = vld [vmem:[%s192] sm:$0xff]
      %v200 = vld [vmem:[%s192 + $0x8] sm:$0xff]
      %v201 = vld [vmem:[%s192 + $0x10] sm:$0xff]
      %v202 = vld [vmem:[%s192 + $0x18] sm:$0xff]
      %v203 = vld [vmem:[%s192 + $0x20] sm:$0xff]
      %v204 = vld [vmem:[%s192 + $0x28] sm:$0xff]
      %v205 = vld [vmem:[%s192 + $0x30] sm:$0xff]
      %v206 = vld [vmem:[%s192 + $0x38] sm:$0xff]
      %v207 = vld [vmem:[%s192 + $0x40] sm:$0xff]
      %v208 = vld [vmem:[%s192 + $0x48] sm:$0xff]
      %v209 = vld [vmem:[%s192 + $0x50] sm:$0xff]
      %v210 = vld [vmem:[%s192 + $0x58] sm:$0xff]
      %v211 = vld [vmem:[%s192 + $0x60] sm:$0xff]
      %v212 = vld [vmem:[%s192 + $0x68] sm:$0xff]
      %v213 = vld [vmem:[%s192 + $0x70] sm:$0xff]
      %v214 = vld [vmem:[%s192 + $0x78] sm:$0xff]
      %v215 = vld [vmem:[%s192 + $0x80] sm:$0xff]
      %v216 = vld [vmem:[%s192 + $0x88] sm:$0xff]
      %v217 = vld [vmem:[%s192 + $0x90] sm:$0xff]
      %v218 = vld [vmem:[%s192 + $0x98] sm:$0xff]
      %v219 = vld [vmem:[%s192 + $0xa0] sm:$0xff]
      %v220 = vld [vmem:[%s192 + $0xa8] sm:$0xff]
      %v221 = vld [vmem:[%s192 + $0xb0] sm:$0xff]
      %v222 = vld [vmem:[%s192 + $0xb8] sm:$0xff]
      %v223 = vld [vmem:[%s192 + $0xc0] sm:$0xff]
      %v224 = vld [vmem:[%s192 + $0xc8] sm:$0xff]
      %v225 = vld [vmem:[%s192 + $0xd0] sm:$0xff]
      %v226 = vld [vmem:[%s192 + $0xd8] sm:$0xff]
      %v227 = vld [vmem:[%s192 + $0xe0] sm:$0xff]
      %v228 = vld [vmem:[%s192 + $0xe8] sm:$0xff]
      %v229 = vld [vmem:[%s192 + $0xf0] sm:$0xff]
      %v230 = vld [vmem:[%s192 + $0xf8] sm:$0xff]
      %v231 = vld [vmem:[%s1] sm:$0xf]
      %v232 = vld [vmem:[%s1 + $0x4] sm:$0xf]
      %v233 = vld [vmem:[%s1 + $0x8] sm:$0xf]
      %v234 = vld [vmem:[%s1 + $0xc] sm:$0xf]
      %v235 = vld [vmem:[%s1 + $0x10] sm:$0xf]
      %v236 = vld [vmem:[%s1 + $0x14] sm:$0xf]
      %v237 = vld [vmem:[%s1 + $0x18] sm:$0xf]
      %v238 = vld [vmem:[%s1 + $0x1c] sm:$0xf]
      %v239 = vld [vmem:[%s1 + $0x20] sm:$0xf]
      %v240 = vld [vmem:[%s1 + $0x24] sm:$0xf]
      %v241 = vld [vmem:[%s1 + $0x28] sm:$0xf]
      %v242 = vld [vmem:[%s1 + $0x2c] sm:$0xf]
      %v243 = vld [vmem:[%s1 + $0x30] sm:$0xf]
      %v244 = vld [vmem:[%s1 + $0x34] sm:$0xf]
      %v245 = vld [vmem:[%s1 + $0x38] sm:$0xf]
      %v246 = vld [vmem:[%s1 + $0x3c] sm:$0xf]
      %v247 = vld [vmem:[%s1 + $0x40] sm:$0xf]
      %v248 = vld [vmem:[%s1 + $0x44] sm:$0xf]
      %v249 = vld [vmem:[%s1 + $0x48] sm:$0x3]
      %v282 = vunpack.c.l.b16 %v199
      %v283 = vunpack.c.h.b16 %v199
      %v284 = vunpack.c.l.b16 %v200
      %v285 = vunpack.c.h.b16 %v200
      %v286 = vunpack.c.l.b16 %v201
      %v287 = vunpack.c.h.b16 %v201
      %v288 = vunpack.c.l.b16 %v202
      %v289 = vunpack.c.h.b16 %v202
      %v290 = vunpack.c.l.b16 %v203
      %v291 = vunpack.c.h.b16 %v203
      %v292 = vunpack.c.l.b16 %v204
      %v293 = vunpack.c.h.b16 %v204
      %v294 = vunpack.c.l.b16 %v205
      %v295 = vunpack.c.h.b16 %v205
      %v296 = vunpack.c.l.b16 %v206
      %v297 = vunpack.c.h.b16 %v206
      %v298 = vunpack.c.l.b16 %v207
      %v299 = vunpack.c.h.b16 %v207
      %v300 = vunpack.c.l.b16 %v208
      %v301 = vunpack.c.h.b16 %v208
      %v302 = vunpack.c.l.b16 %v209
      %v303 = vunpack.c.h.b16 %v209
      %v304 = vunpack.c.l.b16 %v210
      %v305 = vunpack.c.h.b16 %v210
      %v306 = vunpack.c.l.b16 %v211
      %v307 = vunpack.c.h.b16 %v211
      %v308 = vunpack.c.l.b16 %v212
      %v309 = vunpack.c.h.b16 %v212
      %v310 = vunpack.c.l.b16 %v213
      %v311 = vunpack.c.h.b16 %v213
      %v312 = vunpack.c.l.b16 %v214
      %v313 = vunpack.c.h.b16 %v214
      %v314 = vunpack.c.l.b16 %v215
      %v315 = vunpack.c.h.b16 %v215
      %v316 = vunpack.c.l.b16 %v216
      %v317 = vunpack.c.h.b16 %v216
      %v318 = vunpack.c.l.b16 %v217
      %v319 = vunpack.c.h.b16 %v217
      %v320 = vunpack.c.l.b16 %v218
      %v321 = vunpack.c.h.b16 %v218
      %v322 = vunpack.c.l.b16 %v219
      %v323 = vunpack.c.h.b16 %v219
      %v324 = vunpack.c.l.b16 %v220
      %v325 = vunpack.c.h.b16 %v220
      %v326 = vunpack.c.l.b16 %v221
      %v327 = vunpack.c.h.b16 %v221
      %v328 = vunpack.c.l.b16 %v222
      %v329 = vunpack.c.h.b16 %v222
      %v330 = vunpack.c.l.b16 %v223
      %v331 = vunpack.c.h.b16 %v223
      %v332 = vunpack.c.l.b16 %v224
      %v333 = vunpack.c.h.b16 %v224
      %v334 = vunpack.c.l.b16 %v225
      %v335 = vunpack.c.h.b16 %v225
      %v336 = vunpack.c.l.b16 %v226
      %v337 = vunpack.c.h.b16 %v226
      %v338 = vunpack.c.l.b16 %v227
      %v339 = vunpack.c.h.b16 %v227
      %v340 = vunpack.c.l.b16 %v228
      %v341 = vunpack.c.h.b16 %v228
      %v342 = vunpack.c.l.b16 %v229
      %v343 = vunpack.c.h.b16 %v229
      %v344 = vunpack.c.l.b16 %v230
      %v345 = vunpack.c.h.b16 %v230
      %v346 = vpack.c.b16 %v284, %v282
      %v347 = vpack.c.b16 %v285, %v283
      %v348 = vpack.c.b16 %v288, %v286
      %v349 = vpack.c.b16 %v289, %v287
      %v350 = vpack.c.b16 %v292, %v290
      %v351 = vpack.c.b16 %v293, %v291
      %v352 = vpack.c.b16 %v296, %v294
      %v353 = vpack.c.b16 %v297, %v295
      %v354 = vpack.c.b16 %v300, %v298
      %v355 = vpack.c.b16 %v301, %v299
      %v356 = vpack.c.b16 %v304, %v302
      %v357 = vpack.c.b16 %v305, %v303
      %v358 = vpack.c.b16 %v308, %v306
      %v359 = vpack.c.b16 %v309, %v307
      %v360 = vpack.c.b16 %v312, %v310
      %v361 = vpack.c.b16 %v313, %v311
      %v362 = vpack.c.b16 %v316, %v314
      %v363 = vpack.c.b16 %v317, %v315
      %v364 = vpack.c.b16 %v320, %v318
      %v365 = vpack.c.b16 %v321, %v319
      %v366 = vpack.c.b16 %v324, %v322
      %v367 = vpack.c.b16 %v325, %v323
      %v368 = vpack.c.b16 %v328, %v326
      %v369 = vpack.c.b16 %v329, %v327
      %v370 = vpack.c.b16 %v332, %v330
      %v371 = vpack.c.b16 %v333, %v331
      %v372 = vpack.c.b16 %v336, %v334
      %v373 = vpack.c.b16 %v337, %v335
      %v374 = vpack.c.b16 %v340, %v338
      %v375 = vpack.c.b16 %v341, %v339
      %v376 = vpack.c.b16 %v344, %v342
      %v377 = vpack.c.b16 %v345, %v343
      %v413 = vunpack.c.l.b16 %v231
      %v414 = vunpack.c.l.b16 %v232
      %v415 = vunpack.c.l.b16 %v233
      %v416 = vunpack.c.l.b16 %v234
      %v417 = vunpack.c.l.b16 %v235
      %v418 = vunpack.c.l.b16 %v236
      %v419 = vunpack.c.l.b16 %v237
      %v420 = vunpack.c.l.b16 %v238
      %v421 = vunpack.c.l.b16 %v239
      %v422 = vunpack.c.l.b16 %v240
      %v423 = vunpack.c.l.b16 %v241
      %v424 = vunpack.c.l.b16 %v242
      %v425 = vunpack.c.l.b16 %v243
      %v426 = vunpack.c.l.b16 %v244
      %v427 = vunpack.c.l.b16 %v245
      %v428 = vunpack.c.l.b16 %v246
      %v429 = vunpack.c.l.b16 %v247
      %v430 = vunpack.c.l.b16 %v248
      %v431 = vunpack.c.l.b16 %v249
      %v432 = vpack.c.b16 %v414, %v413
      %v433 = vpack.c.b16 %v416, %v415
      %v434 = vpack.c.b16 %v418, %v417
      %v435 = vpack.c.b16 %v420, %v419
      %v436 = vpack.c.b16 %v422, %v421
      %v437 = vpack.c.b16 %v424, %v423
      %v438 = vpack.c.b16 %v426, %v425
      %v439 = vpack.c.b16 %v428, %v427
      %v440 = vpack.c.b16 %v430, %v429
      %v441 = vpack.c.b16 %v431, %v431
      %vm451 = vcmask 154624
      %v453 = vsel %vm451, %v347, 0
      %v456 = vsel %vm451, %v349, 0
      %v459 = vsel %vm451, %v351, 0
      %v462 = vsel %vm451, %v353, 0
      %v465 = vsel %vm451, %v355, 0
      %v468 = vsel %vm451, %v357, 0
      %v471 = vsel %vm451, %v359, 0
      %v474 = vsel %vm451, %v361, 0
      %v477 = vsel %vm451, %v363, 0
      %v480 = vsel %vm451, %v365, 0
      %v483 = vsel %vm451, %v367, 0
      %v486 = vsel %vm451, %v369, 0
      %v489 = vsel %vm451, %v371, 0
      %v492 = vsel %vm451, %v373, 0
      %v495 = vsel %vm451, %v375, 0
      %v498 = vsel %vm451, %v377, 0
      %vm500 = vcmask 1040384
      %vm501 = vcmask 1041408
      %v502 = vsel %vm500, 4294967295, 65535
      %v503 = vsel %vm501, %v502, 0
      %v505 = vand.u32 %v441, %v503
      %507 = vmatprep.subr.bf16.mxu0 0
      %508 = vmatpush1.bf16.msra.mxu0 %v432
      %509 = vmatprep.subr.bf16.mxu0 0
      %510 = vmatpush1.bf16.msra.mxu0 %v433
      %511 = vmatprep.subr.bf16.mxu0 0
      %512 = vmatpush1.bf16.msra.mxu0 %v434
      %513 = vmatprep.subr.bf16.mxu0 0
      %514 = vmatpush1.bf16.msra.mxu0 %v435
      %515 = vmatprep.subr.bf16.mxu0 0
      %516 = vmatpush1.bf16.msra.mxu0 %v436
      %517 = vmatprep.subr.bf16.mxu0 0
      %518 = vmatpush1.bf16.msra.mxu0 %v437
      %519 = vmatprep.subr.bf16.mxu0 0
      %520 = vmatpush1.bf16.msra.mxu0 %v438
      %521 = vmatprep.subr.bf16.mxu0 0
      %522 = vmatpush1.bf16.msra.mxu0 %v439
      %523 = vmatprep.subr.bf16.mxu0 0
      %524 = vmatpush1.bf16.msra.mxu0 %v440
      %525 = vmatprep.subr.bf16.mxu0 0
      %526 = vmatpush1.bf16.msra.mxu0 %v505
      %527 = vmatprep.subr.bf16.mxu0 0
      %528 = vmatpush1.bf16.msra.mxu0 0
      %529 = vmatprep.subr.bf16.mxu0 0
      %530 = vmatpush1.bf16.msra.mxu0 0
      %531 = vmatprep.subr.bf16.mxu0 0
      %532 = vmatpush1.bf16.msra.mxu0 0
      %533 = vmatprep.subr.bf16.mxu0 0
      %534 = vmatpush1.bf16.msra.mxu0 0
      %535 = vmatprep.subr.bf16.mxu0 0
      %536 = vmatpush1.bf16.msra.mxu0 0
      %537 = vmatprep.subr.bf16.mxu0 0
      %538 = vmatpush1.bf16.msra.mxu0 0
      %539 = vmatprep.mubr.bf16.mxu0 %v453
      %540 = vmatmul.mubr.bf16.gmra.mrb[0].mxu0 %v346
      %v541 = vpop.f32.mrb[0].mxu0
      %v542 = vadd.f32 0.0, %v541
      %v543 = vpop.f32.mrb[0].mxu0
      %v544 = vpop.f32.mrb[0].mxu0
      %v545 = vadd.f32 0.0, %v544
      %v546 = vpop.f32.mrb[0].mxu0
      %547 = vmatprep.mubr.bf16.mxu0 %v456
      %548 = vmatmul.mubr.bf16.gmra.mrb[0].mxu0 %v348
      %v549 = vpop.f32.mrb[0].mxu0
      %v550 = vadd.f32 0.0, %v549
      %v551 = vpop.f32.mrb[0].mxu0
      %v552 = vpop.f32.mrb[0].mxu0
      %v553 = vadd.f32 0.0, %v552
      %v554 = vpop.f32.mrb[0].mxu0
      %555 = vmatprep.mubr.bf16.mxu0 %v459
      %556 = vmatmul.mubr.bf16.gmra.mrb[0].mxu0 %v350
      %v557 = vpop.f32.mrb[0].mxu0
      %v558 = vadd.f32 0.0, %v557
      %v559 = vpop.f32.mrb[0].mxu0
      %v560 = vpop.f32.mrb[0].mxu0
      %v561 = vadd.f32 0.0, %v560
      %v562 = vpop.f32.mrb[0].mxu0
      %563 = vmatprep.mubr.bf16.mxu0 %v462
      %564 = vmatmul.mubr.bf16.gmra.mrb[0].mxu0 %v352
      %v565 = vpop.f32.mrb[0].mxu0
      %v566 = vadd.f32 0.0, %v565
      %v567 = vpop.f32.mrb[0].mxu0
      %v568 = vpop.f32.mrb[0].mxu0
      %v569 = vadd.f32 0.0, %v568
      %v570 = vpop.f32.mrb[0].mxu0
      %571 = vmatprep.mubr.bf16.mxu0 %v465
      %572 = vmatmul.mubr.bf16.gmra.mrb[0].mxu0 %v354
      %v573 = vpop.f32.mrb[0].mxu0
      %v574 = vadd.f32 0.0, %v573
      %v575 = vpop.f32.mrb[0].mxu0
      %v576 = vpop.f32.mrb[0].mxu0
      %v577 = vadd.f32 0.0, %v576
      %v578 = vpop.f32.mrb[0].mxu0
      %579 = vmatprep.mubr.bf16.mxu0 %v468
      %580 = vmatmul.mubr.bf16.gmra.mrb[0].mxu0 %v356
      %v581 = vpop.f32.mrb[0].mxu0
      %v582 = vadd.f32 0.0, %v581
      %v583 = vpop.f32.mrb[0].mxu0
      %v584 = vpop.f32.mrb[0].mxu0
      %v585 = vadd.f32 0.0, %v584
      %v586 = vpop.f32.mrb[0].mxu0
      %587 = vmatprep.mubr.bf16.mxu0 %v471
      %588 = vmatmul.mubr.bf16.gmra.mrb[0].mxu0 %v358
      %v589 = vpop.f32.mrb[0].mxu0
      %v590 = vadd.f32 0.0, %v589
      %v591 = vpop.f32.mrb[0].mxu0
      %v592 = vpop.f32.mrb[0].mxu0
      %v593 = vadd.f32 0.0, %v592
      %v594 = vpop.f32.mrb[0].mxu0
      %595 = vmatprep.mubr.bf16.mxu0 %v474
      %596 = vmatmul.mubr.bf16.gmra.mrb[0].mxu0 %v360
      %v597 = vpop.f32.mrb[0].mxu0
      %v598 = vadd.f32 0.0, %v597
      %v599 = vpop.f32.mrb[0].mxu0
      %v600 = vpop.f32.mrb[0].mxu0
      %v601 = vadd.f32 0.0, %v600
      %v602 = vpop.f32.mrb[0].mxu0
      %603 = vmatprep.mubr.bf16.mxu0 %v477
      %604 = vmatmul.mubr.bf16.gmra.mrb[0].mxu0 %v362
      %v605 = vpop.f32.mrb[0].mxu0
      %v606 = vadd.f32 0.0, %v605
      %v607 = vpop.f32.mrb[0].mxu0
      %v608 = vpop.f32.mrb[0].mxu0
      %v609 = vadd.f32 0.0, %v608
      %v610 = vpop.f32.mrb[0].mxu0
      %611 = vmatprep.mubr.bf16.mxu0 %v480
      %612 = vmatmul.mubr.bf16.gmra.mrb[0].mxu0 %v364
      %v613 = vpop.f32.mrb[0].mxu0
      %v614 = vadd.f32 0.0, %v613
      %v615 = vpop.f32.mrb[0].mxu0
      %v616 = vpop.f32.mrb[0].mxu0
      %v617 = vadd.f32 0.0, %v616
      %v618 = vpop.f32.mrb[0].mxu0
      %619 = vmatprep.mubr.bf16.mxu0 %v483
      %620 = vmatmul.mubr.bf16.gmra.mrb[0].mxu0 %v366
      %v621 = vpop.f32.mrb[0].mxu0
      %v622 = vadd.f32 0.0, %v621
      %v623 = vpop.f32.mrb[0].mxu0
      %v624 = vpop.f32.mrb[0].mxu0
      %v625 = vadd.f32 0.0, %v624
      %v626 = vpop.f32.mrb[0].mxu0
      %627 = vmatprep.mubr.bf16.mxu0 %v486
      %628 = vmatmul.mubr.bf16.gmra.mrb[0].mxu0 %v368
      %v629 = vpop.f32.mrb[0].mxu0
      %v630 = vadd.f32 0.0, %v629
      %v631 = vpop.f32.mrb[0].mxu0
      %v632 = vpop.f32.mrb[0].mxu0
      %v633 = vadd.f32 0.0, %v632
      %v634 = vpop.f32.mrb[0].mxu0
      %635 = vmatprep.mubr.bf16.mxu0 %v489
      %636 = vmatmul.mubr.bf16.gmra.mrb[0].mxu0 %v370
      %v637 = vpop.f32.mrb[0].mxu0
      %v638 = vadd.f32 0.0, %v637
      %v639 = vpop.f32.mrb[0].mxu0
      %v640 = vpop.f32.mrb[0].mxu0
      %v641 = vadd.f32 0.0, %v640
      %v642 = vpop.f32.mrb[0].mxu0
      %643 = vmatprep.mubr.bf16.mxu0 %v492
      %644 = vmatmul.mubr.bf16.gmra.mrb[0].mxu0 %v372
      %v645 = vpop.f32.mrb[0].mxu0
      %v646 = vadd.f32 0.0, %v645
      %v647 = vpop.f32.mrb[0].mxu0
      %v648 = vpop.f32.mrb[0].mxu0
      %v649 = vadd.f32 0.0, %v648
      %v650 = vpop.f32.mrb[0].mxu0
      %651 = vmatprep.mubr.bf16.mxu0 %v495
      %652 = vmatmul.mubr.bf16.gmra.mrb[0].mxu0 %v374
      %v653 = vpop.f32.mrb[0].mxu0
      %v654 = vadd.f32 0.0, %v653
      %v655 = vpop.f32.mrb[0].mxu0
      %v656 = vpop.f32.mrb[0].mxu0
      %v657 = vadd.f32 0.0, %v656
      %v658 = vpop.f32.mrb[0].mxu0
      %659 = vmatprep.mubr.bf16.mxu0 %v498
      %660 = vmatmul.mubr.bf16.gmra.mrb[0].mxu0 %v376
      %v661 = vpop.f32.mrb[0].mxu0
      %v662 = vadd.f32 0.0, %v661
      %v663 = vpop.f32.mrb[0].mxu0
      %v664 = vpop.f32.mrb[0].mxu0
      %v665 = vadd.f32 0.0, %v664
      %v666 = vpop.f32.mrb[0].mxu0
      %667 = vdwg.mxu0
      %vm668 = vcmask 130048
      %v669 = vsel %vm668, %v542, 0.0
      %v670 = vsel %vm668, %v545, 0.0
      %v671 = vadd.f32 %v669, %v670
      %v672 = vsel %vm668, %v550, 0.0
      %v673 = vadd.f32 %v671, %v672
      %v674 = vsel %vm668, %v553, 0.0
      %v675 = vadd.f32 %v673, %v674
      %v676 = vsel %vm668, %v558, 0.0
      %v677 = vadd.f32 %v675, %v676
      %v678 = vsel %vm668, %v561, 0.0
      %v679 = vadd.f32 %v677, %v678
      %v680 = vsel %vm668, %v566, 0.0
      %v681 = vadd.f32 %v679, %v680
      %v682 = vsel %vm668, %v569, 0.0
      %v683 = vadd.f32 %v681, %v682
      %v684 = vsel %vm668, %v574, 0.0
      %v685 = vadd.f32 %v683, %v684
      %v686 = vsel %vm668, %v577, 0.0
      %v687 = vadd.f32 %v685, %v686
      %v688 = vsel %vm668, %v582, 0.0
      %v689 = vadd.f32 %v687, %v688
      %v690 = vsel %vm668, %v585, 0.0
      %v691 = vadd.f32 %v689, %v690
      %v692 = vsel %vm668, %v590, 0.0
      %v693 = vadd.f32 %v691, %v692
      %v694 = vsel %vm668, %v593, 0.0
      %v695 = vadd.f32 %v693, %v694
      %v696 = vsel %vm668, %v598, 0.0
      %v697 = vadd.f32 %v695, %v696
      %v698 = vsel %vm668, %v601, 0.0
      %v699 = vadd.f32 %v697, %v698
      %v700 = vsel %vm668, %v606, 0.0
      %v701 = vadd.f32 %v699, %v700
      %v702 = vsel %vm668, %v609, 0.0
      %v703 = vadd.f32 %v701, %v702
      %v704 = vsel %vm668, %v614, 0.0
      %v705 = vadd.f32 %v703, %v704
      %v706 = vsel %vm668, %v617, 0.0
      %v707 = vadd.f32 %v705, %v706
      %v708 = vsel %vm668, %v622, 0.0
      %v709 = vadd.f32 %v707, %v708
      %v710 = vsel %vm668, %v625, 0.0
      %v711 = vadd.f32 %v709, %v710
      %v712 = vsel %vm668, %v630, 0.0
      %v713 = vadd.f32 %v711, %v712
      %v714 = vsel %vm668, %v633, 0.0
      %v715 = vadd.f32 %v713, %v714
      %v716 = vsel %vm668, %v638, 0.0
      %v717 = vadd.f32 %v715, %v716
      %v718 = vsel %vm668, %v641, 0.0
      %v719 = vadd.f32 %v717, %v718
      %v720 = vsel %vm668, %v646, 0.0
      %v721 = vadd.f32 %v719, %v720
      %v722 = vsel %vm668, %v649, 0.0
      %v723 = vadd.f32 %v721, %v722
      %v724 = vsel %vm668, %v654, 0.0
      %v725 = vadd.f32 %v723, %v724
      %v726 = vsel %vm668, %v657, 0.0
      %v727 = vadd.f32 %v725, %v726
      %v728 = vsel %vm668, %v662, 0.0
      %v729 = vadd.f32 %v727, %v728
      %v730 = vsel %vm668, %v665, 0.0
      %v731 = vadd.f32 %v729, %v730
      %v732 = vrot.slane %v731, 4
      %v733 = vadd.f32 %v731, %v732
      %v734 = vrot.slane %v733, 2
      %v735 = vadd.f32 %v733, %v734
      %v736 = vrot.slane %v735, 1
      %v737 = vadd.f32 %v735, %v736
      %v738 = vmul.f32 %v737, 0.00390625
      %v739 = vsub.f32 %v542, %v738
      %v740 = vsub.f32 %v545, %v738
      %v741 = vsub.f32 %v550, %v738
      %v742 = vsub.f32 %v553, %v738
      %v743 = vsub.f32 %v558, %v738
      %v744 = vsub.f32 %v561, %v738
      %v745 = vsub.f32 %v566, %v738
      %v746 = vsub.f32 %v569, %v738
      %v747 = vsub.f32 %v574, %v738
      %v748 = vsub.f32 %v577, %v738
      %v749 = vsub.f32 %v582, %v738
      %v750 = vsub.f32 %v585, %v738
      %v751 = vsub.f32 %v590, %v738
      %v752 = vsub.f32 %v593, %v738
      %v753 = vsub.f32 %v598, %v738
      %v754 = vsub.f32 %v601, %v738
      %v755 = vsub.f32 %v606, %v738
      %v756 = vsub.f32 %v609, %v738
      %v757 = vsub.f32 %v614, %v738
      %v758 = vsub.f32 %v617, %v738
      %v759 = vsub.f32 %v622, %v738
      %v760 = vsub.f32 %v625, %v738
      %v761 = vsub.f32 %v630, %v738
      %v762 = vsub.f32 %v633, %v738
      %v763 = vsub.f32 %v638, %v738
      %v764 = vsub.f32 %v641, %v738
      %v765 = vsub.f32 %v646, %v738
      %v766 = vsub.f32 %v649, %v738
      %v767 = vsub.f32 %v654, %v738
      %v768 = vsub.f32 %v657, %v738
      %v769 = vsub.f32 %v662, %v738
      %v770 = vsub.f32 %v665, %v738
      %v771 = vmul.f32 %v739, %v739
      %v772 = vmul.f32 %v740, %v740
      %v773 = vmul.f32 %v741, %v741
      %v774 = vmul.f32 %v742, %v742
      %v775 = vmul.f32 %v743, %v743
      %v776 = vmul.f32 %v744, %v744
      %v777 = vmul.f32 %v745, %v745
      %v778 = vmul.f32 %v746, %v746
      %v779 = vmul.f32 %v747, %v747
      %v780 = vmul.f32 %v748, %v748
      %v781 = vmul.f32 %v749, %v749
      %v782 = vmul.f32 %v750, %v750
      %v783 = vmul.f32 %v751, %v751
      %v784 = vmul.f32 %v752, %v752
      %v785 = vmul.f32 %v753, %v753
      %v786 = vmul.f32 %v754, %v754
      %v787 = vmul.f32 %v755, %v755
      %v788 = vmul.f32 %v756, %v756
      %v789 = vmul.f32 %v757, %v757
      %v790 = vmul.f32 %v758, %v758
      %v791 = vmul.f32 %v759, %v759
      %v792 = vmul.f32 %v760, %v760
      %v793 = vmul.f32 %v761, %v761
      %v794 = vmul.f32 %v762, %v762
      %v795 = vmul.f32 %v763, %v763
      %v796 = vmul.f32 %v764, %v764
      %v797 = vmul.f32 %v765, %v765
      %v798 = vmul.f32 %v766, %v766
      %v799 = vmul.f32 %v767, %v767
      %v800 = vmul.f32 %v768, %v768
      %v801 = vmul.f32 %v769, %v769
      %v802 = vmul.f32 %v770, %v770
      %v803 = vsel %vm668, %v771, 0.0
      %v804 = vsel %vm668, %v772, 0.0
      %v805 = vadd.f32 %v803, %v804
      %v806 = vsel %vm668, %v773, 0.0
      %v807 = vadd.f32 %v805, %v806
      %v808 = vsel %vm668, %v774, 0.0
      %v809 = vadd.f32 %v807, %v808
      %v810 = vsel %vm668, %v775, 0.0
      %v811 = vadd.f32 %v809, %v810
      %v812 = vsel %vm668, %v776, 0.0
      %v813 = vadd.f32 %v811, %v812
      %v814 = vsel %vm668, %v777, 0.0
      %v815 = vadd.f32 %v813, %v814
      %v816 = vsel %vm668, %v778, 0.0
      %v817 = vadd.f32 %v815, %v816
      %v818 = vsel %vm668, %v779, 0.0
      %v819 = vadd.f32 %v817, %v818
      %v820 = vsel %vm668, %v780, 0.0
      %v821 = vadd.f32 %v819, %v820
      %v822 = vsel %vm668, %v781, 0.0
      %v823 = vadd.f32 %v821, %v822
      %v824 = vsel %vm668, %v782, 0.0
      %v825 = vadd.f32 %v823, %v824
      %v826 = vsel %vm668, %v783, 0.0
      %v827 = vadd.f32 %v825, %v826
      %v828 = vsel %vm668, %v784, 0.0
      %v829 = vadd.f32 %v827, %v828
      %v830 = vsel %vm668, %v785, 0.0
      %v831 = vadd.f32 %v829, %v830
      %v832 = vsel %vm668, %v786, 0.0
      %v833 = vadd.f32 %v831, %v832
      %v834 = vsel %vm668, %v787, 0.0
      %v835 = vadd.f32 %v833, %v834
      %v836 = vsel %vm668, %v788, 0.0
      %v837 = vadd.f32 %v835, %v836
      %v838 = vsel %vm668, %v789, 0.0
      %v839 = vadd.f32 %v837, %v838
      %v840 = vsel %vm668, %v790, 0.0
      %v841 = vadd.f32 %v839, %v840
      %v842 = vsel %vm668, %v791, 0.0
      %v843 = vadd.f32 %v841, %v842
      %v844 = vsel %vm668, %v792, 0.0
      %v845 = vadd.f32 %v843, %v844
      %v846 = vsel %vm668, %v793, 0.0
      %v847 = vadd.f32 %v845, %v846
      %v848 = vsel %vm668, %v794, 0.0
      %v849 = vadd.f32 %v847, %v848
      %v850 = vsel %vm668, %v795, 0.0
      %v851 = vadd.f32 %v849, %v850
      %v852 = vsel %vm668, %v796, 0.0
      %v853 = vadd.f32 %v851, %v852
      %v854 = vsel %vm668, %v797, 0.0
      %v855 = vadd.f32 %v853, %v854
      %v856 = vsel %vm668, %v798, 0.0
      %v857 = vadd.f32 %v855, %v856
      %v858 = vsel %vm668, %v799, 0.0
      %v859 = vadd.f32 %v857, %v858
      %v860 = vsel %vm668, %v800, 0.0
      %v861 = vadd.f32 %v859, %v860
      %v862 = vsel %vm668, %v801, 0.0
      %v863 = vadd.f32 %v861, %v862
      %v864 = vsel %vm668, %v802, 0.0
      %v865 = vadd.f32 %v863, %v864
      %v866 = vrot.slane %v865, 4
      %v867 = vadd.f32 %v865, %v866
      %v868 = vrot.slane %v867, 2
      %v869 = vadd.f32 %v867, %v868
      %v870 = vrot.slane %v869, 1
      %v871 = vadd.f32 %v869, %v870
      %v872 = vmul.f32 %v871, 0.00390625
      %v873 = vadd.f32 %v872, 1e-05
      %v874 = vrsqrt.pop %v873
      %v875 = vmul.f32 %v739, %v874
      %v876 = vmul.f32 %v740, %v874
      %v877 = vmul.f32 %v741, %v874
      %v878 = vmul.f32 %v742, %v874
      %v879 = vmul.f32 %v743, %v874
      %v880 = vmul.f32 %v744, %v874
      %v881 = vmul.f32 %v745, %v874
      %v882 = vmul.f32 %v746, %v874
      %v883 = vmul.f32 %v747, %v874
      %v884 = vmul.f32 %v748, %v874
      %v885 = vmul.f32 %v749, %v874
      %v886 = vmul.f32 %v750, %v874
      %v887 = vmul.f32 %v751, %v874
      %v888 = vmul.f32 %v752, %v874
      %v889 = vmul.f32 %v753, %v874
      %v890 = vmul.f32 %v754, %v874
      %v891 = vmul.f32 %v755, %v874
      %v892 = vmul.f32 %v756, %v874
      %v893 = vmul.f32 %v757, %v874
      %v894 = vmul.f32 %v758, %v874
      %v895 = vmul.f32 %v759, %v874
      %v896 = vmul.f32 %v760, %v874
      %v897 = vmul.f32 %v761, %v874
      %v898 = vmul.f32 %v762, %v874
      %v899 = vmul.f32 %v763, %v874
      %v900 = vmul.f32 %v764, %v874
      %v901 = vmul.f32 %v765, %v874
      %v902 = vmul.f32 %v766, %v874
      %v903 = vmul.f32 %v767, %v874
      %v904 = vmul.f32 %v768, %v874
      %v905 = vmul.f32 %v769, %v874
      %v906 = vmul.f32 %v770, %v874
      %v907 = vld [vmem:[%s2] sm:$0x1]
      %v909 = vlaneseq
      %v910 = vshrl.u32 %v909, 7
      %v911 = vsub.s32 0, %v910
      %v912 = vrot.slane %v907, %v911
      %v914 = vmul.f32 %v875, %v912
      %v915 = vmul.f32 %v876, %v912
      %v916 = vmul.f32 %v877, %v912
      %v917 = vmul.f32 %v878, %v912
      %v918 = vmul.f32 %v879, %v912
      %v919 = vmul.f32 %v880, %v912
      %v920 = vmul.f32 %v881, %v912
      %v921 = vmul.f32 %v882, %v912
      %v922 = vmul.f32 %v883, %v912
      %v923 = vmul.f32 %v884, %v912
      %v924 = vmul.f32 %v885, %v912
      %v925 = vmul.f32 %v886, %v912
      %v926 = vmul.f32 %v887, %v912
      %v927 = vmul.f32 %v888, %v912
      %v928 = vmul.f32 %v889, %v912
      %v929 = vmul.f32 %v890, %v912
      %v930 = vmul.f32 %v891, %v912
      %v931 = vmul.f32 %v892, %v912
      %v932 = vmul.f32 %v893, %v912
      %v933 = vmul.f32 %v894, %v912
      %v934 = vmul.f32 %v895, %v912
      %v935 = vmul.f32 %v896, %v912
      %v936 = vmul.f32 %v897, %v912
      %v937 = vmul.f32 %v898, %v912
      %v938 = vmul.f32 %v899, %v912
      %v939 = vmul.f32 %v900, %v912
      %v940 = vmul.f32 %v901, %v912
      %v941 = vmul.f32 %v902, %v912
      %v942 = vmul.f32 %v903, %v912
      %v943 = vmul.f32 %v904, %v912
      %v944 = vmul.f32 %v905, %v912
      %v945 = vmul.f32 %v906, %v912
      %v946 = vld [vmem:[%s3] sm:$0x1]
      %v948 = vlaneseq
      %v949 = vshrl.u32 %v948, 7
      %v950 = vsub.s32 0, %v949
      %v951 = vrot.slane %v946, %v950
      %v953 = vadd.f32 %v914, %v951
      %v954 = vadd.f32 %v915, %v951
      %v955 = vadd.f32 %v916, %v951
      %v956 = vadd.f32 %v917, %v951
      %v957 = vadd.f32 %v918, %v951
      %v958 = vadd.f32 %v919, %v951
      %v959 = vadd.f32 %v920, %v951
      %v960 = vadd.f32 %v921, %v951
      %v961 = vadd.f32 %v922, %v951
      %v962 = vadd.f32 %v923, %v951
      %v963 = vadd.f32 %v924, %v951
      %v964 = vadd.f32 %v925, %v951
      %v965 = vadd.f32 %v926, %v951
      %v966 = vadd.f32 %v927, %v951
      %v967 = vadd.f32 %v928, %v951
      %v968 = vadd.f32 %v929, %v951
      %v969 = vadd.f32 %v930, %v951
      %v970 = vadd.f32 %v931, %v951
      %v971 = vadd.f32 %v932, %v951
      %v972 = vadd.f32 %v933, %v951
      %v973 = vadd.f32 %v934, %v951
      %v974 = vadd.f32 %v935, %v951
      %v975 = vadd.f32 %v936, %v951
      %v976 = vadd.f32 %v937, %v951
      %v977 = vadd.f32 %v938, %v951
      %v978 = vadd.f32 %v939, %v951
      %v979 = vadd.f32 %v940, %v951
      %v980 = vadd.f32 %v941, %v951
      %v981 = vadd.f32 %v942, %v951
      %v982 = vadd.f32 %v943, %v951
      %v983 = vadd.f32 %v944, %v951
      %v984 = vadd.f32 %v945, %v951
      %v985 = vmax.f32 %v953, 0.0
      %v986 = vmax.f32 %v954, 0.0
      %v987 = vmax.f32 %v955, 0.0
      %v988 = vmax.f32 %v956, 0.0
      %v989 = vmax.f32 %v957, 0.0
      %v990 = vmax.f32 %v958, 0.0
      %v991 = vmax.f32 %v959, 0.0
      %v992 = vmax.f32 %v960, 0.0
      %v993 = vmax.f32 %v961, 0.0
      %v994 = vmax.f32 %v962, 0.0
      %v995 = vmax.f32 %v963, 0.0
      %v996 = vmax.f32 %v964, 0.0
      %v997 = vmax.f32 %v965, 0.0
      %v998 = vmax.f32 %v966, 0.0
      %v999 = vmax.f32 %v967, 0.0
      %v1000 = vmax.f32 %v968, 0.0
      %v1001 = vmax.f32 %v969, 0.0
      %v1002 = vmax.f32 %v970, 0.0
      %v1003 = vmax.f32 %v971, 0.0
      %v1004 = vmax.f32 %v972, 0.0
      %v1005 = vmax.f32 %v973, 0.0
      %v1006 = vmax.f32 %v974, 0.0
      %v1007 = vmax.f32 %v975, 0.0
      %v1008 = vmax.f32 %v976, 0.0
      %v1009 = vmax.f32 %v977, 0.0
      %v1010 = vmax.f32 %v978, 0.0
      %v1011 = vmax.f32 %v979, 0.0
      %v1012 = vmax.f32 %v980, 0.0
      %v1013 = vmax.f32 %v981, 0.0
      %v1014 = vmax.f32 %v982, 0.0
      %v1015 = vmax.f32 %v983, 0.0
      %v1016 = vmax.f32 %v984, 0.0
      %1017 = vst.msk [vmem:[%s197] sm:$0xff] %vm668, %v985
      %1018 = vst.msk [vmem:[%s197 + $0x8] sm:$0xff] %vm668, %v986
      %1019 = vst.msk [vmem:[%s197 + $0x10] sm:$0xff] %vm668, %v987
      %1020 = vst.msk [vmem:[%s197 + $0x18] sm:$0xff] %vm668, %v988
      %1021 = vst.msk [vmem:[%s197 + $0x20] sm:$0xff] %vm668, %v989
      %1022 = vst.msk [vmem:[%s197 + $0x28] sm:$0xff] %vm668, %v990
      %1023 = vst.msk [vmem:[%s197 + $0x30] sm:$0xff] %vm668, %v991
      %1024 = vst.msk [vmem:[%s197 + $0x38] sm:$0xff] %vm668, %v992
      %1025 = vst.msk [vmem:[%s197 + $0x40] sm:$0xff] %vm668, %v993
      %1026 = vst.msk [vmem:[%s197 + $0x48] sm:$0xff] %vm668, %v994
      %1027 = vst.msk [vmem:[%s197 + $0x50] sm:$0xff] %vm668, %v995
      %1028 = vst.msk [vmem:[%s197 + $0x58] sm:$0xff] %vm668, %v996
      %1029 = vst.msk [vmem:[%s197 + $0x60] sm:$0xff] %vm668, %v997
      %1030 = vst.msk [vmem:[%s197 + $0x68] sm:$0xff] %vm668, %v998
      %1031 = vst.msk [vmem:[%s197 + $0x70] sm:$0xff] %vm668, %v999
      %1032 = vst.msk [vmem:[%s197 + $0x78] sm:$0xff] %vm668, %v1000
      %1033 = vst.msk [vmem:[%s197 + $0x80] sm:$0xff] %vm668, %v1001
      %1034 = vst.msk [vmem:[%s197 + $0x88] sm:$0xff] %vm668, %v1002
      %1035 = vst.msk [vmem:[%s197 + $0x90] sm:$0xff] %vm668, %v1003
      %1036 = vst.msk [vmem:[%s197 + $0x98] sm:$0xff] %vm668, %v1004
      %1037 = vst.msk [vmem:[%s197 + $0xa0] sm:$0xff] %vm668, %v1005
      %1038 = vst.msk [vmem:[%s197 + $0xa8] sm:$0xff] %vm668, %v1006
      %1039 = vst.msk [vmem:[%s197 + $0xb0] sm:$0xff] %vm668, %v1007
      %1040 = vst.msk [vmem:[%s197 + $0xb8] sm:$0xff] %vm668, %v1008
      %1041 = vst.msk [vmem:[%s197 + $0xc0] sm:$0xff] %vm668, %v1009
      %1042 = vst.msk [vmem:[%s197 + $0xc8] sm:$0xff] %vm668, %v1010
      %1043 = vst.msk [vmem:[%s197 + $0xd0] sm:$0xff] %vm668, %v1011
      %1044 = vst.msk [vmem:[%s197 + $0xd8] sm:$0xff] %vm668, %v1012
      %1045 = vst.msk [vmem:[%s197 + $0xe0] sm:$0xff] %vm668, %v1013
      %1046 = vst.msk [vmem:[%s197 + $0xe8] sm:$0xff] %vm668, %v1014
      %1047 = vst.msk [vmem:[%s197 + $0xf0] sm:$0xff] %vm668, %v1015
      %1048 = vst.msk [vmem:[%s197 + $0xf8] sm:$0xff] %vm668, %v1016
      %p1049 = scmp.lt.s32.totalorder %s15, 1
      %s1050 = scalar_select %p1049, %s15, 1
      %s1051 = smul.addr %s1050, 32
      %s1052 = smul.addr %s1051, 8
      %s1053 = scalar_lea.vmem %s4, %s1052
      // Predicated region
      $region37: #{generator_forward.5} parent=35 // pred_check
        %p1054 = pneg %p122
      $region38: #{generator_forward.5} parent=35 // pred_check_branch
        %1056 = sbr.rel (%p1054) target = $region40
      $region39: #{generator_forward.5} parent=35 // pred_region
        _
      $region40: #{generator_forward.5} parent=35 // pred_fallthru
        _
    $region36: #{generator_forward.5} parent=5 // pred_fallthru
      _
    %p1057 = scmp.le.s32.totalorder 2, %s10
    // Predicated region
    $region41: #{generator_forward.5} parent=5 // pred_check
      %p1058 = pneg %p1057
    $region42: #{generator_forward.5} parent=5 // pred_check_branch
      %1060 = sbr.rel (%p1058) target = $region44
    $region43: #{generator_forward.5} parent=5 // pred_region
      %s1061 = ssub.s32 %s10, 2
      // Predicated region
      $region45: #{generator_forward.5} parent=43 // pred_check
        %p1062 = pneg %p128
      $region46: #{generator_forward.5} parent=43 // pred_check_branch
        %1064 = sbr.rel (%p1062) target = $region48
      $region47: #{generator_forward.5} parent=43 // pred_region
        %p1065 = scmp.lt.s32.totalorder %s16, 1
        %s1066 = scalar_select %p1065, %s16, 1
        %s1067 = smul.addr %s1066, 32
        %s1068 = smul.addr %s1067, 8
        %s1069 = scalar_lea.vmem %s4, %s1068
      $region48: #{generator_forward.5} parent=43 // pred_fallthru
        _
    $region44: #{generator_forward.5} parent=5 // pred_fallthru
      _
  $region6: #{generator_forward.5} parent=0 // loop_footer
    %s14 = sadd.s32 1, %s10
  $region7: #{generator_forward.5} parent=0 // loop_footer_branch
    %9 = sbr.rel target = $region3
  $region8: #{generator_forward.5} parent=0 // loop_exit
    _

// kernel: generator_forward.6
$region0: #{generator_forward.6}
  #allocation0 [shape = 'u32[]', space=smem, size = 0x4, offset = 0x4, fixed_abs, tag = 'smem constant byte address 0x4 - core index']
  #allocation1 [shape = 'u32[144,128]{1,0:T(1,128)}', space=vmem, size = 0x12000, scoped, tag = 'internal scratch']
  %s0 = inlined_call_operand.vmem [shape: bf16[2,64,320], index: 0, kind: input, shape index: {}]
  %s1 = inlined_call_operand.vmem [shape: bf16[320,32], index: 1, kind: input, shape index: {}]
  %s2 = inlined_call_operand.vmem [shape: f32[1,32], index: 2, kind: input, shape index: {}]
  %s3 = inlined_call_operand.vmem [shape: f32[1,32], index: 3, kind: input, shape index: {}]
  %s4 = inlined_call_operand.vmem [shape: f32[2,64,32], index: 4, kind: output, shape index: {}]
  %s5 = sld [smem:[#allocation0]]
  $region49: #{generator_forward.6} parent=0
    _
  %s7 = ssub.s32 1, %s5
  %s8 = scalar_select 0, %s7, %s5
  loop: start=0, step=1, limit=4
  $region2: #{generator_forward.6} parent=0 // loop_pre_header
    _
  $region3: #{generator_forward.6} parent=0 // loop_header
    %s10 = sphi 0, %s14
    %p11 = scmp.ge.s32.totalorder %s10, 4
    %s20 = sphi 0, %s22
    %s23 = sphi 0, %s20
    %s24 = sphi 0, %s23
    %s40 = sphi 0, %s24
    %s44 = sphi 0, %s44
    %s46 = sphi 0, %s44
    %s47 = sphi 0, %s46
    %s61 = sphi 0, %s47
    %s65 = sphi 0, %s65
    %s67 = sphi 0, %s65
    %s68 = sphi 0, %s67
    %s82 = sphi 0, %s68
    %s86 = sphi 0, %s86
    %s88 = sphi 0, %s86
    %s89 = sphi 0, %s88
    %s103 = sphi 0, %s89
    %s109 = sphi 0, %s111
    %s112 = sphi 0, %s109
    %s113 = sphi 0, %s112
    %s129 = sphi 0, %s113
  $region4: #{generator_forward.6} parent=0 // loop_header_branch
    %13 = sbr.rel (%p11) target = $region8
  $region5: #{generator_forward.6} parent=0 // loop_body
    %s15 = ssub.s32 %s10, 1
    %s16 = ssub.s32 %s10, 2
    %s17 = sadd.s32 %s10, 1
    %s18 = ssub.s32 %s10, %s17
    %p19 = scmp.eq.s32.totalorder %s18, 0
    %s21 = sadd.s32 %s20, 1
    %s22 = scalar_select %p19, %s20, %s21
    %p25 = pneg %p19
    %p26 = scmp.eq.s32.totalorder %s10, 1
    %p27 = por %p25, %p26
    %p28 = scmp.ne.s32.totalorder %s20, %s23
    %p29 = scmp.eq.s32.totalorder %s10, 0
    %p30 = por %p28, %p29
    %p31 = scmp.ne.s32.totalorder %s20, %s23
    %p32 = scmp.eq.s32.totalorder %s15, 1
    %p33 = por %p31, %p32
    %p34 = scmp.ne.s32.totalorder %s23, %s24
    %p35 = scmp.eq.s32.totalorder %s15, 0
    %p36 = por %p34, %p35
    %p37 = scmp.ne.s32.totalorder %s23, %s24
    %p38 = scmp.eq.s32.totalorder %s16, 1
    %p39 = por %p37, %p38
    %p41 = scmp.ne.s32.totalorder %s24, %s40
    %p42 = scmp.eq.s32.totalorder %s16, 0
    %p43 = por %p41, %p42
    %s45 = sadd.s32 %s44, 1
    %p48 = scmp.eq.s32.totalorder %s10, 1
    %p49 = scmp.ne.s32.totalorder %s44, %s46
    %p50 = scmp.eq.s32.totalorder %s10, 0
    %p51 = por %p49, %p50
    %p52 = scmp.ne.s32.totalorder %s44, %s46
    %p53 = scmp.eq.s32.totalorder %s15, 1
    %p54 = por %p52, %p53
    %p55 = scmp.ne.s32.totalorder %s46, %s47
    %p56 = scmp.eq.s32.totalorder %s15, 0
    %p57 = por %p55, %p56
    %p58 = scmp.ne.s32.totalorder %s46, %s47
    %p59 = scmp.eq.s32.totalorder %s16, 1
    %p60 = por %p58, %p59
    %p62 = scmp.ne.s32.totalorder %s47, %s61
    %p63 = scmp.eq.s32.totalorder %s16, 0
    %p64 = por %p62, %p63
    %s66 = sadd.s32 %s65, 1
    %p69 = scmp.eq.s32.totalorder %s10, 1
    %p70 = scmp.ne.s32.totalorder %s65, %s67
    %p71 = scmp.eq.s32.totalorder %s10, 0
    %p72 = por %p70, %p71
    %p73 = scmp.ne.s32.totalorder %s65, %s67
    %p74 = scmp.eq.s32.totalorder %s15, 1
    %p75 = por %p73, %p74
    %p76 = scmp.ne.s32.totalorder %s67, %s68
    %p77 = scmp.eq.s32.totalorder %s15, 0
    %p78 = por %p76, %p77
    %p79 = scmp.ne.s32.totalorder %s67, %s68
    %p80 = scmp.eq.s32.totalorder %s16, 1
    %p81 = por %p79, %p80
    %p83 = scmp.ne.s32.totalorder %s68, %s82
    %p84 = scmp.eq.s32.totalorder %s16, 0
    %p85 = por %p83, %p84
    %s87 = sadd.s32 %s86, 1
    %p90 = scmp.eq.s32.totalorder %s10, 1
    %p91 = scmp.ne.s32.totalorder %s86, %s88
    %p92 = scmp.eq.s32.totalorder %s10, 0
    %p93 = por %p91, %p92
    %p94 = scmp.ne.s32.totalorder %s86, %s88
    %p95 = scmp.eq.s32.totalorder %s15, 1
    %p96 = por %p94, %p95
    %p97 = scmp.ne.s32.totalorder %s88, %s89
    %p98 = scmp.eq.s32.totalorder %s15, 0
    %p99 = por %p97, %p98
    %p100 = scmp.ne.s32.totalorder %s88, %s89
    %p101 = scmp.eq.s32.totalorder %s16, 1
    %p102 = por %p100, %p101
    %p104 = scmp.ne.s32.totalorder %s89, %s103
    %p105 = scmp.eq.s32.totalorder %s16, 0
    %p106 = por %p104, %p105
    %s107 = ssub.s32 %s10, %s17
    %p108 = scmp.eq.s32.totalorder %s107, 0
    %s110 = sadd.s32 %s109, 1
    %s111 = scalar_select %p108, %s109, %s110
    %p114 = pneg %p108
    %p115 = scmp.eq.s32.totalorder %s10, 1
    %p116 = por %p114, %p115
    %p117 = scmp.ne.s32.totalorder %s109, %s112
    %p118 = scmp.eq.s32.totalorder %s10, 0
    %p119 = por %p117, %p118
    %p120 = scmp.ne.s32.totalorder %s109, %s112
    %p121 = scmp.eq.s32.totalorder %s15, 1
    %p122 = por %p120, %p121
    %p123 = scmp.ne.s32.totalorder %s112, %s113
    %p124 = scmp.eq.s32.totalorder %s15, 0
    %p125 = por %p123, %p124
    %p126 = scmp.ne.s32.totalorder %s112, %s113
    %p127 = scmp.eq.s32.totalorder %s16, 1
    %p128 = por %p126, %p127
    %p130 = scmp.ne.s32.totalorder %s113, %s129
    %p131 = scmp.eq.s32.totalorder %s16, 0
    %p132 = por %p130, %p131
    %p133 = scmp.le.s32.totalorder 1, %s10
    %p134 = scmp.lt.s32.totalorder %s10, 3
    %p135 = pnand %p133, %p134
    %p136 = pneg %p135
    // Predicated region
    $region9: #{generator_forward.6} parent=5 // pred_check
      _
    $region10: #{generator_forward.6} parent=5 // pred_check_branch
      %138 = sbr.rel (%p135) target = $region12
    $region11: #{generator_forward.6} parent=5 // pred_region
      %s139 = ssub.s32 %s10, 1
      // Predicated region
      $region13: #{generator_forward.6} parent=11 // pred_check
        %p140 = pneg %p57
      $region14: #{generator_forward.6} parent=11 // pred_check_branch
        %142 = sbr.rel (%p140) target = $region16
      $region15: #{generator_forward.6} parent=11 // pred_region
        _
      $region16: #{generator_forward.6} parent=11 // pred_fallthru
        _
      // Predicated region
      $region17: #{generator_forward.6} parent=11 // pred_check
        %p143 = pneg %p78
      $region18: #{generator_forward.6} parent=11 // pred_check_branch
        %145 = sbr.rel (%p143) target = $region20
      $region19: #{generator_forward.6} parent=11 // pred_region
        _
      $region20: #{generator_forward.6} parent=11 // pred_fallthru
        _
      // Predicated region
      $region21: #{generator_forward.6} parent=11 // pred_check
        %p146 = pneg %p99
      $region22: #{generator_forward.6} parent=11 // pred_check_branch
        %148 = sbr.rel (%p146) target = $region24
      $region23: #{generator_forward.6} parent=11 // pred_region
        _
      $region24: #{generator_forward.6} parent=11 // pred_fallthru
        _
    $region12: #{generator_forward.6} parent=5 // pred_fallthru
      _
    %p149 = scmp.lt.s32.totalorder %s10, 2
    // Predicated region
    $region25: #{generator_forward.6} parent=5 // pred_check
      %p150 = pneg %p149
    $region26: #{generator_forward.6} parent=5 // pred_check_branch
      %152 = sbr.rel (%p150) target = $region28
    $region27: #{generator_forward.6} parent=5 // pred_region
      // Predicated region
      $region29: #{generator_forward.6} parent=27 // pred_check
        %p153 = pneg %p30
      $region30: #{generator_forward.6} parent=27 // pred_check_branch
        %155 = sbr.rel (%p153) target = $region32
      $region31: #{generator_forward.6} parent=27 // pred_region
        %p156 = scmp.lt.s32.totalorder %s10, 1
        %s157 = scalar_select %p156, %s10, 1
        %s158 = smul.addr %s157, 24
        %s159 = smul.addr %s158, 4
        %s160 = scalar_lea.vmem %s0, %s159
      $region32: #{generator_forward.6} parent=27 // pred_fallthru
        _
    $region28: #{generator_forward.6} parent=5 // pred_fallthru
      _
    %p161 = scmp.le.s32.totalorder 1, %s10
    %p162 = scmp.lt.s32.totalorder %s10, 3
    %p163 = pnand %p161, %p162
    %p164 = pneg %p163
    // Predicated region
    $region33: #{generator_forward.6} parent=5 // pred_check
      _
    $region34: #{generator_forward.6} parent=5 // pred_check_branch
      %166 = sbr.rel (%p163) target = $region36
    $region35: #{generator_forward.6} parent=5 // pred_region
      %s167 = ssub.s32 %s10, 1
      %p168 = scmp.lt.s32.totalorder %s15, 1
      %s169 = scalar_select %p168, %s15, 1
      %s170 = smul.addr %s169, 24
      %s171 = smul.addr %s170, 4
      %s172 = scalar_lea.vmem %s0, %s171
      %p173 = pneg %p36
      %p174 = pneg %p33
      %p175 = pneg %p57
      %p176 = pneg %p54
      %p177 = pneg %p78
      %p178 = pneg %p75
      %p179 = pneg %p99
      %p180 = pneg %p96
      %p181 = pneg %p125
      %p182 = pneg %p122
      %p183 = scmp.lt.s32.totalorder %s15, 1
      %s184 = scalar_select %p183, %s15, 1
      %s185 = smul.addr %s184, 8
      %s186 = smul.addr %s185, 8
      %s187 = scalar_lea.vmem %s4, %s186
      %p188 = scmp.lt.s32.totalorder %s15, 1
      %s189 = scalar_select %p188, %s15, 1
      %s190 = smul.addr %s189, 24
      %s191 = smul.addr %s190, 4
      %s192 = scalar_lea.vmem %s0, %s191
      %p193 = scmp.lt.s32.totalorder %s15, 1
      %s194 = scalar_select %p193, %s15, 1
      %s195 = smul.addr %s194, 8
      %s196 = smul.addr %s195, 8
      %s197 = scalar_lea.vmem %s4, %s196
      %v199 = vld [vmem:[%s192] sm:$0xff]
      %v200 = vld [vmem:[%s192 + $0x8] sm:$0xf]
      %v201 = vld [vmem:[%s192 + $0xc] sm:$0xff]
      %v202 = vld [vmem:[%s192 + $0x14] sm:$0xf]
      %v203 = vld [vmem:[%s192 + $0x18] sm:$0xff]
      %v204 = vld [vmem:[%s192 + $0x20] sm:$0xf]
      %v205 = vld [vmem:[%s192 + $0x24] sm:$0xff]
      %v206 = vld [vmem:[%s192 + $0x2c] sm:$0xf]
      %v207 = vld [vmem:[%s192 + $0x30] sm:$0xff]
      %v208 = vld [vmem:[%s192 + $0x38] sm:$0xf]
      %v209 = vld [vmem:[%s192 + $0x3c] sm:$0xff]
      %v210 = vld [vmem:[%s192 + $0x44] sm:$0xf]
      %v211 = vld [vmem:[%s192 + $0x48] sm:$0xff]
      %v212 = vld [vmem:[%s192 + $0x50] sm:$0xf]
      %v213 = vld [vmem:[%s192 + $0x54] sm:$0xff]
      %v214 = vld [vmem:[%s192 + $0x5c] sm:$0xf]
      %v215 = vld [vmem:[%s1] sm:$0xf]
      %v216 = vld [vmem:[%s1 + $0x4] sm:$0xf]
      %v217 = vld [vmem:[%s1 + $0x8] sm:$0xf]
      %v218 = vld [vmem:[%s1 + $0xc] sm:$0xf]
      %v219 = vld [vmem:[%s1 + $0x10] sm:$0xf]
      %v220 = vld [vmem:[%s1 + $0x14] sm:$0xf]
      %v221 = vld [vmem:[%s1 + $0x18] sm:$0xf]
      %v222 = vld [vmem:[%s1 + $0x1c] sm:$0xf]
      %v223 = vld [vmem:[%s1 + $0x20] sm:$0xf]
      %v224 = vld [vmem:[%s1 + $0x24] sm:$0xf]
      %v225 = vld [vmem:[%s1 + $0x28] sm:$0xf]
      %v226 = vld [vmem:[%s1 + $0x2c] sm:$0xf]
      %v227 = vld [vmem:[%s1 + $0x30] sm:$0xf]
      %v228 = vld [vmem:[%s1 + $0x34] sm:$0xf]
      %v229 = vld [vmem:[%s1 + $0x38] sm:$0xf]
      %v230 = vld [vmem:[%s1 + $0x3c] sm:$0xf]
      %v231 = vld [vmem:[%s1 + $0x40] sm:$0xf]
      %v232 = vld [vmem:[%s1 + $0x44] sm:$0xf]
      %v233 = vld [vmem:[%s1 + $0x48] sm:$0xf]
      %v234 = vld [vmem:[%s1 + $0x4c] sm:$0xf]
      %v235 = vld [vmem:[%s1 + $0x50] sm:$0xf]
      %v236 = vld [vmem:[%s1 + $0x54] sm:$0xf]
      %v237 = vld [vmem:[%s1 + $0x58] sm:$0xf]
      %v238 = vld [vmem:[%s1 + $0x5c] sm:$0xf]
      %v239 = vld [vmem:[%s1 + $0x60] sm:$0xf]
      %v240 = vld [vmem:[%s1 + $0x64] sm:$0xf]
      %v241 = vld [vmem:[%s1 + $0x68] sm:$0xf]
      %v242 = vld [vmem:[%s1 + $0x6c] sm:$0xf]
      %v243 = vld [vmem:[%s1 + $0x70] sm:$0xf]
      %v244 = vld [vmem:[%s1 + $0x74] sm:$0xf]
      %v245 = vld [vmem:[%s1 + $0x78] sm:$0xf]
      %v246 = vld [vmem:[%s1 + $0x7c] sm:$0xf]
      %v247 = vld [vmem:[%s1 + $0x80] sm:$0xf]
      %v248 = vld [vmem:[%s1 + $0x84] sm:$0xf]
      %v249 = vld [vmem:[%s1 + $0x88] sm:$0xf]
      %v250 = vld [vmem:[%s1 + $0x8c] sm:$0xf]
      %v251 = vld [vmem:[%s1 + $0x90] sm:$0xf]
      %v252 = vld [vmem:[%s1 + $0x94] sm:$0xf]
      %v253 = vld [vmem:[%s1 + $0x98] sm:$0xf]
      %v254 = vld [vmem:[%s1 + $0x9c] sm:$0xf]
      %v271 = vunpack.c.l.b16 %v199
      %v272 = vunpack.c.h.b16 %v199
      %v273 = vunpack.c.l.b16 %v200
      %v274 = vunpack.c.l.b16 %v201
      %v275 = vunpack.c.h.b16 %v201
      %v276 = vunpack.c.l.b16 %v202
      %v277 = vunpack.c.l.b16 %v203
      %v278 = vunpack.c.h.b16 %v203
      %v279 = vunpack.c.l.b16 %v204
      %v280 = vunpack.c.l.b16 %v205
      %v281 = vunpack.c.h.b16 %v205
      %v282 = vunpack.c.l.b16 %v206
      %v283 = vunpack.c.l.b16 %v207
      %v284 = vunpack.c.h.b16 %v207
      %v285 = vunpack.c.l.b16 %v208
      %v286 = vunpack.c.l.b16 %v209
      %v287 = vunpack.c.h.b16 %v209
      %v288 = vunpack.c.l.b16 %v210
      %v289 = vunpack.c.l.b16 %v211
      %v290 = vunpack.c.h.b16 %v211
      %v291 = vunpack.c.l.b16 %v212
      %v292 = vunpack.c.l.b16 %v213
      %v293 = vunpack.c.h.b16 %v213
      %v294 = vunpack.c.l.b16 %v214
      %v295 = vpack.c.b16 %v274, %v271
      %v296 = vpack.c.b16 %v275, %v272
      %v297 = vpack.c.b16 %v276, %v273
      %v298 = vpack.c.b16 %v280, %v277
      %v299 = vpack.c.b16 %v281, %v278
      %v300 = vpack.c.b16 %v282, %v279
      %v301 = vpack.c.b16 %v286, %v283
      %v302 = vpack.c.b16 %v287, %v284
      %v303 = vpack.c.b16 %v288, %v285
      %v304 = vpack.c.b16 %v292, %v289
      %v305 = vpack.c.b16 %v293, %v290
      %v306 = vpack.c.b16 %v294, %v291
      %v355 = vunpack.c.l.b16 %v215
      %v356 = vunpack.c.l.b16 %v216
      %v357 = vunpack.c.l.b16 %v217
      %v358 = vunpack.c.l.b16 %v218
      %v359 = vunpack.c.l.b16 %v219
      %v360 = vunpack.c.l.b16 %v220
      %v361 = vunpack.c.l.b16 %v221
      %v362 = vunpack.c.l.b16 %v222
      %v363 = vunpack.c.l.b16 %v223
      %v364 = vunpack.c.l.b16 %v224
      %v365 = vunpack.c.l.b16 %v225
      %v366 = vunpack.c.l.b16 %v226
      %v367 = vunpack.c.l.b16 %v227
      %v368 = vunpack.c.l.b16 %v228
      %v369 = vunpack.c.l.b16 %v229
      %v370 = vunpack.c.l.b16 %v230
      %v371 = vunpack.c.l.b16 %v231
      %v372 = vunpack.c.l.b16 %v232
      %v373 = vunpack.c.l.b16 %v233
      %v374 = vunpack.c.l.b16 %v234
      %v375 = vunpack.c.l.b16 %v235
      %v376 = vunpack.c.l.b16 %v236
      %v377 = vunpack.c.l.b16 %v237
      %v378 = vunpack.c.l.b16 %v238
      %v379 = vunpack.c.l.b16 %v239
      %v380 = vunpack.c.l.b16 %v240
      %v381 = vunpack.c.l.b16 %v241
      %v382 = vunpack.c.l.b16 %v242
      %v383 = vunpack.c.l.b16 %v243
      %v384 = vunpack.c.l.b16 %v244
      %v385 = vunpack.c.l.b16 %v245
      %v386 = vunpack.c.l.b16 %v246
      %v387 = vunpack.c.l.b16 %v247
      %v388 = vunpack.c.l.b16 %v248
      %v389 = vunpack.c.l.b16 %v249
      %v390 = vunpack.c.l.b16 %v250
      %v391 = vunpack.c.l.b16 %v251
      %v392 = vunpack.c.l.b16 %v252
      %v393 = vunpack.c.l.b16 %v253
      %v394 = vunpack.c.l.b16 %v254
      %v395 = vpack.c.b16 %v356, %v355
      %v396 = vpack.c.b16 %v358, %v357
      %v397 = vpack.c.b16 %v360, %v359
      %v398 = vpack.c.b16 %v362, %v361
      %v399 = vpack.c.b16 %v364, %v363
      %v400 = vpack.c.b16 %v366, %v365
      %v401 = vpack.c.b16 %v368, %v367
      %v402 = vpack.c.b16 %v370, %v369
      %v403 = vpack.c.b16 %v372, %v371
      %v404 = vpack.c.b16 %v374, %v373
      %v405 = vpack.c.b16 %v376, %v375
      %v406 = vpack.c.b16 %v378, %v377
      %v407 = vpack.c.b16 %v380, %v379
      %v408 = vpack.c.b16 %v382, %v381
      %v409 = vpack.c.b16 %v384, %v383
      %v410 = vpack.c.b16 %v386, %v385
      %v411 = vpack.c.b16 %v388, %v387
      %v412 = vpack.c.b16 %v390, %v389
      %v413 = vpack.c.b16 %v392, %v391
      %v414 = vpack.c.b16 %v394, %v393
      %vm435 = vcmask 523264
      %v437 = vsel %vm435, %v297, 0
      %v440 = vsel %vm435, %v300, 0
      %v443 = vsel %vm435, %v303, 0
      %v446 = vsel %vm435, %v306, 0
      %448 = vmatprep.subr.bf16.mxu0 0
      %449 = vmatpush1.bf16.msra.mxu0 %v395
      %450 = vmatprep.subr.bf16.mxu0 0
      %451 = vmatpush1.bf16.msra.mxu0 %v396
      %452 = vmatprep.subr.bf16.mxu0 0
      %453 = vmatpush1.bf16.msra.mxu0 %v397
      %454 = vmatprep.subr.bf16.mxu0 0
      %455 = vmatpush1.bf16.msra.mxu0 %v398
      %456 = vmatprep.subr.bf16.mxu0 0
      %457 = vmatpush1.bf16.msra.mxu0 %v399
      %458 = vmatprep.subr.bf16.mxu0 0
      %459 = vmatpush1.bf16.msra.mxu0 %v400
      %460 = vmatprep.subr.bf16.mxu0 0
      %461 = vmatpush1.bf16.msra.mxu0 %v401
      %462 = vmatprep.subr.bf16.mxu0 0
      %463 = vmatpush1.bf16.msra.mxu0 %v402
      %464 = vmatprep.subr.bf16.mxu0 0
      %465 = vmatpush1.bf16.msra.mxu0 %v403
      %466 = vmatprep.subr.bf16.mxu0 0
      %467 = vmatpush1.bf16.msra.mxu0 %v404
      %468 = vmatprep.subr.bf16.mxu0 0
      %469 = vmatpush1.bf16.msra.mxu0 %v405
      %470 = vmatprep.subr.bf16.mxu0 0
      %471 = vmatpush1.bf16.msra.mxu0 %v406
      %472 = vmatprep.subr.bf16.mxu0 0
      %473 = vmatpush1.bf16.msra.mxu0 %v407
      %474 = vmatprep.subr.bf16.mxu0 0
      %475 = vmatpush1.bf16.msra.mxu0 %v408
      %476 = vmatprep.subr.bf16.mxu0 0
      %477 = vmatpush1.bf16.msra.mxu0 %v409
      %478 = vmatprep.subr.bf16.mxu0 0
      %479 = vmatpush1.bf16.msra.mxu0 %v410
      %480 = vmatprep.mubr.bf16.mxu0 %v296
      %481 = vmatmul.mubr.bf16.gmra.mrb[0].mxu0 %v295
      %v482 = vpop.f32.mrb[0].mxu0
      %v483 = vadd.f32 0.0, %v482
      %v484 = vpop.f32.mrb[0].mxu0
      %v485 = vpop.f32.mrb[0].mxu0
      %v486 = vadd.f32 0.0, %v485
      %v487 = vpop.f32.mrb[0].mxu0
      %488 = vmatprep.mubr.bf16.mxu0 %v299
      %489 = vmatmul.mubr.bf16.gmra.mrb[0].mxu0 %v298
      %v490 = vpop.f32.mrb[0].mxu0
      %v491 = vadd.f32 0.0, %v490
      %v492 = vpop.f32.mrb[0].mxu0
      %v493 = vpop.f32.mrb[0].mxu0
      %v494 = vadd.f32 0.0, %v493
      %v495 = vpop.f32.mrb[0].mxu0
      %496 = vmatprep.mubr.bf16.mxu0 %v302
      %497 = vmatmul.mubr.bf16.gmra.mrb[0].mxu0 %v301
      %v498 = vpop.f32.mrb[0].mxu0
      %v499 = vadd.f32 0.0, %v498
      %v500 = vpop.f32.mrb[0].mxu0
      %v501 = vpop.f32.mrb[0].mxu0
      %v502 = vadd.f32 0.0, %v501
      %v503 = vpop.f32.mrb[0].mxu0
      %504 = vmatprep.mubr.bf16.mxu0 %v305
      %505 = vmatmul.mubr.bf16.gmra.mrb[0].mxu0 %v304
      %v506 = vpop.f32.mrb[0].mxu0
      %v507 = vadd.f32 0.0, %v506
      %v508 = vpop.f32.mrb[0].mxu0
      %v509 = vpop.f32.mrb[0].mxu0
      %v510 = vadd.f32 0.0, %v509
      %v511 = vpop.f32.mrb[0].mxu0
      %512 = vdwg.mxu0
      %513 = vmatprep.subr.bf16.mxu0 0
      %514 = vmatpush1.bf16.msra.mxu0 %v411
      %515 = vmatprep.subr.bf16.mxu0 0
      %516 = vmatpush1.bf16.msra.mxu0 %v412
      %517 = vmatprep.subr.bf16.mxu0 0
      %518 = vmatpush1.bf16.msra.mxu0 %v413
      %519 = vmatprep.subr.bf16.mxu0 0
      %520 = vmatpush1.bf16.msra.mxu0 %v414
      %521 = vmatprep.subr.bf16.mxu0 0
      %522 = vmatpush1.bf16.msra.mxu0 0
      %523 = vmatprep.subr.bf16.mxu0 0
      %524 = vmatpush1.bf16.msra.mxu0 0
      %525 = vmatprep.subr.bf16.mxu0 0
      %526 = vmatpush1.bf16.msra.mxu0 0
      %527 = vmatprep.subr.bf16.mxu0 0
      %528 = vmatpush1.bf16.msra.mxu0 0
      %529 = vmatprep.subr.bf16.mxu0 0
      %530 = vmatpush1.bf16.msra.mxu0 0
      %531 = vmatprep.subr.bf16.mxu0 0
      %532 = vmatpush1.bf16.msra.mxu0 0
      %533 = vmatprep.subr.bf16.mxu0 0
      %534 = vmatpush1.bf16.msra.mxu0 0
      %535 = vmatprep.subr.bf16.mxu0 0
      %536 = vmatpush1.bf16.msra.mxu0 0
      %537 = vmatprep.subr.bf16.mxu0 0
      %538 = vmatpush1.bf16.msra.mxu0 0
      %539 = vmatprep.subr.bf16.mxu0 0
      %540 = vmatpush1.bf16.msra.mxu0 0
      %541 = vmatprep.subr.bf16.mxu0 0
      %542 = vmatpush1.bf16.msra.mxu0 0
      %543 = vmatprep.subr.bf16.mxu0 0
      %544 = vmatpush1.bf16.msra.mxu0 0
      %545 = vmatprep.mubr.bf16.mxu0 0
      %546 = vmatmul.mubr.bf16.gmra.mrb[0].mxu0 %v437
      %v547 = vpop.f32.mrb[0].mxu0
      %v548 = vadd.f32 %v483, %v547
      %v549 = vpop.f32.mrb[0].mxu0
      %v550 = vpop.f32.mrb[0].mxu0
      %v551 = vadd.f32 %v486, %v550
      %v552 = vpop.f32.mrb[0].mxu0
      %553 = vmatprep.mubr.bf16.mxu0 0
      %554 = vmatmul.mubr.bf16.gmra.mrb[0].mxu0 %v440
      %v555 = vpop.f32.mrb[0].mxu0
      %v556 = vadd.f32 %v491, %v555
      %v557 = vpop.f32.mrb[0].mxu0
      %v558 = vpop.f32.mrb[0].mxu0
      %v559 = vadd.f32 %v494, %v558
      %v560 = vpop.f32.mrb[0].mxu0
      %561 = vmatprep.mubr.bf16.mxu0 0
      %562 = vmatmul.mubr.bf16.gmra.mrb[0].mxu0 %v443
      %v563 = vpop.f32.mrb[0].mxu0
      %v564 = vadd.f32 %v499, %v563
      %v565 = vpop.f32.mrb[0].mxu0
      %v566 = vpop.f32.mrb[0].mxu0
      %v567 = vadd.f32 %v502, %v566
      %v568 = vpop.f32.mrb[0].mxu0
      %569 = vmatprep.mubr.bf16.mxu0 0
      %570 = vmatmul.mubr.bf16.gmra.mrb[0].mxu0 %v446
      %v571 = vpop.f32.mrb[0].mxu0
      %v572 = vadd.f32 %v507, %v571
      %v573 = vpop.f32.mrb[0].mxu0
      %v574 = vpop.f32.mrb[0].mxu0
      %v575 = vadd.f32 %v510, %v574
      %v576 = vpop.f32.mrb[0].mxu0
      %577 = vdwg.mxu0
      %vm578 = vcmask 261120
      %v579 = vsel %vm578, %v548, 0.0
      %v580 = vsel %vm578, %v551, 0.0
      %v581 = vadd.f32 %v579, %v580
      %v582 = vsel %vm578, %v556, 0.0
      %v583 = vadd.f32 %v581, %v582
      %v584 = vsel %vm578, %v559, 0.0
      %v585 = vadd.f32 %v583, %v584
      %v586 = vsel %vm578, %v564, 0.0
      %v587 = vadd.f32 %v585, %v586
      %v588 = vsel %vm578, %v567, 0.0
      %v589 = vadd.f32 %v587, %v588
      %v590 = vsel %vm578, %v572, 0.0
      %v591 = vadd.f32 %v589, %v590
      %v592 = vsel %vm578, %v575, 0.0
      %v593 = vadd.f32 %v591, %v592
      %v594 = vrot.slane %v593, 4
      %v595 = vadd.f32 %v593, %v594
      %v596 = vrot.slane %v595, 2
      %v597 = vadd.f32 %v595, %v596
      %v598 = vrot.slane %v597, 1
      %v599 = vadd.f32 %v597, %v598
      %v600 = vmul.f32 %v599, 0.015625
      %v601 = vsub.f32 %v548, %v600
      %v602 = vsub.f32 %v551, %v600
      %v603 = vsub.f32 %v556, %v600
      %v604 = vsub.f32 %v559, %v600
      %v605 = vsub.f32 %v564, %v600
      %v606 = vsub.f32 %v567, %v600
      %v607 = vsub.f32 %v572, %v600
      %v608 = vsub.f32 %v575, %v600
      %v609 = vmul.f32 %v601, %v601
      %v610 = vmul.f32 %v602, %v602
      %v611 = vmul.f32 %v603, %v603
      %v612 = vmul.f32 %v604, %v604
      %v613 = vmul.f32 %v605, %v605
      %v614 = vmul.f32 %v606, %v606
      %v615 = vmul.f32 %v607, %v607
      %v616 = vmul.f32 %v608, %v608
      %v617 = vsel %vm578, %v609, 0.0
      %v618 = vsel %vm578, %v610, 0.0
      %v619 = vadd.f32 %v617, %v618
      %v620 = vsel %vm578, %v611, 0.0
      %v621 = vadd.f32 %v619, %v620
      %v622 = vsel %vm578, %v612, 0.0
      %v623 = vadd.f32 %v621, %v622
      %v624 = vsel %vm578, %v613, 0.0
      %v625 = vadd.f32 %v623, %v624
      %v626 = vsel %vm578, %v614, 0.0
      %v627 = vadd.f32 %v625, %v626
      %v628 = vsel %vm578, %v615, 0.0
      %v629 = vadd.f32 %v627, %v628
      %v630 = vsel %vm578, %v616, 0.0
      %v631 = vadd.f32 %v629, %v630
      %v632 = vrot.slane %v631, 4
      %v633 = vadd.f32 %v631, %v632
      %v634 = vrot.slane %v633, 2
      %v635 = vadd.f32 %v633, %v634
      %v636 = vrot.slane %v635, 1
      %v637 = vadd.f32 %v635, %v636
      %v638 = vmul.f32 %v637, 0.015625
      %v639 = vadd.f32 %v638, 1e-05
      %v640 = vrsqrt.pop %v639
      %v641 = vmul.f32 %v601, %v640
      %v642 = vmul.f32 %v602, %v640
      %v643 = vmul.f32 %v603, %v640
      %v644 = vmul.f32 %v604, %v640
      %v645 = vmul.f32 %v605, %v640
      %v646 = vmul.f32 %v606, %v640
      %v647 = vmul.f32 %v607, %v640
      %v648 = vmul.f32 %v608, %v640
      %v649 = vld [vmem:[%s2] sm:$0x1]
      %v651 = vlaneseq
      %v652 = vshrl.u32 %v651, 7
      %v653 = vsub.s32 0, %v652
      %v654 = vrot.slane %v649, %v653
      %v656 = vmul.f32 %v641, %v654
      %v657 = vmul.f32 %v642, %v654
      %v658 = vmul.f32 %v643, %v654
      %v659 = vmul.f32 %v644, %v654
      %v660 = vmul.f32 %v645, %v654
      %v661 = vmul.f32 %v646, %v654
      %v662 = vmul.f32 %v647, %v654
      %v663 = vmul.f32 %v648, %v654
      %v664 = vld [vmem:[%s3] sm:$0x1]
      %v666 = vlaneseq
      %v667 = vshrl.u32 %v666, 7
      %v668 = vsub.s32 0, %v667
      %v669 = vrot.slane %v664, %v668
      %v671 = vadd.f32 %v656, %v669
      %v672 = vadd.f32 %v657, %v669
      %v673 = vadd.f32 %v658, %v669
      %v674 = vadd.f32 %v659, %v669
      %v675 = vadd.f32 %v660, %v669
      %v676 = vadd.f32 %v661, %v669
      %v677 = vadd.f32 %v662, %v669
      %v678 = vadd.f32 %v663, %v669
      %v679 = vmax.f32 %v671, 0.0
      %v680 = vmax.f32 %v672, 0.0
      %v681 = vmax.f32 %v673, 0.0
      %v682 = vmax.f32 %v674, 0.0
      %v683 = vmax.f32 %v675, 0.0
      %v684 = vmax.f32 %v676, 0.0
      %v685 = vmax.f32 %v677, 0.0
      %v686 = vmax.f32 %v678, 0.0
      %687 = vst.msk [vmem:[%s197] sm:$0xff] %vm578, %v679
      %688 = vst.msk [vmem:[%s197 + $0x8] sm:$0xff] %vm578, %v680
      %689 = vst.msk [vmem:[%s197 + $0x10] sm:$0xff] %vm578, %v681
      %690 = vst.msk [vmem:[%s197 + $0x18] sm:$0xff] %vm578, %v682
      %691 = vst.msk [vmem:[%s197 + $0x20] sm:$0xff] %vm578, %v683
      %692 = vst.msk [vmem:[%s197 + $0x28] sm:$0xff] %vm578, %v684
      %693 = vst.msk [vmem:[%s197 + $0x30] sm:$0xff] %vm578, %v685
      %694 = vst.msk [vmem:[%s197 + $0x38] sm:$0xff] %vm578, %v686
      %p695 = scmp.lt.s32.totalorder %s15, 1
      %s696 = scalar_select %p695, %s15, 1
      %s697 = smul.addr %s696, 8
      %s698 = smul.addr %s697, 8
      %s699 = scalar_lea.vmem %s4, %s698
      // Predicated region
      $region37: #{generator_forward.6} parent=35 // pred_check
        %p700 = pneg %p122
      $region38: #{generator_forward.6} parent=35 // pred_check_branch
        %702 = sbr.rel (%p700) target = $region40
      $region39: #{generator_forward.6} parent=35 // pred_region
        _
      $region40: #{generator_forward.6} parent=35 // pred_fallthru
        _
    $region36: #{generator_forward.6} parent=5 // pred_fallthru
      _
    %p703 = scmp.le.s32.totalorder 2, %s10
    // Predicated region
    $region41: #{generator_forward.6} parent=5 // pred_check
      %p704 = pneg %p703
    $region42: #{generator_forward.6} parent=5 // pred_check_branch
      %706 = sbr.rel (%p704) target = $region44
    $region43: #{generator_forward.6} parent=5 // pred_region
      %s707 = ssub.s32 %s10, 2
      // Predicated region
      $region45: #{generator_forward.6} parent=43 // pred_check
        %p708 = pneg %p128
      $region46: #{generator_forward.6} parent=43 // pred_check_branch
        %710 = sbr.rel (%p708) target = $region48
      $region47: #{generator_forward.6} parent=43 // pred_region
        %p711 = scmp.lt.s32.totalorder %s16, 1
        %s712 = scalar_select %p711, %s16, 1
        %s713 = smul.addr %s712, 8
        %s714 = smul.addr %s713, 8
        %s715 = scalar_lea.vmem %s4, %s714
      $region48: #{generator_forward.6} parent=43 // pred_fallthru
        _
    $region44: #{generator_forward.6} parent=5 // pred_fallthru
      _
  $region6: #{generator_forward.6} parent=0 // loop_footer
    %s14 = sadd.s32 1, %s10
  $region7: #{generator_forward.6} parent=0 // loop_footer_branch
    %9 = sbr.rel target = $region3
  $region8: #{generator_forward.6} parent=0 // loop_exit
    _

// kernel: generator_forward.7
$region0: #{generator_forward.7}
  #allocation0 [shape = 'u32[]', space=smem, size = 0x4, offset = 0x4, fixed_abs, tag = 'smem constant byte address 0x4 - core index']
  #allocation1 [shape = 'u32[144,128]{1,0:T(1,128)}', space=vmem, size = 0x12000, scoped, tag = 'internal scratch']
  %s0 = inlined_call_operand.vmem [shape: bf16[2,64,288], index: 0, kind: input, shape index: {}]
  %s1 = inlined_call_operand.vmem [shape: bf16[288,32], index: 1, kind: input, shape index: {}]
  %s2 = inlined_call_operand.vmem [shape: f32[1,32], index: 2, kind: input, shape index: {}]
  %s3 = inlined_call_operand.vmem [shape: f32[1,32], index: 3, kind: input, shape index: {}]
  %s4 = inlined_call_operand.vmem [shape: f32[2,64,32], index: 4, kind: input, shape index: {}]
  %s5 = inlined_call_operand.vmem [shape: f32[2,64,32], index: 5, kind: output, shape index: {}]
  %s6 = sld [smem:[#allocation0]]
  $region53: #{generator_forward.7} parent=0
    _
  %s8 = ssub.s32 1, %s6
  %s9 = scalar_select 0, %s8, %s6
  loop: start=0, step=1, limit=4
  $region2: #{generator_forward.7} parent=0 // loop_pre_header
    _
  $region3: #{generator_forward.7} parent=0 // loop_header
    %s11 = sphi 0, %s15
    %p12 = scmp.ge.s32.totalorder %s11, 4
    %s21 = sphi 0, %s23
    %s24 = sphi 0, %s21
    %s25 = sphi 0, %s24
    %s41 = sphi 0, %s25
    %s45 = sphi 0, %s45
    %s47 = sphi 0, %s45
    %s48 = sphi 0, %s47
    %s62 = sphi 0, %s48
    %s66 = sphi 0, %s66
    %s68 = sphi 0, %s66
    %s69 = sphi 0, %s68
    %s83 = sphi 0, %s69
    %s87 = sphi 0, %s87
    %s89 = sphi 0, %s87
    %s90 = sphi 0, %s89
    %s104 = sphi 0, %s90
    %s110 = sphi 0, %s112
    %s113 = sphi 0, %s110
    %s114 = sphi 0, %s113
    %s130 = sphi 0, %s114
    %s136 = sphi 0, %s138
    %s139 = sphi 0, %s136
    %s140 = sphi 0, %s139
    %s156 = sphi 0, %s140
  $region4: #{generator_forward.7} parent=0 // loop_header_branch
    %14 = sbr.rel (%p12) target = $region8
  $region5: #{generator_forward.7} parent=0 // loop_body
    %s16 = ssub.s32 %s11, 1
    %s17 = ssub.s32 %s11, 2
    %s18 = sadd.s32 %s11, 1
    %s19 = ssub.s32 %s11, %s18
    %p20 = scmp.eq.s32.totalorder %s19, 0
    %s22 = sadd.s32 %s21, 1
    %s23 = scalar_select %p20, %s21, %s22
    %p26 = pneg %p20
    %p27 = scmp.eq.s32.totalorder %s11, 1
    %p28 = por %p26, %p27
    %p29 = scmp.ne.s32.totalorder %s21, %s24
    %p30 = scmp.eq.s32.totalorder %s11, 0
    %p31 = por %p29, %p30
    %p32 = scmp.ne.s32.totalorder %s21, %s24
    %p33 = scmp.eq.s32.totalorder %s16, 1
    %p34 = por %p32, %p33
    %p35 = scmp.ne.s32.totalorder %s24, %s25
    %p36 = scmp.eq.s32.totalorder %s16, 0
    %p37 = por %p35, %p36
    %p38 = scmp.ne.s32.totalorder %s24, %s25
    %p39 = scmp.eq.s32.totalorder %s17, 1
    %p40 = por %p38, %p39
    %p42 = scmp.ne.s32.totalorder %s25, %s41
    %p43 = scmp.eq.s32.totalorder %s17, 0
    %p44 = por %p42, %p43
    %s46 = sadd.s32 %s45, 1
    %p49 = scmp.eq.s32.totalorder %s11, 1
    %p50 = scmp.ne.s32.totalorder %s45, %s47
    %p51 = scmp.eq.s32.totalorder %s11, 0
    %p52 = por %p50, %p51
    %p53 = scmp.ne.s32.totalorder %s45, %s47
    %p54 = scmp.eq.s32.totalorder %s16, 1
    %p55 = por %p53, %p54
    %p56 = scmp.ne.s32.totalorder %s47, %s48
    %p57 = scmp.eq.s32.totalorder %s16, 0
    %p58 = por %p56, %p57
    %p59 = scmp.ne.s32.totalorder %s47, %s48
    %p60 = scmp.eq.s32.totalorder %s17, 1
    %p61 = por %p59, %p60
    %p63 = scmp.ne.s32.totalorder %s48, %s62
    %p64 = scmp.eq.s32.totalorder %s17, 0
    %p65 = por %p63, %p64
    %s67 = sadd.s32 %s66, 1
    %p70 = scmp.eq.s32.totalorder %s11, 1
    %p71 = scmp.ne.s32.totalorder %s66, %s68
    %p72 = scmp.eq.s32.totalorder %s11, 0
    %p73 = por %p71, %p72
    %p74 = scmp.ne.s32.totalorder %s66, %s68
    %p75 = scmp.eq.s32.totalorder %s16, 1
    %p76 = por %p74, %p75
    %p77 = scmp.ne.s32.totalorder %s68, %s69
    %p78 = scmp.eq.s32.totalorder %s16, 0
    %p79 = por %p77, %p78
    %p80 = scmp.ne.s32.totalorder %s68, %s69
    %p81 = scmp.eq.s32.totalorder %s17, 1
    %p82 = por %p80, %p81
    %p84 = scmp.ne.s32.totalorder %s69, %s83
    %p85 = scmp.eq.s32.totalorder %s17, 0
    %p86 = por %p84, %p85
    %s88 = sadd.s32 %s87, 1
    %p91 = scmp.eq.s32.totalorder %s11, 1
    %p92 = scmp.ne.s32.totalorder %s87, %s89
    %p93 = scmp.eq.s32.totalorder %s11, 0
    %p94 = por %p92, %p93
    %p95 = scmp.ne.s32.totalorder %s87, %s89
    %p96 = scmp.eq.s32.totalorder %s16, 1
    %p97 = por %p95, %p96
    %p98 = scmp.ne.s32.totalorder %s89, %s90
    %p99 = scmp.eq.s32.totalorder %s16, 0
    %p100 = por %p98, %p99
    %p101 = scmp.ne.s32.totalorder %s89, %s90
    %p102 = scmp.eq.s32.totalorder %s17, 1
    %p103 = por %p101, %p102
    %p105 = scmp.ne.s32.totalorder %s90, %s104
    %p106 = scmp.eq.s32.totalorder %s17, 0
    %p107 = por %p105, %p106
    %s108 = ssub.s32 %s11, %s18
    %p109 = scmp.eq.s32.totalorder %s108, 0
    %s111 = sadd.s32 %s110, 1
    %s112 = scalar_select %p109, %s110, %s111
    %p115 = pneg %p109
    %p116 = scmp.eq.s32.totalorder %s11, 1
    %p117 = por %p115, %p116
    %p118 = scmp.ne.s32.totalorder %s110, %s113
    %p119 = scmp.eq.s32.totalorder %s11, 0
    %p120 = por %p118, %p119
    %p121 = scmp.ne.s32.totalorder %s110, %s113
    %p122 = scmp.eq.s32.totalorder %s16, 1
    %p123 = por %p121, %p122
    %p124 = scmp.ne.s32.totalorder %s113, %s114
    %p125 = scmp.eq.s32.totalorder %s16, 0
    %p126 = por %p124, %p125
    %p127 = scmp.ne.s32.totalorder %s113, %s114
    %p128 = scmp.eq.s32.totalorder %s17, 1
    %p129 = por %p127, %p128
    %p131 = scmp.ne.s32.totalorder %s114, %s130
    %p132 = scmp.eq.s32.totalorder %s17, 0
    %p133 = por %p131, %p132
    %s134 = ssub.s32 %s11, %s18
    %p135 = scmp.eq.s32.totalorder %s134, 0
    %s137 = sadd.s32 %s136, 1
    %s138 = scalar_select %p135, %s136, %s137
    %p141 = pneg %p135
    %p142 = scmp.eq.s32.totalorder %s11, 1
    %p143 = por %p141, %p142
    %p144 = scmp.ne.s32.totalorder %s136, %s139
    %p145 = scmp.eq.s32.totalorder %s11, 0
    %p146 = por %p144, %p145
    %p147 = scmp.ne.s32.totalorder %s136, %s139
    %p148 = scmp.eq.s32.totalorder %s16, 1
    %p149 = por %p147, %p148
    %p150 = scmp.ne.s32.totalorder %s139, %s140
    %p151 = scmp.eq.s32.totalorder %s16, 0
    %p152 = por %p150, %p151
    %p153 = scmp.ne.s32.totalorder %s139, %s140
    %p154 = scmp.eq.s32.totalorder %s17, 1
    %p155 = por %p153, %p154
    %p157 = scmp.ne.s32.totalorder %s140, %s156
    %p158 = scmp.eq.s32.totalorder %s17, 0
    %p159 = por %p157, %p158
    %p160 = scmp.le.s32.totalorder 1, %s11
    %p161 = scmp.lt.s32.totalorder %s11, 3
    %p162 = pnand %p160, %p161
    %p163 = pneg %p162
    // Predicated region
    $region9: #{generator_forward.7} parent=5 // pred_check
      _
    $region10: #{generator_forward.7} parent=5 // pred_check_branch
      %165 = sbr.rel (%p162) target = $region12
    $region11: #{generator_forward.7} parent=5 // pred_region
      %s166 = ssub.s32 %s11, 1
      // Predicated region
      $region13: #{generator_forward.7} parent=11 // pred_check
        %p167 = pneg %p58
      $region14: #{generator_forward.7} parent=11 // pred_check_branch
        %169 = sbr.rel (%p167) target = $region16
      $region15: #{generator_forward.7} parent=11 // pred_region
        _
      $region16: #{generator_forward.7} parent=11 // pred_fallthru
        _
      // Predicated region
      $region17: #{generator_forward.7} parent=11 // pred_check
        %p170 = pneg %p79
      $region18: #{generator_forward.7} parent=11 // pred_check_branch
        %172 = sbr.rel (%p170) target = $region20
      $region19: #{generator_forward.7} parent=11 // pred_region
        _
      $region20: #{generator_forward.7} parent=11 // pred_fallthru
        _
      // Predicated region
      $region21: #{generator_forward.7} parent=11 // pred_check
        %p173 = pneg %p100
      $region22: #{generator_forward.7} parent=11 // pred_check_branch
        %175 = sbr.rel (%p173) target = $region24
      $region23: #{generator_forward.7} parent=11 // pred_region
        _
      $region24: #{generator_forward.7} parent=11 // pred_fallthru
        _
    $region12: #{generator_forward.7} parent=5 // pred_fallthru
      _
    %p176 = scmp.lt.s32.totalorder %s11, 2
    // Predicated region
    $region25: #{generator_forward.7} parent=5 // pred_check
      %p177 = pneg %p176
    $region26: #{generator_forward.7} parent=5 // pred_check_branch
      %179 = sbr.rel (%p177) target = $region28
    $region27: #{generator_forward.7} parent=5 // pred_region
      // Predicated region
      $region29: #{generator_forward.7} parent=27 // pred_check
        %p180 = pneg %p31
      $region30: #{generator_forward.7} parent=27 // pred_check_branch
        %182 = sbr.rel (%p180) target = $region32
      $region31: #{generator_forward.7} parent=27 // pred_region
        %p183 = scmp.lt.s32.totalorder %s11, 1
        %s184 = scalar_select %p183, %s11, 1
        %s185 = smul.addr %s184, 24
        %s186 = smul.addr %s185, 4
        %s187 = scalar_lea.vmem %s0, %s186
      $region32: #{generator_forward.7} parent=27 // pred_fallthru
        _
      // Predicated region
      $region33: #{generator_forward.7} parent=27 // pred_check
        %p188 = pneg %p120
      $region34: #{generator_forward.7} parent=27 // pred_check_branch
        %190 = sbr.rel (%p188) target = $region36
      $region35: #{generator_forward.7} parent=27 // pred_region
        %p191 = scmp.lt.s32.totalorder %s11, 1
        %s192 = scalar_select %p191, %s11, 1
        %s193 = smul.addr %s192, 8
        %s194 = smul.addr %s193, 8
        %s195 = scalar_lea.vmem %s4, %s194
      $region36: #{generator_forward.7} parent=27 // pred_fallthru
        _
    $region28: #{generator_forward.7} parent=5 // pred_fallthru
      _
    %p196 = scmp.le.s32.totalorder 1, %s11
    %p197 = scmp.lt.s32.totalorder %s11, 3
    %p198 = pnand %p196, %p197
    %p199 = pneg %p198
    // Predicated region
    $region37: #{generator_forward.7} parent=5 // pred_check
      _
    $region38: #{generator_forward.7} parent=5 // pred_check_branch
      %201 = sbr.rel (%p198) target = $region40
    $region39: #{generator_forward.7} parent=5 // pred_region
      %s202 = ssub.s32 %s11, 1
      %p203 = scmp.lt.s32.totalorder %s16, 1
      %s204 = scalar_select %p203, %s16, 1
      %s205 = smul.addr %s204, 24
      %s206 = smul.addr %s205, 4
      %s207 = scalar_lea.vmem %s0, %s206
      %p208 = pneg %p37
      %p209 = pneg %p34
      %p210 = pneg %p58
      %p211 = pneg %p55
      %p212 = pneg %p79
      %p213 = pneg %p76
      %p214 = pneg %p100
      %p215 = pneg %p97
      %p216 = scmp.lt.s32.totalorder %s16, 1
      %s217 = scalar_select %p216, %s16, 1
      %s218 = smul.addr %s217, 8
      %s219 = smul.addr %s218, 8
      %s220 = scalar_lea.vmem %s4, %s219
      %p221 = pneg %p126
      %p222 = pneg %p123
      %p223 = pneg %p152
      %p224 = pneg %p149
      %p225 = scmp.lt.s32.totalorder %s16, 1
      %s226 = scalar_select %p225, %s16, 1
      %s227 = smul.addr %s226, 8
      %s228 = smul.addr %s227, 8
      %s229 = scalar_lea.vmem %s5, %s228
      %p230 = scmp.lt.s32.totalorder %s16, 1
      %s231 = scalar_select %p230, %s16, 1
      %s232 = smul.addr %s231, 24
      %s233 = smul.addr %s232, 4
      %s234 = scalar_lea.vmem %s0, %s233
      %p235 = scmp.lt.s32.totalorder %s16, 1
      %s236 = scalar_select %p235, %s16, 1
      %s237 = smul.addr %s236, 8
      %s238 = smul.addr %s237, 8
      %s239 = scalar_lea.vmem %s4, %s238
      %p240 = scmp.lt.s32.totalorder %s16, 1
      %s241 = scalar_select %p240, %s16, 1
      %s242 = smul.addr %s241, 8
      %s243 = smul.addr %s242, 8
      %s244 = scalar_lea.vmem %s5, %s243
      %v246 = vld [vmem:[%s234] sm:$0xff]
      %v247 = vld [vmem:[%s234 + $0x8] sm:$0xf]
      %v248 = vld [vmem:[%s234 + $0xc] sm:$0xff]
      %v249 = vld [vmem:[%s234 + $0x14] sm:$0xf]
      %v250 = vld [vmem:[%s234 + $0x18] sm:$0xff]
      %v251 = vld [vmem:[%s234 + $0x20] sm:$0xf]
      %v252 = vld [vmem:[%s234 + $0x24] sm:$0xff]
      %v253 = vld [vmem:[%s234 + $0x2c] sm:$0xf]
      %v254 = vld [vmem:[%s234 + $0x30] sm:$0xff]
      %v255 = vld [vmem:[%s234 + $0x38] sm:$0xf]
      %v256 = vld [vmem:[%s234 + $0x3c] sm:$0xff]
      %v257 = vld [vmem:[%s234 + $0x44] sm:$0xf]
      %v258 = vld [vmem:[%s234 + $0x48] sm:$0xff]
      %v259 = vld [vmem:[%s234 + $0x50] sm:$0xf]
      %v260 = vld [vmem:[%s234 + $0x54] sm:$0xff]
      %v261 = vld [vmem:[%s234 + $0x5c] sm:$0xf]
      %v262 = vld [vmem:[%s1] sm:$0xf]
      %v263 = vld [vmem:[%s1 + $0x4] sm:$0xf]
      %v264 = vld [vmem:[%s1 + $0x8] sm:$0xf]
      %v265 = vld [vmem:[%s1 + $0xc] sm:$0xf]
      %v266 = vld [vmem:[%s1 + $0x10] sm:$0xf]
      %v267 = vld [vmem:[%s1 + $0x14] sm:$0xf]
      %v268 = vld [vmem:[%s1 + $0x18] sm:$0xf]
      %v269 = vld [vmem:[%s1 + $0x1c] sm:$0xf]
      %v270 = vld [vmem:[%s1 + $0x20] sm:$0xf]
      %v271 = vld [vmem:[%s1 + $0x24] sm:$0xf]
      %v272 = vld [vmem:[%s1 + $0x28] sm:$0xf]
      %v273 = vld [vmem:[%s1 + $0x2c] sm:$0xf]
      %v274 = vld [vmem:[%s1 + $0x30] sm:$0xf]
      %v275 = vld [vmem:[%s1 + $0x34] sm:$0xf]
      %v276 = vld [vmem:[%s1 + $0x38] sm:$0xf]
      %v277 = vld [vmem:[%s1 + $0x3c] sm:$0xf]
      %v278 = vld [vmem:[%s1 + $0x40] sm:$0xf]
      %v279 = vld [vmem:[%s1 + $0x44] sm:$0xf]
      %v280 = vld [vmem:[%s1 + $0x48] sm:$0xf]
      %v281 = vld [vmem:[%s1 + $0x4c] sm:$0xf]
      %v282 = vld [vmem:[%s1 + $0x50] sm:$0xf]
      %v283 = vld [vmem:[%s1 + $0x54] sm:$0xf]
      %v284 = vld [vmem:[%s1 + $0x58] sm:$0xf]
      %v285 = vld [vmem:[%s1 + $0x5c] sm:$0xf]
      %v286 = vld [vmem:[%s1 + $0x60] sm:$0xf]
      %v287 = vld [vmem:[%s1 + $0x64] sm:$0xf]
      %v288 = vld [vmem:[%s1 + $0x68] sm:$0xf]
      %v289 = vld [vmem:[%s1 + $0x6c] sm:$0xf]
      %v290 = vld [vmem:[%s1 + $0x70] sm:$0xf]
      %v291 = vld [vmem:[%s1 + $0x74] sm:$0xf]
      %v292 = vld [vmem:[%s1 + $0x78] sm:$0xf]
      %v293 = vld [vmem:[%s1 + $0x7c] sm:$0xf]
      %v294 = vld [vmem:[%s1 + $0x80] sm:$0xf]
      %v295 = vld [vmem:[%s1 + $0x84] sm:$0xf]
      %v296 = vld [vmem:[%s1 + $0x88] sm:$0xf]
      %v297 = vld [vmem:[%s1 + $0x8c] sm:$0xf]
      %v314 = vunpack.c.l.b16 %v246
      %v315 = vunpack.c.h.b16 %v246
      %v316 = vunpack.c.l.b16 %v247
      %v317 = vunpack.c.l.b16 %v248
      %v318 = vunpack.c.h.b16 %v248
      %v319 = vunpack.c.l.b16 %v249
      %v320 = vunpack.c.l.b16 %v250
      %v321 = vunpack.c.h.b16 %v250
      %v322 = vunpack.c.l.b16 %v251
      %v323 = vunpack.c.l.b16 %v252
      %v324 = vunpack.c.h.b16 %v252
      %v325 = vunpack.c.l.b16 %v253
      %v326 = vunpack.c.l.b16 %v254
      %v327 = vunpack.c.h.b16 %v254
      %v328 = vunpack.c.l.b16 %v255
      %v329 = vunpack.c.l.b16 %v256
      %v330 = vunpack.c.h.b16 %v256
      %v331 = vunpack.c.l.b16 %v257
      %v332 = vunpack.c.l.b16 %v258
      %v333 = vunpack.c.h.b16 %v258
      %v334 = vunpack.c.l.b16 %v259
      %v335 = vunpack.c.l.b16 %v260
      %v336 = vunpack.c.h.b16 %v260
      %v337 = vunpack.c.l.b16 %v261
      %v338 = vpack.c.b16 %v317, %v314
      %v339 = vpack.c.b16 %v318, %v315
      %v340 = vpack.c.b16 %v319, %v316
      %v341 = vpack.c.b16 %v323, %v320
      %v342 = vpack.c.b16 %v324, %v321
      %v343 = vpack.c.b16 %v325, %v322
      %v344 = vpack.c.b16 %v329, %v326
      %v345 = vpack.c.b16 %v330, %v327
      %v346 = vpack.c.b16 %v331, %v328
      %v347 = vpack.c.b16 %v335, %v332
      %v348 = vpack.c.b16 %v336, %v333
      %v349 = vpack.c.b16 %v337, %v334
      %v394 = vunpack.c.l.b16 %v262
      %v395 = vunpack.c.l.b16 %v263
      %v396 = vunpack.c.l.b16 %v264
      %v397 = vunpack.c.l.b16 %v265
      %v398 = vunpack.c.l.b16 %v266
      %v399 = vunpack.c.l.b16 %v267
      %v400 = vunpack.c.l.b16 %v268
      %v401 = vunpack.c.l.b16 %v269
      %v402 = vunpack.c.l.b16 %v270
      %v403 = vunpack.c.l.b16 %v271
      %v404 = vunpack.c.l.b16 %v272
      %v405 = vunpack.c.l.b16 %v273
      %v406 = vunpack.c.l.b16 %v274
      %v407 = vunpack.c.l.b16 %v275
      %v408 = vunpack.c.l.b16 %v276
      %v409 = vunpack.c.l.b16 %v277
      %v410 = vunpack.c.l.b16 %v278
      %v411 = vunpack.c.l.b16 %v279
      %v412 = vunpack.c.l.b16 %v280
      %v413 = vunpack.c.l.b16 %v281
      %v414 = vunpack.c.l.b16 %v282
      %v415 = vunpack.c.l.b16 %v283
      %v416 = vunpack.c.l.b16 %v284
      %v417 = vunpack.c.l.b16 %v285
      %v418 = vunpack.c.l.b16 %v286
      %v419 = vunpack.c.l.b16 %v287
      %v420 = vunpack.c.l.b16 %v288
      %v421 = vunpack.c.l.b16 %v289
      %v422 = vunpack.c.l.b16 %v290
      %v423 = vunpack.c.l.b16 %v291
      %v424 = vunpack.c.l.b16 %v292
      %v425 = vunpack.c.l.b16 %v293
      %v426 = vunpack.c.l.b16 %v294
      %v427 = vunpack.c.l.b16 %v295
      %v428 = vunpack.c.l.b16 %v296
      %v429 = vunpack.c.l.b16 %v297
      %v430 = vpack.c.b16 %v395, %v394
      %v431 = vpack.c.b16 %v397, %v396
      %v432 = vpack.c.b16 %v399, %v398
      %v433 = vpack.c.b16 %v401, %v400
      %v434 = vpack.c.b16 %v403, %v402
      %v435 = vpack.c.b16 %v405, %v404
      %v436 = vpack.c.b16 %v407, %v406
      %v437 = vpack.c.b16 %v409, %v408
      %v438 = vpack.c.b16 %v411, %v410
      %v439 = vpack.c.b16 %v413, %v412
      %v440 = vpack.c.b16 %v415, %v414
      %v441 = vpack.c.b16 %v417, %v416
      %v442 = vpack.c.b16 %v419, %v418
      %v443 = vpack.c.b16 %v421, %v420
      %v444 = vpack.c.b16 %v423, %v422
      %v445 = vpack.c.b16 %v425, %v424
      %v446 = vpack.c.b16 %v427, %v426
      %v447 = vpack.c.b16 %v429, %v428
      %vm466 = vcmask 261120
      %v468 = vsel %vm466, %v340, 0
      %v471 = vsel %vm466, %v343, 0
      %v474 = vsel %vm466, %v346, 0
      %v477 = vsel %vm466, %v349, 0
      %479 = vmatprep.subr.bf16.mxu0 0
      %480 = vmatpush1.bf16.msra.mxu0 %v430
      %481 = vmatprep.subr.bf16.mxu0 0
      %482 = vmatpush1.bf16.msra.mxu0 %v431
      %483 = vmatprep.subr.bf16.mxu0 0
      %484 = vmatpush1.bf16.msra.mxu0 %v432
      %485 = vmatprep.subr.bf16.mxu0 0
      %486 = vmatpush1.bf16.msra.mxu0 %v433
      %487 = vmatprep.subr.bf16.mxu0 0
      %488 = vmatpush1.bf16.msra.mxu0 %v434
      %489 = vmatprep.subr.bf16.mxu0 0
      %490 = vmatpush1.bf16.msra.mxu0 %v435
      %491 = vmatprep.subr.bf16.mxu0 0
      %492 = vmatpush1.bf16.msra.mxu0 %v436
      %493 = vmatprep.subr.bf16.mxu0 0
      %494 = vmatpush1.bf16.msra.mxu0 %v437
      %495 = vmatprep.subr.bf16.mxu0 0
      %496 = vmatpush1.bf16.msra.mxu0 %v438
      %497 = vmatprep.subr.bf16.mxu0 0
      %498 = vmatpush1.bf16.msra.mxu0 %v439
      %499 = vmatprep.subr.bf16.mxu0 0
      %500 = vmatpush1.bf16.msra.mxu0 %v440
      %501 = vmatprep.subr.bf16.mxu0 0
      %502 = vmatpush1.bf16.msra.mxu0 %v441
      %503 = vmatprep.subr.bf16.mxu0 0
      %504 = vmatpush1.bf16.msra.mxu0 %v442
      %505 = vmatprep.subr.bf16.mxu0 0
      %506 = vmatpush1.bf16.msra.mxu0 %v443
      %507 = vmatprep.subr.bf16.mxu0 0
      %508 = vmatpush1.bf16.msra.mxu0 %v444
      %509 = vmatprep.subr.bf16.mxu0 0
      %510 = vmatpush1.bf16.msra.mxu0 %v445
      %511 = vmatprep.mubr.bf16.mxu0 %v339
      %512 = vmatmul.mubr.bf16.gmra.mrb[0].mxu0 %v338
      %v513 = vpop.f32.mrb[0].mxu0
      %v514 = vadd.f32 0.0, %v513
      %v515 = vpop.f32.mrb[0].mxu0
      %v516 = vpop.f32.mrb[0].mxu0
      %v517 = vadd.f32 0.0, %v516
      %v518 = vpop.f32.mrb[0].mxu0
      %519 = vmatprep.mubr.bf16.mxu0 %v342
      %520 = vmatmul.mubr.bf16.gmra.mrb[0].mxu0 %v341
      %v521 = vpop.f32.mrb[0].mxu0
      %v522 = vadd.f32 0.0, %v521
      %v523 = vpop.f32.mrb[0].mxu0
      %v524 = vpop.f32.mrb[0].mxu0
      %v525 = vadd.f32 0.0, %v524
      %v526 = vpop.f32.mrb[0].mxu0
      %527 = vmatprep.mubr.bf16.mxu0 %v345
      %528 = vmatmul.mubr.bf16.gmra.mrb[0].mxu0 %v344
      %v529 = vpop.f32.mrb[0].mxu0
      %v530 = vadd.f32 0.0, %v529
      %v531 = vpop.f32.mrb[0].mxu0
      %v532 = vpop.f32.mrb[0].mxu0
      %v533 = vadd.f32 0.0, %v532
      %v534 = vpop.f32.mrb[0].mxu0
      %535 = vmatprep.mubr.bf16.mxu0 %v348
      %536 = vmatmul.mubr.bf16.gmra.mrb[0].mxu0 %v347
      %v537 = vpop.f32.mrb[0].mxu0
      %v538 = vadd.f32 0.0, %v537
      %v539 = vpop.f32.mrb[0].mxu0
      %v540 = vpop.f32.mrb[0].mxu0
      %v541 = vadd.f32 0.0, %v540
      %v542 = vpop.f32.mrb[0].mxu0
      %543 = vdwg.mxu0
      %544 = vmatprep.subr.bf16.mxu0 0
      %545 = vmatpush1.bf16.msra.mxu0 %v446
      %546 = vmatprep.subr.bf16.mxu0 0
      %547 = vmatpush1.bf16.msra.mxu0 %v447
      %548 = vmatprep.subr.bf16.mxu0 0
      %549 = vmatpush1.bf16.msra.mxu0 0
      %550 = vmatprep.subr.bf16.mxu0 0
      %551 = vmatpush1.bf16.msra.mxu0 0
      %552 = vmatprep.subr.bf16.mxu0 0
      %553 = vmatpush1.bf16.msra.mxu0 0
      %554 = vmatprep.subr.bf16.mxu0 0
      %555 = vmatpush1.bf16.msra.mxu0 0
      %556 = vmatprep.subr.bf16.mxu0 0
      %557 = vmatpush1.bf16.msra.mxu0 0
      %558 = vmatprep.subr.bf16.mxu0 0
      %559 = vmatpush1.bf16.msra.mxu0 0
      %560 = vmatprep.subr.bf16.mxu0 0
      %561 = vmatpush1.bf16.msra.mxu0 0
      %562 = vmatprep.subr.bf16.mxu0 0
      %563 = vmatpush1.bf16.msra.mxu0 0
      %564 = vmatprep.subr.bf16.mxu0 0
      %565 = vmatpush1.bf16.msra.mxu0 0
      %566 = vmatprep.subr.bf16.mxu0 0
      %567 = vmatpush1.bf16.msra.mxu0 0
      %568 = vmatprep.subr.bf16.mxu0 0
      %569 = vmatpush1.bf16.msra.mxu0 0
      %570 = vmatprep.subr.bf16.mxu0 0
      %571 = vmatpush1.bf16.msra.mxu0 0
      %572 = vmatprep.subr.bf16.mxu0 0
      %573 = vmatpush1.bf16.msra.mxu0 0
      %574 = vmatprep.subr.bf16.mxu0 0
      %575 = vmatpush1.bf16.msra.mxu0 0
      %576 = vmatprep.mubr.bf16.mxu0 0
      %577 = vmatmul.mubr.bf16.gmra.mrb[0].mxu0 %v468
      %v578 = vpop.f32.mrb[0].mxu0
      %v579 = vadd.f32 %v514, %v578
      %v580 = vpop.f32.mrb[0].mxu0
      %v581 = vpop.f32.mrb[0].mxu0
      %v582 = vadd.f32 %v517, %v581
      %v583 = vpop.f32.mrb[0].mxu0
      %584 = vmatprep.mubr.bf16.mxu0 0
      %585 = vmatmul.mubr.bf16.gmra.mrb[0].mxu0 %v471
      %v586 = vpop.f32.mrb[0].mxu0
      %v587 = vadd.f32 %v522, %v586
      %v588 = vpop.f32.mrb[0].mxu0
      %v589 = vpop.f32.mrb[0].mxu0
      %v590 = vadd.f32 %v525, %v589
      %v591 = vpop.f32.mrb[0].mxu0
      %592 = vmatprep.mubr.bf16.mxu0 0
      %593 = vmatmul.mubr.bf16.gmra.mrb[0].mxu0 %v474
      %v594 = vpop.f32.mrb[0].mxu0
      %v595 = vadd.f32 %v530, %v594
      %v596 = vpop.f32.mrb[0].mxu0
      %v597 = vpop.f32.mrb[0].mxu0
      %v598 = vadd.f32 %v533, %v597
      %v599 = vpop.f32.mrb[0].mxu0
      %600 = vmatprep.mubr.bf16.mxu0 0
      %601 = vmatmul.mubr.bf16.gmra.mrb[0].mxu0 %v477
      %v602 = vpop.f32.mrb[0].mxu0
      %v603 = vadd.f32 %v538, %v602
      %v604 = vpop.f32.mrb[0].mxu0
      %v605 = vpop.f32.mrb[0].mxu0
      %v606 = vadd.f32 %v541, %v605
      %v607 = vpop.f32.mrb[0].mxu0
      %608 = vdwg.mxu0
      %v609 = vsel %vm466, %v579, 0.0
      %v610 = vsel %vm466, %v582, 0.0
      %v611 = vadd.f32 %v609, %v610
      %v612 = vsel %vm466, %v587, 0.0
      %v613 = vadd.f32 %v611, %v612
      %v614 = vsel %vm466, %v590, 0.0
      %v615 = vadd.f32 %v613, %v614
      %v616 = vsel %vm466, %v595, 0.0
      %v617 = vadd.f32 %v615, %v616
      %v618 = vsel %vm466, %v598, 0.0
      %v619 = vadd.f32 %v617, %v618
      %v620 = vsel %vm466, %v603, 0.0
      %v621 = vadd.f32 %v619, %v620
      %v622 = vsel %vm466, %v606, 0.0
      %v623 = vadd.f32 %v621, %v622
      %v624 = vrot.slane %v623, 4
      %v625 = vadd.f32 %v623, %v624
      %v626 = vrot.slane %v625, 2
      %v627 = vadd.f32 %v625, %v626
      %v628 = vrot.slane %v627, 1
      %v629 = vadd.f32 %v627, %v628
      %v630 = vmul.f32 %v629, 0.015625
      %v631 = vsub.f32 %v579, %v630
      %v632 = vsub.f32 %v582, %v630
      %v633 = vsub.f32 %v587, %v630
      %v634 = vsub.f32 %v590, %v630
      %v635 = vsub.f32 %v595, %v630
      %v636 = vsub.f32 %v598, %v630
      %v637 = vsub.f32 %v603, %v630
      %v638 = vsub.f32 %v606, %v630
      %v639 = vmul.f32 %v631, %v631
      %v640 = vmul.f32 %v632, %v632
      %v641 = vmul.f32 %v633, %v633
      %v642 = vmul.f32 %v634, %v634
      %v643 = vmul.f32 %v635, %v635
      %v644 = vmul.f32 %v636, %v636
      %v645 = vmul.f32 %v637, %v637
      %v646 = vmul.f32 %v638, %v638
      %v647 = vsel %vm466, %v639, 0.0
      %v648 = vsel %vm466, %v640, 0.0
      %v649 = vadd.f32 %v647, %v648
      %v650 = vsel %vm466, %v641, 0.0
      %v651 = vadd.f32 %v649, %v650
      %v652 = vsel %vm466, %v642, 0.0
      %v653 = vadd.f32 %v651, %v652
      %v654 = vsel %vm466, %v643, 0.0
      %v655 = vadd.f32 %v653, %v654
      %v656 = vsel %vm466, %v644, 0.0
      %v657 = vadd.f32 %v655, %v656
      %v658 = vsel %vm466, %v645, 0.0
      %v659 = vadd.f32 %v657, %v658
      %v660 = vsel %vm466, %v646, 0.0
      %v661 = vadd.f32 %v659, %v660
      %v662 = vrot.slane %v661, 4
      %v663 = vadd.f32 %v661, %v662
      %v664 = vrot.slane %v663, 2
      %v665 = vadd.f32 %v663, %v664
      %v666 = vrot.slane %v665, 1
      %v667 = vadd.f32 %v665, %v666
      %v668 = vmul.f32 %v667, 0.015625
      %v669 = vadd.f32 %v668, 1e-05
      %v670 = vrsqrt.pop %v669
      %v671 = vmul.f32 %v631, %v670
      %v672 = vmul.f32 %v632, %v670
      %v673 = vmul.f32 %v633, %v670
      %v674 = vmul.f32 %v634, %v670
      %v675 = vmul.f32 %v635, %v670
      %v676 = vmul.f32 %v636, %v670
      %v677 = vmul.f32 %v637, %v670
      %v678 = vmul.f32 %v638, %v670
      %v679 = vld [vmem:[%s2] sm:$0x1]
      %v681 = vlaneseq
      %v682 = vshrl.u32 %v681, 7
      %v683 = vsub.s32 0, %v682
      %v684 = vrot.slane %v679, %v683
      %v686 = vmul.f32 %v671, %v684
      %v687 = vmul.f32 %v672, %v684
      %v688 = vmul.f32 %v673, %v684
      %v689 = vmul.f32 %v674, %v684
      %v690 = vmul.f32 %v675, %v684
      %v691 = vmul.f32 %v676, %v684
      %v692 = vmul.f32 %v677, %v684
      %v693 = vmul.f32 %v678, %v684
      %v694 = vld [vmem:[%s3] sm:$0x1]
      %v696 = vlaneseq
      %v697 = vshrl.u32 %v696, 7
      %v698 = vsub.s32 0, %v697
      %v699 = vrot.slane %v694, %v698
      %v701 = vadd.f32 %v686, %v699
      %v702 = vadd.f32 %v687, %v699
      %v703 = vadd.f32 %v688, %v699
      %v704 = vadd.f32 %v689, %v699
      %v705 = vadd.f32 %v690, %v699
      %v706 = vadd.f32 %v691, %v699
      %v707 = vadd.f32 %v692, %v699
      %v708 = vadd.f32 %v693, %v699
      %v709 = vld [vmem:[%s239] sm:$0xff]
      %v710 = vld [vmem:[%s239 + $0x8] sm:$0xff]
      %v711 = vld [vmem:[%s239 + $0x10] sm:$0xff]
      %v712 = vld [vmem:[%s239 + $0x18] sm:$0xff]
      %v713 = vld [vmem:[%s239 + $0x20] sm:$0xff]
      %v714 = vld [vmem:[%s239 + $0x28] sm:$0xff]
      %v715 = vld [vmem:[%s239 + $0x30] sm:$0xff]
      %v716 = vld [vmem:[%s239 + $0x38] sm:$0xff]
      %v717 = vadd.f32 %v701, %v709
      %v718 = vadd.f32 %v702, %v710
      %v719 = vadd.f32 %v703, %v711
      %v720 = vadd.f32 %v704, %v712
      %v721 = vadd.f32 %v705, %v713
      %v722 = vadd.f32 %v706, %v714
      %v723 = vadd.f32 %v707, %v715
      %v724 = vadd.f32 %v708, %v716
      %725 = vst.msk [vmem:[%s244] sm:$0xff] %vm466, %v717
      %726 = vst.msk [vmem:[%s244 + $0x8] sm:$0xff] %vm466, %v718
      %727 = vst.msk [vmem:[%s244 + $0x10] sm:$0xff] %vm466, %v719
      %728 = vst.msk [vmem:[%s244 + $0x18] sm:$0xff] %vm466, %v720
      %729 = vst.msk [vmem:[%s244 + $0x20] sm:$0xff] %vm466, %v721
      %730 = vst.msk [vmem:[%s244 + $0x28] sm:$0xff] %vm466, %v722
      %731 = vst.msk [vmem:[%s244 + $0x30] sm:$0xff] %vm466, %v723
      %732 = vst.msk [vmem:[%s244 + $0x38] sm:$0xff] %vm466, %v724
      %p733 = scmp.lt.s32.totalorder %s16, 1
      %s734 = scalar_select %p733, %s16, 1
      %s735 = smul.addr %s734, 8
      %s736 = smul.addr %s735, 8
      %s737 = scalar_lea.vmem %s5, %s736
      // Predicated region
      $region41: #{generator_forward.7} parent=39 // pred_check
        %p738 = pneg %p149
      $region42: #{generator_forward.7} parent=39 // pred_check_branch
        %740 = sbr.rel (%p738) target = $region44
      $region43: #{generator_forward.7} parent=39 // pred_region
        _
      $region44: #{generator_forward.7} parent=39 // pred_fallthru
        _
    $region40: #{generator_forward.7} parent=5 // pred_fallthru
      _
    %p741 = scmp.le.s32.totalorder 2, %s11
    // Predicated region
    $region45: #{generator_forward.7} parent=5 // pred_check
      %p742 = pneg %p741
    $region46: #{generator_forward.7} parent=5 // pred_check_branch
      %744 = sbr.rel (%p742) target = $region48
    $region47: #{generator_forward.7} parent=5 // pred_region
      %s745 = ssub.s32 %s11, 2
      // Predicated region
      $region49: #{generator_forward.7} parent=47 // pred_check
        %p746 = pneg %p155
      $region50: #{generator_forward.7} parent=47 // pred_check_branch
        %748 = sbr.rel (%p746) target = $region52
      $region51: #{generator_forward.7} parent=47 // pred_region
        %p749 = scmp.lt.s32.totalorder %s17, 1
        %s750 = scalar_select %p749, %s17, 1
        %s751 = smul.addr %s750, 8
        %s752 = smul.addr %s751, 8
        %s753 = scalar_lea.vmem %s5, %s752
      $region52: #{generator_forward.7} parent=47 // pred_fallthru
        _
    $region48: #{generator_forward.7} parent=5 // pred_fallthru
      _
  $region6: #{generator_forward.7} parent=0 // loop_footer
    %s15 = sadd.s32 1, %s11
  $region7: #{generator_forward.7} parent=0 // loop_footer_branch
    %10 = sbr.rel target = $region3
  $region8: #{generator_forward.7} parent=0 // loop_exit
    _

// kernel: tile.13
$region0: #{tile.13}
  #allocation0 [shape = 's32[1]{0}', space=sflag, size = 0x4, scoped, tag = 'scoped memory for tile.13']
  %s0 = inlined_call_operand.vmem [shape: f32[16], index: 0, kind: input, shape index: {}]
  %s1 = inlined_call_operand.vmem [shape: f32[4,16], index: 1, kind: output, shape index: {}]
  // Predicated region
  $region2: #{tile.13} parent=0 // pred_check
    _
  $region3: #{tile.13} parent=0 // pred_check_branch
    %3 = sbr.rel (0) target = $region5
  $region4: #{tile.13} parent=0 // pred_region
    _
  $region5: #{tile.13} parent=0 // pred_fallthru
    _
  %v4 = vld [vmem:[%s0] ss:$0 sm:$0xff]
  %5 = vst [vmem:[%s1] sm:$0xf] %v4

// kernel: tile.18
$region0: #{tile.18}
  %s0 = inlined_call_operand.vmem [shape: f32[4,16], index: 0, kind: input, shape index: {}]
  %s1 = inlined_call_operand.vmem [shape: f32[1,64], index: 1, kind: output, shape index: {}]
  $region1: #{tile.18} parent=0
    #allocation0 [shape = 'u8[4096]{0}', space=vmem, size = 0x1000, scoped, tag = 'scoped mem for output reshape']
    #allocation1 [shape = 'u8[4096]{0}', space=vmem, size = 0x1000, scoped, tag = 'scoped mem for input reshape']
    %s3 = sshllo.u32 0, 4
    %v4 = vld [vmem:[%s0] sm:%s3]
    %5 = vst [vmem:[#allocation1] sm:%s3] %v4
    %v6 = vld [vmem:[#allocation1] sm:$0x1]
    %vm7 = vcmask 130048
    %8 = vst.msk [vmem:[#allocation0] sm:$0x1] %vm7, %v6
    %s9 = scalar_lea.vmem [#allocation1], 3
    %v10 = vld [vmem:[%s9] sm:$0x1]
    %11 = vrot.lane.b32.xlu0 %v10, 48
    %v12 = vpop.permute.xlu0 %11
    %vm13 = vcmask 523648
    %14 = vst.msk [vmem:[#allocation0] sm:$0x1] %vm13, %v12
    %s15 = scalar_lea.vmem [#allocation1], 2
    %v16 = vld [vmem:[%s15] sm:$0x1]
    %17 = vrot.lane.b32.xlu0 %v16, 32
    %v18 = vpop.permute.xlu0 %17
    %vm19 = vcmask 392448
    %20 = vst.msk [vmem:[#allocation0] sm:$0x1] %vm19, %v18
    %s21 = scalar_lea.vmem [#allocation1], 1
    %v22 = vld [vmem:[%s21] sm:$0x1]
    %23 = vrot.lane.b32.xlu0 %v22, 16
    %v24 = vpop.permute.xlu0 %23
    %vm25 = vcmask 261248
    %26 = vst.msk [vmem:[#allocation0] sm:$0x1] %vm25, %v24
    %s28 = sshllo.u32 0, 1
    %v30 = vld [vmem:[#allocation0] sm:%s28]
    %s31 = sshllo.u32 0, 1
    %32 = vst [vmem:[%s1] sm:%s31] %v30

// kernel: generator_forward.8
$region0: #{generator_forward.8}
  #allocation0 [shape = 'u32[]', space=smem, size = 0x4, offset = 0x4, fixed_abs, tag = 'smem constant byte address 0x4 - core index']
  #allocation1 [shape = 'u32[144,128]{1,0:T(1,128)}', space=vmem, size = 0x12000, scoped, tag = 'internal scratch']
  %s0 = inlined_call_operand.vmem [shape: bf16[2,64,288], index: 0, kind: input, shape index: {}]
  %s1 = inlined_call_operand.vmem [shape: bf16[288,64], index: 1, kind: input, shape index: {}]
  %s2 = inlined_call_operand.vmem [shape: f32[1,64], index: 2, kind: input, shape index: {}]
  %s3 = inlined_call_operand.vmem [shape: f32[1,64], index: 3, kind: input, shape index: {}]
  %s4 = inlined_call_operand.vmem [shape: f32[2,64,64], index: 4, kind: output, shape index: {}]
  %s5 = sld [smem:[#allocation0]]
  $region49: #{generator_forward.8} parent=0
    _
  %s7 = ssub.s32 1, %s5
  %s8 = scalar_select 0, %s7, %s5
  loop: start=0, step=1, limit=4
  $region2: #{generator_forward.8} parent=0 // loop_pre_header
    _
  $region3: #{generator_forward.8} parent=0 // loop_header
    %s10 = sphi 0, %s14
    %p11 = scmp.ge.s32.totalorder %s10, 4
    %s20 = sphi 0, %s22
    %s23 = sphi 0, %s20
    %s24 = sphi 0, %s23
    %s40 = sphi 0, %s24
    %s44 = sphi 0, %s44
    %s46 = sphi 0, %s44
    %s47 = sphi 0, %s46
    %s61 = sphi 0, %s47
    %s65 = sphi 0, %s65
    %s67 = sphi 0, %s65
    %s68 = sphi 0, %s67
    %s82 = sphi 0, %s68
    %s86 = sphi 0, %s86
    %s88 = sphi 0, %s86
    %s89 = sphi 0, %s88
    %s103 = sphi 0, %s89
    %s109 = sphi 0, %s111
    %s112 = sphi 0, %s109
    %s113 = sphi 0, %s112
    %s129 = sphi 0, %s113
  $region4: #{generator_forward.8} parent=0 // loop_header_branch
    %13 = sbr.rel (%p11) target = $region8
  $region5: #{generator_forward.8} parent=0 // loop_body
    %s15 = ssub.s32 %s10, 1
    %s16 = ssub.s32 %s10, 2
    %s17 = sadd.s32 %s10, 1
    %s18 = ssub.s32 %s10, %s17
    %p19 = scmp.eq.s32.totalorder %s18, 0
    %s21 = sadd.s32 %s20, 1
    %s22 = scalar_select %p19, %s20, %s21
    %p25 = pneg %p19
    %p26 = scmp.eq.s32.totalorder %s10, 1
    %p27 = por %p25, %p26
    %p28 = scmp.ne.s32.totalorder %s20, %s23
    %p29 = scmp.eq.s32.totalorder %s10, 0
    %p30 = por %p28, %p29
    %p31 = scmp.ne.s32.totalorder %s20, %s23
    %p32 = scmp.eq.s32.totalorder %s15, 1
    %p33 = por %p31, %p32
    %p34 = scmp.ne.s32.totalorder %s23, %s24
    %p35 = scmp.eq.s32.totalorder %s15, 0
    %p36 = por %p34, %p35
    %p37 = scmp.ne.s32.totalorder %s23, %s24
    %p38 = scmp.eq.s32.totalorder %s16, 1
    %p39 = por %p37, %p38
    %p41 = scmp.ne.s32.totalorder %s24, %s40
    %p42 = scmp.eq.s32.totalorder %s16, 0
    %p43 = por %p41, %p42
    %s45 = sadd.s32 %s44, 1
    %p48 = scmp.eq.s32.totalorder %s10, 1
    %p49 = scmp.ne.s32.totalorder %s44, %s46
    %p50 = scmp.eq.s32.totalorder %s10, 0
    %p51 = por %p49, %p50
    %p52 = scmp.ne.s32.totalorder %s44, %s46
    %p53 = scmp.eq.s32.totalorder %s15, 1
    %p54 = por %p52, %p53
    %p55 = scmp.ne.s32.totalorder %s46, %s47
    %p56 = scmp.eq.s32.totalorder %s15, 0
    %p57 = por %p55, %p56
    %p58 = scmp.ne.s32.totalorder %s46, %s47
    %p59 = scmp.eq.s32.totalorder %s16, 1
    %p60 = por %p58, %p59
    %p62 = scmp.ne.s32.totalorder %s47, %s61
    %p63 = scmp.eq.s32.totalorder %s16, 0
    %p64 = por %p62, %p63
    %s66 = sadd.s32 %s65, 1
    %p69 = scmp.eq.s32.totalorder %s10, 1
    %p70 = scmp.ne.s32.totalorder %s65, %s67
    %p71 = scmp.eq.s32.totalorder %s10, 0
    %p72 = por %p70, %p71
    %p73 = scmp.ne.s32.totalorder %s65, %s67
    %p74 = scmp.eq.s32.totalorder %s15, 1
    %p75 = por %p73, %p74
    %p76 = scmp.ne.s32.totalorder %s67, %s68
    %p77 = scmp.eq.s32.totalorder %s15, 0
    %p78 = por %p76, %p77
    %p79 = scmp.ne.s32.totalorder %s67, %s68
    %p80 = scmp.eq.s32.totalorder %s16, 1
    %p81 = por %p79, %p80
    %p83 = scmp.ne.s32.totalorder %s68, %s82
    %p84 = scmp.eq.s32.totalorder %s16, 0
    %p85 = por %p83, %p84
    %s87 = sadd.s32 %s86, 1
    %p90 = scmp.eq.s32.totalorder %s10, 1
    %p91 = scmp.ne.s32.totalorder %s86, %s88
    %p92 = scmp.eq.s32.totalorder %s10, 0
    %p93 = por %p91, %p92
    %p94 = scmp.ne.s32.totalorder %s86, %s88
    %p95 = scmp.eq.s32.totalorder %s15, 1
    %p96 = por %p94, %p95
    %p97 = scmp.ne.s32.totalorder %s88, %s89
    %p98 = scmp.eq.s32.totalorder %s15, 0
    %p99 = por %p97, %p98
    %p100 = scmp.ne.s32.totalorder %s88, %s89
    %p101 = scmp.eq.s32.totalorder %s16, 1
    %p102 = por %p100, %p101
    %p104 = scmp.ne.s32.totalorder %s89, %s103
    %p105 = scmp.eq.s32.totalorder %s16, 0
    %p106 = por %p104, %p105
    %s107 = ssub.s32 %s10, %s17
    %p108 = scmp.eq.s32.totalorder %s107, 0
    %s110 = sadd.s32 %s109, 1
    %s111 = scalar_select %p108, %s109, %s110
    %p114 = pneg %p108
    %p115 = scmp.eq.s32.totalorder %s10, 1
    %p116 = por %p114, %p115
    %p117 = scmp.ne.s32.totalorder %s109, %s112
    %p118 = scmp.eq.s32.totalorder %s10, 0
    %p119 = por %p117, %p118
    %p120 = scmp.ne.s32.totalorder %s109, %s112
    %p121 = scmp.eq.s32.totalorder %s15, 1
    %p122 = por %p120, %p121
    %p123 = scmp.ne.s32.totalorder %s112, %s113
    %p124 = scmp.eq.s32.totalorder %s15, 0
    %p125 = por %p123, %p124
    %p126 = scmp.ne.s32.totalorder %s112, %s113
    %p127 = scmp.eq.s32.totalorder %s16, 1
    %p128 = por %p126, %p127
    %p130 = scmp.ne.s32.totalorder %s113, %s129
    %p131 = scmp.eq.s32.totalorder %s16, 0
    %p132 = por %p130, %p131
    %p133 = scmp.le.s32.totalorder 1, %s10
    %p134 = scmp.lt.s32.totalorder %s10, 3
    %p135 = pnand %p133, %p134
    %p136 = pneg %p135
    // Predicated region
    $region9: #{generator_forward.8} parent=5 // pred_check
      _
    $region10: #{generator_forward.8} parent=5 // pred_check_branch
      %138 = sbr.rel (%p135) target = $region12
    $region11: #{generator_forward.8} parent=5 // pred_region
      %s139 = ssub.s32 %s10, 1
      // Predicated region
      $region13: #{generator_forward.8} parent=11 // pred_check
        %p140 = pneg %p57
      $region14: #{generator_forward.8} parent=11 // pred_check_branch
        %142 = sbr.rel (%p140) target = $region16
      $region15: #{generator_forward.8} parent=11 // pred_region
        _
      $region16: #{generator_forward.8} parent=11 // pred_fallthru
        _
      // Predicated region
      $region17: #{generator_forward.8} parent=11 // pred_check
        %p143 = pneg %p78
      $region18: #{generator_forward.8} parent=11 // pred_check_branch
        %145 = sbr.rel (%p143) target = $region20
      $region19: #{generator_forward.8} parent=11 // pred_region
        _
      $region20: #{generator_forward.8} parent=11 // pred_fallthru
        _
      // Predicated region
      $region21: #{generator_forward.8} parent=11 // pred_check
        %p146 = pneg %p99
      $region22: #{generator_forward.8} parent=11 // pred_check_branch
        %148 = sbr.rel (%p146) target = $region24
      $region23: #{generator_forward.8} parent=11 // pred_region
        _
      $region24: #{generator_forward.8} parent=11 // pred_fallthru
        _
    $region12: #{generator_forward.8} parent=5 // pred_fallthru
      _
    %p149 = scmp.lt.s32.totalorder %s10, 2
    // Predicated region
    $region25: #{generator_forward.8} parent=5 // pred_check
      %p150 = pneg %p149
    $region26: #{generator_forward.8} parent=5 // pred_check_branch
      %152 = sbr.rel (%p150) target = $region28
    $region27: #{generator_forward.8} parent=5 // pred_region
      // Predicated region
      $region29: #{generator_forward.8} parent=27 // pred_check
        %p153 = pneg %p30
      $region30: #{generator_forward.8} parent=27 // pred_check_branch
        %155 = sbr.rel (%p153) target = $region32
      $region31: #{generator_forward.8} parent=27 // pred_region
        %p156 = scmp.lt.s32.totalorder %s10, 1
        %s157 = scalar_select %p156, %s10, 1
        %s158 = smul.addr %s157, 24
        %s159 = smul.addr %s158, 4
        %s160 = scalar_lea.vmem %s0, %s159
      $region32: #{generator_forward.8} parent=27 // pred_fallthru
        _
    $region28: #{generator_forward.8} parent=5 // pred_fallthru
      _
    %p161 = scmp.le.s32.totalorder 1, %s10
    %p162 = scmp.lt.s32.totalorder %s10, 3
    %p163 = pnand %p161, %p162
    %p164 = pneg %p163
    // Predicated region
    $region33: #{generator_forward.8} parent=5 // pred_check
      _
    $region34: #{generator_forward.8} parent=5 // pred_check_branch
      %166 = sbr.rel (%p163) target = $region36
    $region35: #{generator_forward.8} parent=5 // pred_region
      %s167 = ssub.s32 %s10, 1
      %p168 = scmp.lt.s32.totalorder %s15, 1
      %s169 = scalar_select %p168, %s15, 1
      %s170 = smul.addr %s169, 24
      %s171 = smul.addr %s170, 4
      %s172 = scalar_lea.vmem %s0, %s171
      %p173 = pneg %p36
      %p174 = pneg %p33
      %p175 = pneg %p57
      %p176 = pneg %p54
      %p177 = pneg %p78
      %p178 = pneg %p75
      %p179 = pneg %p99
      %p180 = pneg %p96
      %p181 = pneg %p125
      %p182 = pneg %p122
      %p183 = scmp.lt.s32.totalorder %s15, 1
      %s184 = scalar_select %p183, %s15, 1
      %s185 = smul.addr %s184, 8
      %s186 = smul.addr %s185, 8
      %s187 = scalar_lea.vmem %s4, %s186
      %p188 = scmp.lt.s32.totalorder %s15, 1
      %s189 = scalar_select %p188, %s15, 1
      %s190 = smul.addr %s189, 24
      %s191 = smul.addr %s190, 4
      %s192 = scalar_lea.vmem %s0, %s191
      %p193 = scmp.lt.s32.totalorder %s15, 1
      %s194 = scalar_select %p193, %s15, 1
      %s195 = smul.addr %s194, 8
      %s196 = smul.addr %s195, 8
      %s197 = scalar_lea.vmem %s4, %s196
      %v199 = vld [vmem:[%s192] sm:$0xff]
      %v200 = vld [vmem:[%s192 + $0x8] sm:$0xf]
      %v201 = vld [vmem:[%s192 + $0xc] sm:$0xff]
      %v202 = vld [vmem:[%s192 + $0x14] sm:$0xf]
      %v203 = vld [vmem:[%s192 + $0x18] sm:$0xff]
      %v204 = vld [vmem:[%s192 + $0x20] sm:$0xf]
      %v205 = vld [vmem:[%s192 + $0x24] sm:$0xff]
      %v206 = vld [vmem:[%s192 + $0x2c] sm:$0xf]
      %v207 = vld [vmem:[%s192 + $0x30] sm:$0xff]
      %v208 = vld [vmem:[%s192 + $0x38] sm:$0xf]
      %v209 = vld [vmem:[%s192 + $0x3c] sm:$0xff]
      %v210 = vld [vmem:[%s192 + $0x44] sm:$0xf]
      %v211 = vld [vmem:[%s192 + $0x48] sm:$0xff]
      %v212 = vld [vmem:[%s192 + $0x50] sm:$0xf]
      %v213 = vld [vmem:[%s192 + $0x54] sm:$0xff]
      %v214 = vld [vmem:[%s192 + $0x5c] sm:$0xf]
      %v215 = vld [vmem:[%s1] sm:$0xf]
      %v216 = vld [vmem:[%s1 + $0x4] sm:$0xf]
      %v217 = vld [vmem:[%s1 + $0x8] sm:$0xf]
      %v218 = vld [vmem:[%s1 + $0xc] sm:$0xf]
      %v219 = vld [vmem:[%s1 + $0x10] sm:$0xf]
      %v220 = vld [vmem:[%s1 + $0x14] sm:$0xf]
      %v221 = vld [vmem:[%s1 + $0x18] sm:$0xf]
      %v222 = vld [vmem:[%s1 + $0x1c] sm:$0xf]
      %v223 = vld [vmem:[%s1 + $0x20] sm:$0xf]
      %v224 = vld [vmem:[%s1 + $0x24] sm:$0xf]
      %v225 = vld [vmem:[%s1 + $0x28] sm:$0xf]
      %v226 = vld [vmem:[%s1 + $0x2c] sm:$0xf]
      %v227 = vld [vmem:[%s1 + $0x30] sm:$0xf]
      %v228 = vld [vmem:[%s1 + $0x34] sm:$0xf]
      %v229 = vld [vmem:[%s1 + $0x38] sm:$0xf]
      %v230 = vld [vmem:[%s1 + $0x3c] sm:$0xf]
      %v231 = vld [vmem:[%s1 + $0x40] sm:$0xf]
      %v232 = vld [vmem:[%s1 + $0x44] sm:$0xf]
      %v233 = vld [vmem:[%s1 + $0x48] sm:$0xf]
      %v234 = vld [vmem:[%s1 + $0x4c] sm:$0xf]
      %v235 = vld [vmem:[%s1 + $0x50] sm:$0xf]
      %v236 = vld [vmem:[%s1 + $0x54] sm:$0xf]
      %v237 = vld [vmem:[%s1 + $0x58] sm:$0xf]
      %v238 = vld [vmem:[%s1 + $0x5c] sm:$0xf]
      %v239 = vld [vmem:[%s1 + $0x60] sm:$0xf]
      %v240 = vld [vmem:[%s1 + $0x64] sm:$0xf]
      %v241 = vld [vmem:[%s1 + $0x68] sm:$0xf]
      %v242 = vld [vmem:[%s1 + $0x6c] sm:$0xf]
      %v243 = vld [vmem:[%s1 + $0x70] sm:$0xf]
      %v244 = vld [vmem:[%s1 + $0x74] sm:$0xf]
      %v245 = vld [vmem:[%s1 + $0x78] sm:$0xf]
      %v246 = vld [vmem:[%s1 + $0x7c] sm:$0xf]
      %v247 = vld [vmem:[%s1 + $0x80] sm:$0xf]
      %v248 = vld [vmem:[%s1 + $0x84] sm:$0xf]
      %v249 = vld [vmem:[%s1 + $0x88] sm:$0xf]
      %v250 = vld [vmem:[%s1 + $0x8c] sm:$0xf]
      %v267 = vunpack.c.l.b16 %v199
      %v268 = vunpack.c.h.b16 %v199
      %v269 = vunpack.c.l.b16 %v200
      %v270 = vunpack.c.l.b16 %v201
      %v271 = vunpack.c.h.b16 %v201
      %v272 = vunpack.c.l.b16 %v202
      %v273 = vunpack.c.l.b16 %v203
      %v274 = vunpack.c.h.b16 %v203
      %v275 = vunpack.c.l.b16 %v204
      %v276 = vunpack.c.l.b16 %v205
      %v277 = vunpack.c.h.b16 %v205
      %v278 = vunpack.c.l.b16 %v206
      %v279 = vunpack.c.l.b16 %v207
      %v280 = vunpack.c.h.b16 %v207
      %v281 = vunpack.c.l.b16 %v208
      %v282 = vunpack.c.l.b16 %v209
      %v283 = vunpack.c.h.b16 %v209
      %v284 = vunpack.c.l.b16 %v210
      %v285 = vunpack.c.l.b16 %v211
      %v286 = vunpack.c.h.b16 %v211
      %v287 = vunpack.c.l.b16 %v212
      %v288 = vunpack.c.l.b16 %v213
      %v289 = vunpack.c.h.b16 %v213
      %v290 = vunpack.c.l.b16 %v214
      %v291 = vpack.c.b16 %v270, %v267
      %v292 = vpack.c.b16 %v271, %v268
      %v293 = vpack.c.b16 %v272, %v269
      %v294 = vpack.c.b16 %v276, %v273
      %v295 = vpack.c.b16 %v277, %v274
      %v296 = vpack.c.b16 %v278, %v275
      %v297 = vpack.c.b16 %v282, %v279
      %v298 = vpack.c.b16 %v283, %v280
      %v299 = vpack.c.b16 %v284, %v281
      %v300 = vpack.c.b16 %v288, %v285
      %v301 = vpack.c.b16 %v289, %v286
      %v302 = vpack.c.b16 %v290, %v287
      %v347 = vunpack.c.l.b16 %v215
      %v348 = vunpack.c.l.b16 %v216
      %v349 = vunpack.c.l.b16 %v217
      %v350 = vunpack.c.l.b16 %v218
      %v351 = vunpack.c.l.b16 %v219
      %v352 = vunpack.c.l.b16 %v220
      %v353 = vunpack.c.l.b16 %v221
      %v354 = vunpack.c.l.b16 %v222
      %v355 = vunpack.c.l.b16 %v223
      %v356 = vunpack.c.l.b16 %v224
      %v357 = vunpack.c.l.b16 %v225
      %v358 = vunpack.c.l.b16 %v226
      %v359 = vunpack.c.l.b16 %v227
      %v360 = vunpack.c.l.b16 %v228
      %v361 = vunpack.c.l.b16 %v229
      %v362 = vunpack.c.l.b16 %v230
      %v363 = vunpack.c.l.b16 %v231
      %v364 = vunpack.c.l.b16 %v232
      %v365 = vunpack.c.l.b16 %v233
      %v366 = vunpack.c.l.b16 %v234
      %v367 = vunpack.c.l.b16 %v235
      %v368 = vunpack.c.l.b16 %v236
      %v369 = vunpack.c.l.b16 %v237
      %v370 = vunpack.c.l.b16 %v238
      %v371 = vunpack.c.l.b16 %v239
      %v372 = vunpack.c.l.b16 %v240
      %v373 = vunpack.c.l.b16 %v241
      %v374 = vunpack.c.l.b16 %v242
      %v375 = vunpack.c.l.b16 %v243
      %v376 = vunpack.c.l.b16 %v244
      %v377 = vunpack.c.l.b16 %v245
      %v378 = vunpack.c.l.b16 %v246
      %v379 = vunpack.c.l.b16 %v247
      %v380 = vunpack.c.l.b16 %v248
      %v381 = vunpack.c.l.b16 %v249
      %v382 = vunpack.c.l.b16 %v250
      %v383 = vpack.c.b16 %v348, %v347
      %v384 = vpack.c.b16 %v350, %v349
      %v385 = vpack.c.b16 %v352, %v351
      %v386 = vpack.c.b16 %v354, %v353
      %v387 = vpack.c.b16 %v356, %v355
      %v388 = vpack.c.b16 %v358, %v357
      %v389 = vpack.c.b16 %v360, %v359
      %v390 = vpack.c.b16 %v362, %v361
      %v391 = vpack.c.b16 %v364, %v363
      %v392 = vpack.c.b16 %v366, %v365
      %v393 = vpack.c.b16 %v368, %v367
      %v394 = vpack.c.b16 %v370, %v369
      %v395 = vpack.c.b16 %v372, %v371
      %v396 = vpack.c.b16 %v374, %v373
      %v397 = vpack.c.b16 %v376, %v375
      %v398 = vpack.c.b16 %v378, %v377
      %v399 = vpack.c.b16 %v380, %v379
      %v400 = vpack.c.b16 %v382, %v381
      %vm419 = vcmask 261120
      %v421 = vsel %vm419, %v293, 0
      %v424 = vsel %vm419, %v296, 0
      %v427 = vsel %vm419, %v299, 0
      %v430 = vsel %vm419, %v302, 0
      %432 = vmatprep.subr.bf16.mxu0 0
      %433 = vmatpush1.bf16.msra.mxu0 %v383
      %434 = vmatprep.subr.bf16.mxu0 0
      %435 = vmatpush1.bf16.msra.mxu0 %v384
      %436 = vmatprep.subr.bf16.mxu0 0
      %437 = vmatpush1.bf16.msra.mxu0 %v385
      %438 = vmatprep.subr.bf16.mxu0 0
      %439 = vmatpush1.bf16.msra.mxu0 %v386
      %440 = vmatprep.subr.bf16.mxu0 0
      %441 = vmatpush1.bf16.msra.mxu0 %v387
      %442 = vmatprep.subr.bf16.mxu0 0
      %443 = vmatpush1.bf16.msra.mxu0 %v388
      %444 = vmatprep.subr.bf16.mxu0 0
      %445 = vmatpush1.bf16.msra.mxu0 %v389
      %446 = vmatprep.subr.bf16.mxu0 0
      %447 = vmatpush1.bf16.msra.mxu0 %v390
      %448 = vmatprep.subr.bf16.mxu0 0
      %449 = vmatpush1.bf16.msra.mxu0 %v391
      %450 = vmatprep.subr.bf16.mxu0 0
      %451 = vmatpush1.bf16.msra.mxu0 %v392
      %452 = vmatprep.subr.bf16.mxu0 0
      %453 = vmatpush1.bf16.msra.mxu0 %v393
      %454 = vmatprep.subr.bf16.mxu0 0
      %455 = vmatpush1.bf16.msra.mxu0 %v394
      %456 = vmatprep.subr.bf16.mxu0 0
      %457 = vmatpush1.bf16.msra.mxu0 %v395
      %458 = vmatprep.subr.bf16.mxu0 0
      %459 = vmatpush1.bf16.msra.mxu0 %v396
      %460 = vmatprep.subr.bf16.mxu0 0
      %461 = vmatpush1.bf16.msra.mxu0 %v397
      %462 = vmatprep.subr.bf16.mxu0 0
      %463 = vmatpush1.bf16.msra.mxu0 %v398
      %464 = vmatprep.mubr.bf16.mxu0 %v292
      %465 = vmatmul.mubr.bf16.gmra.mrb[0].mxu0 %v291
      %v466 = vpop.f32.mrb[0].mxu0
      %v467 = vadd.f32 0.0, %v466
      %v468 = vpop.f32.mrb[0].mxu0
      %v469 = vpop.f32.mrb[0].mxu0
      %v470 = vadd.f32 0.0, %v469
      %v471 = vpop.f32.mrb[0].mxu0
      %472 = vmatprep.mubr.bf16.mxu0 %v295
      %473 = vmatmul.mubr.bf16.gmra.mrb[0].mxu0 %v294
      %v474 = vpop.f32.mrb[0].mxu0
      %v475 = vadd.f32 0.0, %v474
      %v476 = vpop.f32.mrb[0].mxu0
      %v477 = vpop.f32.mrb[0].mxu0
      %v478 = vadd.f32 0.0, %v477
      %v479 = vpop.f32.mrb[0].mxu0
      %480 = vmatprep.mubr.bf16.mxu0 %v298
      %481 = vmatmul.mubr.bf16.gmra.mrb[0].mxu0 %v297
      %v482 = vpop.f32.mrb[0].mxu0
      %v483 = vadd.f32 0.0, %v482
      %v484 = vpop.f32.mrb[0].mxu0
      %v485 = vpop.f32.mrb[0].mxu0
      %v486 = vadd.f32 0.0, %v485
      %v487 = vpop.f32.mrb[0].mxu0
      %488 = vmatprep.mubr.bf16.mxu0 %v301
      %489 = vmatmul.mubr.bf16.gmra.mrb[0].mxu0 %v300
      %v490 = vpop.f32.mrb[0].mxu0
      %v491 = vadd.f32 0.0, %v490
      %v492 = vpop.f32.mrb[0].mxu0
      %v493 = vpop.f32.mrb[0].mxu0
      %v494 = vadd.f32 0.0, %v493
      %v495 = vpop.f32.mrb[0].mxu0
      %496 = vdwg.mxu0
      %497 = vmatprep.subr.bf16.mxu0 0
      %498 = vmatpush1.bf16.msra.mxu0 %v399
      %499 = vmatprep.subr.bf16.mxu0 0
      %500 = vmatpush1.bf16.msra.mxu0 %v400
      %501 = vmatprep.subr.bf16.mxu0 0
      %502 = vmatpush1.bf16.msra.mxu0 0
      %503 = vmatprep.subr.bf16.mxu0 0
      %504 = vmatpush1.bf16.msra.mxu0 0
      %505 = vmatprep.subr.bf16.mxu0 0
      %506 = vmatpush1.bf16.msra.mxu0 0
      %507 = vmatprep.subr.bf16.mxu0 0
      %508 = vmatpush1.bf16.msra.mxu0 0
      %509 = vmatprep.subr.bf16.mxu0 0
      %510 = vmatpush1.bf16.msra.mxu0 0
      %511 = vmatprep.subr.bf16.mxu0 0
      %512 = vmatpush1.bf16.msra.mxu0 0
      %513 = vmatprep.subr.bf16.mxu0 0
      %514 = vmatpush1.bf16.msra.mxu0 0
      %515 = vmatprep.subr.bf16.mxu0 0
      %516 = vmatpush1.bf16.msra.mxu0 0
      %517 = vmatprep.subr.bf16.mxu0 0
      %518 = vmatpush1.bf16.msra.mxu0 0
      %519 = vmatprep.subr.bf16.mxu0 0
      %520 = vmatpush1.bf16.msra.mxu0 0
      %521 = vmatprep.subr.bf16.mxu0 0
      %522 = vmatpush1.bf16.msra.mxu0 0
      %523 = vmatprep.subr.bf16.mxu0 0
      %524 = vmatpush1.bf16.msra.mxu0 0
      %525 = vmatprep.subr.bf16.mxu0 0
      %526 = vmatpush1.bf16.msra.mxu0 0
      %527 = vmatprep.subr.bf16.mxu0 0
      %528 = vmatpush1.bf16.msra.mxu0 0
      %529 = vmatprep.mubr.bf16.mxu0 0
      %530 = vmatmul.mubr.bf16.gmra.mrb[0].mxu0 %v421
      %v531 = vpop.f32.mrb[0].mxu0
      %v532 = vadd.f32 %v467, %v531
      %v533 = vpop.f32.mrb[0].mxu0
      %v534 = vpop.f32.mrb[0].mxu0
      %v535 = vadd.f32 %v470, %v534
      %v536 = vpop.f32.mrb[0].mxu0
      %537 = vmatprep.mubr.bf16.mxu0 0
      %538 = vmatmul.mubr.bf16.gmra.mrb[0].mxu0 %v424
      %v539 = vpop.f32.mrb[0].mxu0
      %v540 = vadd.f32 %v475, %v539
      %v541 = vpop.f32.mrb[0].mxu0
      %v542 = vpop.f32.mrb[0].mxu0
      %v543 = vadd.f32 %v478, %v542
      %v544 = vpop.f32.mrb[0].mxu0
      %545 = vmatprep.mubr.bf16.mxu0 0
      %546 = vmatmul.mubr.bf16.gmra.mrb[0].mxu0 %v427
      %v547 = vpop.f32.mrb[0].mxu0
      %v548 = vadd.f32 %v483, %v547
      %v549 = vpop.f32.mrb[0].mxu0
      %v550 = vpop.f32.mrb[0].mxu0
      %v551 = vadd.f32 %v486, %v550
      %v552 = vpop.f32.mrb[0].mxu0
      %553 = vmatprep.mubr.bf16.mxu0 0
      %554 = vmatmul.mubr.bf16.gmra.mrb[0].mxu0 %v430
      %v555 = vpop.f32.mrb[0].mxu0
      %v556 = vadd.f32 %v491, %v555
      %v557 = vpop.f32.mrb[0].mxu0
      %v558 = vpop.f32.mrb[0].mxu0
      %v559 = vadd.f32 %v494, %v558
      %v560 = vpop.f32.mrb[0].mxu0
      %561 = vdwg.mxu0
      %vm562 = vcmask 523264
      %v563 = vsel %vm562, %v532, 0.0
      %v564 = vsel %vm562, %v535, 0.0
      %v565 = vadd.f32 %v563, %v564
      %v566 = vsel %vm562, %v540, 0.0
      %v567 = vadd.f32 %v565, %v566
      %v568 = vsel %vm562, %v543, 0.0
      %v569 = vadd.f32 %v567, %v568
      %v570 = vsel %vm562, %v548, 0.0
      %v571 = vadd.f32 %v569, %v570
      %v572 = vsel %vm562, %v551, 0.0
      %v573 = vadd.f32 %v571, %v572
      %v574 = vsel %vm562, %v556, 0.0
      %v575 = vadd.f32 %v573, %v574
      %v576 = vsel %vm562, %v559, 0.0
      %v577 = vadd.f32 %v575, %v576
      %v578 = vrot.slane %v577, 4
      %v579 = vadd.f32 %v577, %v578
      %v580 = vrot.slane %v579, 2
      %v581 = vadd.f32 %v579, %v580
      %v582 = vrot.slane %v581, 1
      %v583 = vadd.f32 %v581, %v582
      %585 = vrot.lane.b32.xlu0 %v583, 112
      %v586 = vpop.permute.xlu0 %585
      %v588 = vadd.f32 %v583, %v586
      %589 = vrot.lane.b32.xlu0 %v583, 96
      %v590 = vpop.permute.xlu0 %589
      %v592 = vadd.f32 %v588, %v590
      %593 = vrot.lane.b32.xlu0 %v583, 80
      %v594 = vpop.permute.xlu0 %593
      %v596 = vadd.f32 %v592, %v594
      %598 = vrot.lane.b32.xlu0 %v596, 16
      %v599 = vpop.permute.xlu0 %598
      %601 = vrot.lane.b32.xlu0 %v596, 32
      %v602 = vpop.permute.xlu0 %601
      %604 = vrot.lane.b32.xlu0 %v596, 48
      %v605 = vpop.permute.xlu0 %604
      %vm607 = vcmask 130048
      %v608 = vsel %vm607, %v596, %v599
      %v609 = vsel %vm419, %v608, %v602
      %vm610 = vcmask 392192
      %v611 = vsel %vm610, %v609, %v605
      %v612 = vmul.f32 %v611, 0.00390625
      %v613 = vlaneseq
      %v614 = vshrl.u32 %v613, 7
      %v615 = vsub.s32 0, %v614
      %v616 = vrot.slane %v612, %v615
      %v617 = vsub.f32 %v532, %v616
      %v618 = vsub.f32 %v535, %v616
      %v619 = vsub.f32 %v540, %v616
      %v620 = vsub.f32 %v543, %v616
      %v621 = vsub.f32 %v548, %v616
      %v622 = vsub.f32 %v551, %v616
      %v623 = vsub.f32 %v556, %v616
      %v624 = vsub.f32 %v559, %v616
      %v625 = vmul.f32 %v617, %v617
      %v626 = vmul.f32 %v618, %v618
      %v627 = vmul.f32 %v619, %v619
      %v628 = vmul.f32 %v620, %v620
      %v629 = vmul.f32 %v621, %v621
      %v630 = vmul.f32 %v622, %v622
      %v631 = vmul.f32 %v623, %v623
      %v632 = vmul.f32 %v624, %v624
      %v633 = vsel %vm562, %v625, 0.0
      %v634 = vsel %vm562, %v626, 0.0
      %v635 = vadd.f32 %v633, %v634
      %v636 = vsel %vm562, %v627, 0.0
      %v637 = vadd.f32 %v635, %v636
      %v638 = vsel %vm562, %v628, 0.0
      %v639 = vadd.f32 %v637, %v638
      %v640 = vsel %vm562, %v629, 0.0
      %v641 = vadd.f32 %v639, %v640
      %v642 = vsel %vm562, %v630, 0.0
      %v643 = vadd.f32 %v641, %v642
      %v644 = vsel %vm562, %v631, 0.0
      %v645 = vadd.f32 %v643, %v644
      %v646 = vsel %vm562, %v632, 0.0
      %v647 = vadd.f32 %v645, %v646
      %v648 = vrot.slane %v647, 4
      %v649 = vadd.f32 %v647, %v648
      %v650 = vrot.slane %v649, 2
      %v651 = vadd.f32 %v649, %v650
      %v652 = vrot.slane %v651, 1
      %v653 = vadd.f32 %v651, %v652
      %655 = vrot.lane.b32.xlu0 %v653, 112
      %v656 = vpop.permute.xlu0 %655
      %v658 = vadd.f32 %v653, %v656
      %659 = vrot.lane.b32.xlu0 %v653, 96
      %v660 = vpop.permute.xlu0 %659
      %v662 = vadd.f32 %v658, %v660
      %663 = vrot.lane.b32.xlu0 %v653, 80
      %v664 = vpop.permute.xlu0 %663
      %v666 = vadd.f32 %v662, %v664
      %668 = vrot.lane.b32.xlu0 %v666, 16
      %v669 = vpop.permute.xlu0 %668
      %671 = vrot.lane.b32.xlu0 %v666, 32
      %v672 = vpop.permute.xlu0 %671
      %674 = vrot.lane.b32.xlu0 %v666, 48
      %v675 = vpop.permute.xlu0 %674
      %v677 = vsel %vm607, %v666, %v669
      %v678 = vsel %vm419, %v677, %v672
      %v679 = vsel %vm610, %v678, %v675
      %v680 = vmul.f32 %v679, 0.00390625
      %v681 = vadd.f32 %v680, 1e-05
      %v682 = vrsqrt.pop %v681
      %v683 = vlaneseq
      %v684 = vshrl.u32 %v683, 7
      %v685 = vsub.s32 0, %v684
      %v686 = vrot.slane %v682, %v685
      %v687 = vmul.f32 %v617, %v686
      %v688 = vmul.f32 %v618, %v686
      %v689 = vmul.f32 %v619, %v686
      %v690 = vmul.f32 %v620, %v686
      %v691 = vmul.f32 %v621, %v686
      %v692 = vmul.f32 %v622, %v686
      %v693 = vmul.f32 %v623, %v686
      %v694 = vmul.f32 %v624, %v686
      %v695 = vld [vmem:[%s2] sm:$0x1]
      %v697 = vlaneseq
      %v698 = vshrl.u32 %v697, 7
      %v699 = vsub.s32 0, %v698
      %v700 = vrot.slane %v695, %v699
      %v702 = vmul.f32 %v687, %v700
      %v703 = vmul.f32 %v688, %v700
      %v704 = vmul.f32 %v689, %v700
      %v705 = vmul.f32 %v690, %v700
      %v706 = vmul.f32 %v691, %v700
      %v707 = vmul.f32 %v692, %v700
      %v708 = vmul.f32 %v693, %v700
      %v709 = vmul.f32 %v694, %v700
      %v710 = vld [vmem:[%s3] sm:$0x1]
      %v712 = vlaneseq
      %v713 = vshrl.u32 %v712, 7
      %v714 = vsub.s32 0, %v713
      %v715 = vrot.slane %v710, %v714
      %v717 = vadd.f32 %v702, %v715
      %v718 = vadd.f32 %v703, %v715
      %v719 = vadd.f32 %v704, %v715
      %v720 = vadd.f32 %v705, %v715
      %v721 = vadd.f32 %v706, %v715
      %v722 = vadd.f32 %v707, %v715
      %v723 = vadd.f32 %v708, %v715
      %v724 = vadd.f32 %v709, %v715
      %v725 = vmax.f32 %v717, 0.0
      %v726 = vmax.f32 %v718, 0.0
      %v727 = vmax.f32 %v719, 0.0
      %v728 = vmax.f32 %v720, 0.0
      %v729 = vmax.f32 %v721, 0.0
      %v730 = vmax.f32 %v722, 0.0
      %v731 = vmax.f32 %v723, 0.0
      %v732 = vmax.f32 %v724, 0.0
      %733 = vst.msk [vmem:[%s197] sm:$0xff] %vm562, %v725
      %734 = vst.msk [vmem:[%s197 + $0x8] sm:$0xff] %vm562, %v726
      %735 = vst.msk [vmem:[%s197 + $0x10] sm:$0xff] %vm562, %v727
      %736 = vst.msk [vmem:[%s197 + $0x18] sm:$0xff] %vm562, %v728
      %737 = vst.msk [vmem:[%s197 + $0x20] sm:$0xff] %vm562, %v729
      %738 = vst.msk [vmem:[%s197 + $0x28] sm:$0xff] %vm562, %v730
      %739 = vst.msk [vmem:[%s197 + $0x30] sm:$0xff] %vm562, %v731
      %740 = vst.msk [vmem:[%s197 + $0x38] sm:$0xff] %vm562, %v732
      %p741 = scmp.lt.s32.totalorder %s15, 1
      %s742 = scalar_select %p741, %s15, 1
      %s743 = smul.addr %s742, 8
      %s744 = smul.addr %s743, 8
      %s745 = scalar_lea.vmem %s4, %s744
      // Predicated region
      $region37: #{generator_forward.8} parent=35 // pred_check
        %p746 = pneg %p122
      $region38: #{generator_forward.8} parent=35 // pred_check_branch
        %748 = sbr.rel (%p746) target = $region40
      $region39: #{generator_forward.8} parent=35 // pred_region
        _
      $region40: #{generator_forward.8} parent=35 // pred_fallthru
        _
    $region36: #{generator_forward.8} parent=5 // pred_fallthru
      _
    %p749 = scmp.le.s32.totalorder 2, %s10
    // Predicated region
    $region41: #{generator_forward.8} parent=5 // pred_check
      %p750 = pneg %p749
    $region42: #{generator_forward.8} parent=5 // pred_check_branch
      %752 = sbr.rel (%p750) target = $region44
    $region43: #{generator_forward.8} parent=5 // pred_region
      %s753 = ssub.s32 %s10, 2
      // Predicated region
      $region45: #{generator_forward.8} parent=43 // pred_check
        %p754 = pneg %p128
      $region46: #{generator_forward.8} parent=43 // pred_check_branch
        %756 = sbr.rel (%p754) target = $region48
      $region47: #{generator_forward.8} parent=43 // pred_region
        %p757 = scmp.lt.s32.totalorder %s16, 1
        %s758 = scalar_select %p757, %s16, 1
        %s759 = smul.addr %s758, 8
        %s760 = smul.addr %s759, 8
        %s761 = scalar_lea.vmem %s4, %s760
      $region48: #{generator_forward.8} parent=43 // pred_fallthru
        _
    $region44: #{generator_forward.8} parent=5 // pred_fallthru
      _
  $region6: #{generator_forward.8} parent=0 // loop_footer
    %s14 = sadd.s32 1, %s10
  $region7: #{generator_forward.8} parent=0 // loop_footer_branch
    %9 = sbr.rel target = $region3
  $region8: #{generator_forward.8} parent=0 // loop_exit
    _

// kernel: generator_forward.9
$region0: #{generator_forward.9}
  #allocation0 [shape = 'u32[]', space=smem, size = 0x4, offset = 0x4, fixed_abs, tag = 'smem constant byte address 0x4 - core index']
  #allocation1 [shape = 'u32[144,128]{1,0:T(1,128)}', space=vmem, size = 0x12000, scoped, tag = 'internal scratch']
  %s0 = inlined_call_operand.vmem [shape: bf16[2,256,784], index: 0, kind: input, shape index: {}]
  %s1 = inlined_call_operand.vmem [shape: bf16[784,3], index: 1, kind: input, shape index: {}]
  %s2 = inlined_call_operand.vmem [shape: f32[2,256,3], index: 2, kind: input, shape index: {}]
  %s3 = inlined_call_operand.vmem [shape: f32[2,256,3], index: 3, kind: output, shape index: {}]
  %s4 = sld [smem:[#allocation0]]
  $region45: #{generator_forward.9} parent=0
    _
  %s6 = ssub.s32 1, %s4
  %s7 = scalar_select 0, %s6, %s4
  loop: start=0, step=1, limit=4
  $region2: #{generator_forward.9} parent=0 // loop_pre_header
    _
  $region3: #{generator_forward.9} parent=0 // loop_header
    %s9 = sphi 0, %s13
    %p10 = scmp.ge.s32.totalorder %s9, 4
    %s19 = sphi 0, %s21
    %s22 = sphi 0, %s19
    %s23 = sphi 0, %s22
    %s39 = sphi 0, %s23
    %s43 = sphi 0, %s43
    %s45 = sphi 0, %s43
    %s46 = sphi 0, %s45
    %s60 = sphi 0, %s46
    %s66 = sphi 0, %s68
    %s69 = sphi 0, %s66
    %s70 = sphi 0, %s69
    %s86 = sphi 0, %s70
    %s92 = sphi 0, %s94
    %s95 = sphi 0, %s92
    %s96 = sphi 0, %s95
    %s112 = sphi 0, %s96
  $region4: #{generator_forward.9} parent=0 // loop_header_branch
    %12 = sbr.rel (%p10) target = $region8
  $region5: #{generator_forward.9} parent=0 // loop_body
    %s14 = ssub.s32 %s9, 1
    %s15 = ssub.s32 %s9, 2
    %s16 = sadd.s32 %s9, 1
    %s17 = ssub.s32 %s9, %s16
    %p18 = scmp.eq.s32.totalorder %s17, 0
    %s20 = sadd.s32 %s19, 1
    %s21 = scalar_select %p18, %s19, %s20
    %p24 = pneg %p18
    %p25 = scmp.eq.s32.totalorder %s9, 1
    %p26 = por %p24, %p25
    %p27 = scmp.ne.s32.totalorder %s19, %s22
    %p28 = scmp.eq.s32.totalorder %s9, 0
    %p29 = por %p27, %p28
    %p30 = scmp.ne.s32.totalorder %s19, %s22
    %p31 = scmp.eq.s32.totalorder %s14, 1
    %p32 = por %p30, %p31
    %p33 = scmp.ne.s32.totalorder %s22, %s23
    %p34 = scmp.eq.s32.totalorder %s14, 0
    %p35 = por %p33, %p34
    %p36 = scmp.ne.s32.totalorder %s22, %s23
    %p37 = scmp.eq.s32.totalorder %s15, 1
    %p38 = por %p36, %p37
    %p40 = scmp.ne.s32.totalorder %s23, %s39
    %p41 = scmp.eq.s32.totalorder %s15, 0
    %p42 = por %p40, %p41
    %s44 = sadd.s32 %s43, 1
    %p47 = scmp.eq.s32.totalorder %s9, 1
    %p48 = scmp.ne.s32.totalorder %s43, %s45
    %p49 = scmp.eq.s32.totalorder %s9, 0
    %p50 = por %p48, %p49
    %p51 = scmp.ne.s32.totalorder %s43, %s45
    %p52 = scmp.eq.s32.totalorder %s14, 1
    %p53 = por %p51, %p52
    %p54 = scmp.ne.s32.totalorder %s45, %s46
    %p55 = scmp.eq.s32.totalorder %s14, 0
    %p56 = por %p54, %p55
    %p57 = scmp.ne.s32.totalorder %s45, %s46
    %p58 = scmp.eq.s32.totalorder %s15, 1
    %p59 = por %p57, %p58
    %p61 = scmp.ne.s32.totalorder %s46, %s60
    %p62 = scmp.eq.s32.totalorder %s15, 0
    %p63 = por %p61, %p62
    %s64 = ssub.s32 %s9, %s16
    %p65 = scmp.eq.s32.totalorder %s64, 0
    %s67 = sadd.s32 %s66, 1
    %s68 = scalar_select %p65, %s66, %s67
    %p71 = pneg %p65
    %p72 = scmp.eq.s32.totalorder %s9, 1
    %p73 = por %p71, %p72
    %p74 = scmp.ne.s32.totalorder %s66, %s69
    %p75 = scmp.eq.s32.totalorder %s9, 0
    %p76 = por %p74, %p75
    %p77 = scmp.ne.s32.totalorder %s66, %s69
    %p78 = scmp.eq.s32.totalorder %s14, 1
    %p79 = por %p77, %p78
    %p80 = scmp.ne.s32.totalorder %s69, %s70
    %p81 = scmp.eq.s32.totalorder %s14, 0
    %p82 = por %p80, %p81
    %p83 = scmp.ne.s32.totalorder %s69, %s70
    %p84 = scmp.eq.s32.totalorder %s15, 1
    %p85 = por %p83, %p84
    %p87 = scmp.ne.s32.totalorder %s70, %s86
    %p88 = scmp.eq.s32.totalorder %s15, 0
    %p89 = por %p87, %p88
    %s90 = ssub.s32 %s9, %s16
    %p91 = scmp.eq.s32.totalorder %s90, 0
    %s93 = sadd.s32 %s92, 1
    %s94 = scalar_select %p91, %s92, %s93
    %p97 = pneg %p91
    %p98 = scmp.eq.s32.totalorder %s9, 1
    %p99 = por %p97, %p98
    %p100 = scmp.ne.s32.totalorder %s92, %s95
    %p101 = scmp.eq.s32.totalorder %s9, 0
    %p102 = por %p100, %p101
    %p103 = scmp.ne.s32.totalorder %s92, %s95
    %p104 = scmp.eq.s32.totalorder %s14, 1
    %p105 = por %p103, %p104
    %p106 = scmp.ne.s32.totalorder %s95, %s96
    %p107 = scmp.eq.s32.totalorder %s14, 0
    %p108 = por %p106, %p107
    %p109 = scmp.ne.s32.totalorder %s95, %s96
    %p110 = scmp.eq.s32.totalorder %s15, 1
    %p111 = por %p109, %p110
    %p113 = scmp.ne.s32.totalorder %s96, %s112
    %p114 = scmp.eq.s32.totalorder %s15, 0
    %p115 = por %p113, %p114
    %p116 = scmp.le.s32.totalorder 1, %s9
    %p117 = scmp.lt.s32.totalorder %s9, 3
    %p118 = pnand %p116, %p117
    %p119 = pneg %p118
    // Predicated region
    $region9: #{generator_forward.9} parent=5 // pred_check
      _
    $region10: #{generator_forward.9} parent=5 // pred_check_branch
      %121 = sbr.rel (%p118) target = $region12
    $region11: #{generator_forward.9} parent=5 // pred_region
      %s122 = ssub.s32 %s9, 1
      // Predicated region
      $region13: #{generator_forward.9} parent=11 // pred_check
        %p123 = pneg %p56
      $region14: #{generator_forward.9} parent=11 // pred_check_branch
        %125 = sbr.rel (%p123) target = $region16
      $region15: #{generator_forward.9} parent=11 // pred_region
        _
      $region16: #{generator_forward.9} parent=11 // pred_fallthru
        _
    $region12: #{generator_forward.9} parent=5 // pred_fallthru
      _
    %p126 = scmp.lt.s32.totalorder %s9, 2
    // Predicated region
    $region17: #{generator_forward.9} parent=5 // pred_check
      %p127 = pneg %p126
    $region18: #{generator_forward.9} parent=5 // pred_check_branch
      %129 = sbr.rel (%p127) target = $region20
    $region19: #{generator_forward.9} parent=5 // pred_region
      // Predicated region
      $region21: #{generator_forward.9} parent=19 // pred_check
        %p130 = pneg %p29
      $region22: #{generator_forward.9} parent=19 // pred_check_branch
        %132 = sbr.rel (%p130) target = $region24
      $region23: #{generator_forward.9} parent=19 // pred_region
        %p133 = scmp.lt.s32.totalorder %s9, 1
        %s134 = scalar_select %p133, %s9, 1
        %s135 = smul.addr %s134, 224
        %s136 = smul.addr %s135, 4
        %s137 = scalar_lea.vmem %s0, %s136
      $region24: #{generator_forward.9} parent=19 // pred_fallthru
        _
      // Predicated region
      $region25: #{generator_forward.9} parent=19 // pred_check
        %p138 = pneg %p76
      $region26: #{generator_forward.9} parent=19 // pred_check_branch
        %140 = sbr.rel (%p138) target = $region28
      $region27: #{generator_forward.9} parent=19 // pred_region
        %p141 = scmp.lt.s32.totalorder %s9, 1
        %s142 = scalar_select %p141, %s9, 1
        %s143 = smul.addr %s142, 32
        %s144 = smul.addr %s143, 8
        %s145 = scalar_lea.vmem %s2, %s144
      $region28: #{generator_forward.9} parent=19 // pred_fallthru
        _
    $region20: #{generator_forward.9} parent=5 // pred_fallthru
      _
    %p146 = scmp.le.s32.totalorder 1, %s9
    %p147 = scmp.lt.s32.totalorder %s9, 3
    %p148 = pnand %p146, %p147
    %p149 = pneg %p148
    // Predicated region
    $region29: #{generator_forward.9} parent=5 // pred_check
      _
    $region30: #{generator_forward.9} parent=5 // pred_check_branch
      %151 = sbr.rel (%p148) target = $region32
    $region31: #{generator_forward.9} parent=5 // pred_region
      %s152 = ssub.s32 %s9, 1
      %p153 = scmp.lt.s32.totalorder %s14, 1
      %s154 = scalar_select %p153, %s14, 1
      %s155 = smul.addr %s154, 224
      %s156 = smul.addr %s155, 4
      %s157 = scalar_lea.vmem %s0, %s156
      %p158 = pneg %p35
      %p159 = pneg %p32
      %p160 = pneg %p56
      %p161 = pneg %p53
      %p162 = scmp.lt.s32.totalorder %s14, 1
      %s163 = scalar_select %p162, %s14, 1
      %s164 = smul.addr %s163, 32
      %s165 = smul.addr %s164, 8
      %s166 = scalar_lea.vmem %s2, %s165
      %p167 = pneg %p82
      %p168 = pneg %p79
      %p169 = pneg %p108
      %p170 = pneg %p105
      %p171 = scmp.lt.s32.totalorder %s14, 1
      %s172 = scalar_select %p171, %s14, 1
      %s173 = smul.addr %s172, 32
      %s174 = smul.addr %s173, 8
      %s175 = scalar_lea.vmem %s3, %s174
      %p176 = scmp.lt.s32.totalorder %s14, 1
      %s177 = scalar_select %p176, %s14, 1
      %s178 = smul.addr %s177, 224
      %s179 = smul.addr %s178, 4
      %s180 = scalar_lea.vmem %s0, %s179
      %p181 = scmp.lt.s32.totalorder %s14, 1
      %s182 = scalar_select %p181, %s14, 1
      %s183 = smul.addr %s182, 32
      %s184 = smul.addr %s183, 8
      %s185 = scalar_lea.vmem %s2, %s184
      %p186 = scmp.lt.s32.totalorder %s14, 1
      %s187 = scalar_select %p186, %s14, 1
      %s188 = smul.addr %s187, 32
      %s189 = smul.addr %s188, 8
      %s190 = scalar_lea.vmem %s3, %s189
      %v192 = vld [vmem:[%s180] sm:$0xff]
      %v193 = vld [vmem:[%s180 + $0x8] sm:$0xff]
      %v194 = vld [vmem:[%s180 + $0x10] sm:$0xff]
      %v195 = vld [vmem:[%s180 + $0x18] sm:$0xf]
      %v196 = vld [vmem:[%s180 + $0x1c] sm:$0xff]
      %v197 = vld [vmem:[%s180 + $0x24] sm:$0xff]
      %v198 = vld [vmem:[%s180 + $0x2c] sm:$0xff]
      %v199 = vld [vmem:[%s180 + $0x34] sm:$0xf]
      %v200 = vld [vmem:[%s180 + $0x38] sm:$0xff]
      %v201 = vld [vmem:[%s180 + $0x40] sm:$0xff]
      %v202 = vld [vmem:[%s180 + $0x48] sm:$0xff]
      %v203 = vld [vmem:[%s180 + $0x50] sm:$0xf]
      %v204 = vld [vmem:[%s180 + $0x54] sm:$0xff]
      %v205 = vld [vmem:[%s180 + $0x5c] sm:$0xff]
      %v206 = vld [vmem:[%s180 + $0x64] sm:$0xff]
      %v207 = vld [vmem:[%s180 + $0x6c] sm:$0xf]
      %v208 = vld [vmem:[%s180 + $0x70] sm:$0xff]
      %v209 = vld [vmem:[%s180 + $0x78] sm:$0xff]
      %v210 = vld [vmem:[%s180 + $0x80] sm:$0xff]
      %v211 = vld [vmem:[%s180 + $0x88] sm:$0xf]
      %v212 = vld [vmem:[%s180 + $0x8c] sm:$0xff]
      %v213 = vld [vmem:[%s180 + $0x94] sm:$0xff]
      %v214 = vld [vmem:[%s180 + $0x9c] sm:$0xff]
      %v215 = vld [vmem:[%s180 + $0xa4] sm:$0xf]
      %v216 = vld [vmem:[%s180 + $0xa8] sm:$0xff]
      %v217 = vld [vmem:[%s180 + $0xb0] sm:$0xff]
      %v218 = vld [vmem:[%s180 + $0xb8] sm:$0xff]
      %v219 = vld [vmem:[%s180 + $0xc0] sm:$0xf]
      %v220 = vld [vmem:[%s180 + $0xc4] sm:$0xff]
      %v221 = vld [vmem:[%s180 + $0xcc] sm:$0xff]
      %v222 = vld [vmem:[%s180 + $0xd4] sm:$0xff]
      %v223 = vld [vmem:[%s180 + $0xdc] sm:$0xf]
      %v224 = vld [vmem:[%s180 + $0xe0] sm:$0xff]
      %v225 = vld [vmem:[%s180 + $0xe8] sm:$0xff]
      %v226 = vld [vmem:[%s180 + $0xf0] sm:$0xff]
      %v227 = vld [vmem:[%s180 + $0xf8] sm:$0xf]
      %v228 = vld [vmem:[%s180 + $0xfc] sm:$0xff]
      %v229 = vld [vmem:[%s180 + $0x104] sm:$0xff]
      %v230 = vld [vmem:[%s180 + $0x10c] sm:$0xff]
      %v231 = vld [vmem:[%s180 + $0x114] sm:$0xf]
      %v232 = vld [vmem:[%s180 + $0x118] sm:$0xff]
      %v233 = vld [vmem:[%s180 + $0x120] sm:$0xff]
      %v234 = vld [vmem:[%s180 + $0x128] sm:$0xff]
      %v235 = vld [vmem:[%s180 + $0x130] sm:$0xf]
      %v236 = vld [vmem:[%s180 + $0x134] sm:$0xff]
      %v237 = vld [vmem:[%s180 + $0x13c] sm:$0xff]
      %v238 = vld [vmem:[%s180 + $0x144] sm:$0xff]
      %v239 = vld [vmem:[%s180 + $0x14c] sm:$0xf]
      %v240 = vld [vmem:[%s180 + $0x150] sm:$0xff]
      %v241 = vld [vmem:[%s180 + $0x158] sm:$0xff]
      %v242 = vld [vmem:[%s180 + $0x160] sm:$0xff]
      %v243 = vld [vmem:[%s180 + $0x168] sm:$0xf]
      %v244 = vld [vmem:[%s180 + $0x16c] sm:$0xff]
      %v245 = vld [vmem:[%s180 + $0x174] sm:$0xff]
      %v246 = vld [vmem:[%s180 + $0x17c] sm:$0xff]
      %v247 = vld [vmem:[%s180 + $0x184] sm:$0xf]
      %v248 = vld [vmem:[%s180 + $0x188] sm:$0xff]
      %v249 = vld [vmem:[%s180 + $0x190] sm:$0xff]
      %v250 = vld [vmem:[%s180 + $0x198] sm:$0xff]
      %v251 = vld [vmem:[%s180 + $0x1a0] sm:$0xf]
      %v252 = vld [vmem:[%s180 + $0x1a4] sm:$0xff]
      %v253 = vld [vmem:[%s180 + $0x1ac] sm:$0xff]
      %v254 = vld [vmem:[%s180 + $0x1b4] sm:$0xff]
      %v255 = vld [vmem:[%s180 + $0x1bc] sm:$0xf]
      %v256 = vld [vmem:[%s180 + $0x1c0] sm:$0xff]
      %v257 = vld [vmem:[%s180 + $0x1c8] sm:$0xff]
      %v258 = vld [vmem:[%s180 + $0x1d0] sm:$0xff]
      %v259 = vld [vmem:[%s180 + $0x1d8] sm:$0xf]
      %v260 = vld [vmem:[%s180 + $0x1dc] sm:$0xff]
      %v261 = vld [vmem:[%s180 + $0x1e4] sm:$0xff]
      %v262 = vld [vmem:[%s180 + $0x1ec] sm:$0xff]
      %v263 = vld [vmem:[%s180 + $0x1f4] sm:$0xf]
      %v264 = vld [vmem:[%s180 + $0x1f8] sm:$0xff]
      %v265 = vld [vmem:[%s180 + $0x200] sm:$0xff]
      %v266 = vld [vmem:[%s180 + $0x208] sm:$0xff]
      %v267 = vld [vmem:[%s180 + $0x210] sm:$0xf]
      %v268 = vld [vmem:[%s180 + $0x214] sm:$0xff]
      %v269 = vld [vmem:[%s180 + $0x21c] sm:$0xff]
      %v270 = vld [vmem:[%s180 + $0x224] sm:$0xff]
      %v271 = vld [vmem:[%s180 + $0x22c] sm:$0xf]
      %v272 = vld [vmem:[%s180 + $0x230] sm:$0xff]
      %v273 = vld [vmem:[%s180 + $0x238] sm:$0xff]
      %v274 = vld [vmem:[%s180 + $0x240] sm:$0xff]
      %v275 = vld [vmem:[%s180 + $0x248] sm:$0xf]
      %v276 = vld [vmem:[%s180 + $0x24c] sm:$0xff]
      %v277 = vld [vmem:[%s180 + $0x254] sm:$0xff]
      %v278 = vld [vmem:[%s180 + $0x25c] sm:$0xff]
      %v279 = vld [vmem:[%s180 + $0x264] sm:$0xf]
      %v280 = vld [vmem:[%s180 + $0x268] sm:$0xff]
      %v281 = vld [vmem:[%s180 + $0x270] sm:$0xff]
      %v282 = vld [vmem:[%s180 + $0x278] sm:$0xff]
      %v283 = vld [vmem:[%s180 + $0x280] sm:$0xf]
      %v284 = vld [vmem:[%s180 + $0x284] sm:$0xff]
      %v285 = vld [vmem:[%s180 + $0x28c] sm:$0xff]
      %v286 = vld [vmem:[%s180 + $0x294] sm:$0xff]
      %v287 = vld [vmem:[%s180 + $0x29c] sm:$0xf]
      %v288 = vld [vmem:[%s180 + $0x2a0] sm:$0xff]
      %v289 = vld [vmem:[%s180 + $0x2a8] sm:$0xff]
      %v290 = vld [vmem:[%s180 + $0x2b0] sm:$0xff]
      %v291 = vld [vmem:[%s180 + $0x2b8] sm:$0xf]
      %v292 = vld [vmem:[%s180 + $0x2bc] sm:$0xff]
      %v293 = vld [vmem:[%s180 + $0x2c4] sm:$0xff]
      %v294 = vld [vmem:[%s180 + $0x2cc] sm:$0xff]
      %v295 = vld [vmem:[%s180 + $0x2d4] sm:$0xf]
      %v296 = vld [vmem:[%s180 + $0x2d8] sm:$0xff]
      %v297 = vld [vmem:[%s180 + $0x2e0] sm:$0xff]
      %v298 = vld [vmem:[%s180 + $0x2e8] sm:$0xff]
      %v299 = vld [vmem:[%s180 + $0x2f0] sm:$0xf]
      %v300 = vld [vmem:[%s180 + $0x2f4] sm:$0xff]
      %v301 = vld [vmem:[%s180 + $0x2fc] sm:$0xff]
      %v302 = vld [vmem:[%s180 + $0x304] sm:$0xff]
      %v303 = vld [vmem:[%s180 + $0x30c] sm:$0xf]
      %v304 = vld [vmem:[%s180 + $0x310] sm:$0xff]
      %v305 = vld [vmem:[%s180 + $0x318] sm:$0xff]
      %v306 = vld [vmem:[%s180 + $0x320] sm:$0xff]
      %v307 = vld [vmem:[%s180 + $0x328] sm:$0xf]
      %v308 = vld [vmem:[%s180 + $0x32c] sm:$0xff]
      %v309 = vld [vmem:[%s180 + $0x334] sm:$0xff]
      %v310 = vld [vmem:[%s180 + $0x33c] sm:$0xff]
      %v311 = vld [vmem:[%s180 + $0x344] sm:$0xf]
      %v312 = vld [vmem:[%s180 + $0x348] sm:$0xff]
      %v313 = vld [vmem:[%s180 + $0x350] sm:$0xff]
      %v314 = vld [vmem:[%s180 + $0x358] sm:$0xff]
      %v315 = vld [vmem:[%s180 + $0x360] sm:$0xf]
      %v316 = vld [vmem:[%s180 + $0x364] sm:$0xff]
      %v317 = vld [vmem:[%s180 + $0x36c] sm:$0xff]
      %v318 = vld [vmem:[%s180 + $0x374] sm:$0xff]
      %v319 = vld [vmem:[%s180 + $0x37c] sm:$0xf]
      %v320 = vld [vmem:[%s1] sm:$0xf]
      %v321 = vld [vmem:[%s1 + $0x4] sm:$0xf]
      %v322 = vld [vmem:[%s1 + $0x8] sm:$0xf]
      %v323 = vld [vmem:[%s1 + $0xc] sm:$0xf]
      %v324 = vld [vmem:[%s1 + $0x10] sm:$0xf]
      %v325 = vld [vmem:[%s1 + $0x14] sm:$0xf]
      %v326 = vld [vmem:[%s1 + $0x18] sm:$0xf]
      %v327 = vld [vmem:[%s1 + $0x1c] sm:$0xf]
      %v328 = vld [vmem:[%s1 + $0x20] sm:$0xf]
      %v329 = vld [vmem:[%s1 + $0x24] sm:$0xf]
      %v330 = vld [vmem:[%s1 + $0x28] sm:$0xf]
      %v331 = vld [vmem:[%s1 + $0x2c] sm:$0xf]
      %v332 = vld [vmem:[%s1 + $0x30] sm:$0xf]
      %v333 = vld [vmem:[%s1 + $0x34] sm:$0xf]
      %v334 = vld [vmem:[%s1 + $0x38] sm:$0xf]
      %v335 = vld [vmem:[%s1 + $0x3c] sm:$0xf]
      %v336 = vld [vmem:[%s1 + $0x40] sm:$0xf]
      %v337 = vld [vmem:[%s1 + $0x44] sm:$0xf]
      %v338 = vld [vmem:[%s1 + $0x48] sm:$0xf]
      %v339 = vld [vmem:[%s1 + $0x4c] sm:$0xf]
      %v340 = vld [vmem:[%s1 + $0x50] sm:$0xf]
      %v341 = vld [vmem:[%s1 + $0x54] sm:$0xf]
      %v342 = vld [vmem:[%s1 + $0x58] sm:$0xf]
      %v343 = vld [vmem:[%s1 + $0x5c] sm:$0xf]
      %v344 = vld [vmem:[%s1 + $0x60] sm:$0xf]
      %v345 = vld [vmem:[%s1 + $0x64] sm:$0xf]
      %v346 = vld [vmem:[%s1 + $0x68] sm:$0xf]
      %v347 = vld [vmem:[%s1 + $0x6c] sm:$0xf]
      %v348 = vld [vmem:[%s1 + $0x70] sm:$0xf]
      %v349 = vld [vmem:[%s1 + $0x74] sm:$0xf]
      %v350 = vld [vmem:[%s1 + $0x78] sm:$0xf]
      %v351 = vld [vmem:[%s1 + $0x7c] sm:$0xf]
      %v352 = vld [vmem:[%s1 + $0x80] sm:$0xf]
      %v353 = vld [vmem:[%s1 + $0x84] sm:$0xf]
      %v354 = vld [vmem:[%s1 + $0x88] sm:$0xf]
      %v355 = vld [vmem:[%s1 + $0x8c] sm:$0xf]
      %v356 = vld [vmem:[%s1 + $0x90] sm:$0xf]
      %v357 = vld [vmem:[%s1 + $0x94] sm:$0xf]
      %v358 = vld [vmem:[%s1 + $0x98] sm:$0xf]
      %v359 = vld [vmem:[%s1 + $0x9c] sm:$0xf]
      %v360 = vld [vmem:[%s1 + $0xa0] sm:$0xf]
      %v361 = vld [vmem:[%s1 + $0xa4] sm:$0xf]
      %v362 = vld [vmem:[%s1 + $0xa8] sm:$0xf]
      %v363 = vld [vmem:[%s1 + $0xac] sm:$0xf]
      %v364 = vld [vmem:[%s1 + $0xb0] sm:$0xf]
      %v365 = vld [vmem:[%s1 + $0xb4] sm:$0xf]
      %v366 = vld [vmem:[%s1 + $0xb8] sm:$0xf]
      %v367 = vld [vmem:[%s1 + $0xbc] sm:$0xf]
      %v368 = vld [vmem:[%s1 + $0xc0] sm:$0xf]
      %v369 = vld [vmem:[%s1 + $0xc4] sm:$0xf]
      %v370 = vld [vmem:[%s1 + $0xc8] sm:$0xf]
      %v371 = vld [vmem:[%s1 + $0xcc] sm:$0xf]
      %v372 = vld [vmem:[%s1 + $0xd0] sm:$0xf]
      %v373 = vld [vmem:[%s1 + $0xd4] sm:$0xf]
      %v374 = vld [vmem:[%s1 + $0xd8] sm:$0xf]
      %v375 = vld [vmem:[%s1 + $0xdc] sm:$0xf]
      %v376 = vld [vmem:[%s1 + $0xe0] sm:$0xf]
      %v377 = vld [vmem:[%s1 + $0xe4] sm:$0xf]
      %v378 = vld [vmem:[%s1 + $0xe8] sm:$0xf]
      %v379 = vld [vmem:[%s1 + $0xec] sm:$0xf]
      %v380 = vld [vmem:[%s1 + $0xf0] sm:$0xf]
      %v381 = vld [vmem:[%s1 + $0xf4] sm:$0xf]
      %v382 = vld [vmem:[%s1 + $0xf8] sm:$0xf]
      %v383 = vld [vmem:[%s1 + $0xfc] sm:$0xf]
      %v384 = vld [vmem:[%s1 + $0x100] sm:$0xf]
      %v385 = vld [vmem:[%s1 + $0x104] sm:$0xf]
      %v386 = vld [vmem:[%s1 + $0x108] sm:$0xf]
      %v387 = vld [vmem:[%s1 + $0x10c] sm:$0xf]
      %v388 = vld [vmem:[%s1 + $0x110] sm:$0xf]
      %v389 = vld [vmem:[%s1 + $0x114] sm:$0xf]
      %v390 = vld [vmem:[%s1 + $0x118] sm:$0xf]
      %v391 = vld [vmem:[%s1 + $0x11c] sm:$0xf]
      %v392 = vld [vmem:[%s1 + $0x120] sm:$0xf]
      %v393 = vld [vmem:[%s1 + $0x124] sm:$0xf]
      %v394 = vld [vmem:[%s1 + $0x128] sm:$0xf]
      %v395 = vld [vmem:[%s1 + $0x12c] sm:$0xf]
      %v396 = vld [vmem:[%s1 + $0x130] sm:$0xf]
      %v397 = vld [vmem:[%s1 + $0x134] sm:$0xf]
      %v398 = vld [vmem:[%s1 + $0x138] sm:$0xf]
      %v399 = vld [vmem:[%s1 + $0x13c] sm:$0xf]
      %v400 = vld [vmem:[%s1 + $0x140] sm:$0xf]
      %v401 = vld [vmem:[%s1 + $0x144] sm:$0xf]
      %v402 = vld [vmem:[%s1 + $0x148] sm:$0xf]
      %v403 = vld [vmem:[%s1 + $0x14c] sm:$0xf]
      %v404 = vld [vmem:[%s1 + $0x150] sm:$0xf]
      %v405 = vld [vmem:[%s1 + $0x154] sm:$0xf]
      %v406 = vld [vmem:[%s1 + $0x158] sm:$0xf]
      %v407 = vld [vmem:[%s1 + $0x15c] sm:$0xf]
      %v408 = vld [vmem:[%s1 + $0x160] sm:$0xf]
      %v409 = vld [vmem:[%s1 + $0x164] sm:$0xf]
      %v410 = vld [vmem:[%s1 + $0x168] sm:$0xf]
      %v411 = vld [vmem:[%s1 + $0x16c] sm:$0xf]
      %v412 = vld [vmem:[%s1 + $0x170] sm:$0xf]
      %v413 = vld [vmem:[%s1 + $0x174] sm:$0xf]
      %v414 = vld [vmem:[%s1 + $0x178] sm:$0xf]
      %v415 = vld [vmem:[%s1 + $0x17c] sm:$0xf]
      %v416 = vld [vmem:[%s1 + $0x180] sm:$0xf]
      %v417 = vld [vmem:[%s1 + $0x184] sm:$0xf]
      %v546 = vunpack.c.l.b16 %v192
      %v547 = vunpack.c.h.b16 %v192
      %v548 = vunpack.c.l.b16 %v193
      %v549 = vunpack.c.h.b16 %v193
      %v550 = vunpack.c.l.b16 %v194
      %v551 = vunpack.c.h.b16 %v194
      %v552 = vunpack.c.l.b16 %v195
      %v553 = vunpack.c.l.b16 %v196
      %v554 = vunpack.c.h.b16 %v196
      %v555 = vunpack.c.l.b16 %v197
      %v556 = vunpack.c.h.b16 %v197
      %v557 = vunpack.c.l.b16 %v198
      %v558 = vunpack.c.h.b16 %v198
      %v559 = vunpack.c.l.b16 %v199
      %v560 = vunpack.c.l.b16 %v200
      %v561 = vunpack.c.h.b16 %v200
      %v562 = vunpack.c.l.b16 %v201
      %v563 = vunpack.c.h.b16 %v201
      %v564 = vunpack.c.l.b16 %v202
      %v565 = vunpack.c.h.b16 %v202
      %v566 = vunpack.c.l.b16 %v203
      %v567 = vunpack.c.l.b16 %v204
      %v568 = vunpack.c.h.b16 %v204
      %v569 = vunpack.c.l.b16 %v205
      %v570 = vunpack.c.h.b16 %v205
      %v571 = vunpack.c.l.b16 %v206
      %v572 = vunpack.c.h.b16 %v206
      %v573 = vunpack.c.l.b16 %v207
      %v574 = vunpack.c.l.b16 %v208
      %v575 = vunpack.c.h.b16 %v208
      %v576 = vunpack.c.l.b16 %v209
      %v577 = vunpack.c.h.b16 %v209
      %v578 = vunpack.c.l.b16 %v210
      %v579 = vunpack.c.h.b16 %v210
      %v580 = vunpack.c.l.b16 %v211
      %v581 = vunpack.c.l.b16 %v212
      %v582 = vunpack.c.h.b16 %v212
      %v583 = vunpack.c.l.b16 %v213
      %v584 = vunpack.c.h.b16 %v213
      %v585 = vunpack.c.l.b16 %v214
      %v586 = vunpack.c.h.b16 %v214
      %v587 = vunpack.c.l.b16 %v215
      %v588 = vunpack.c.l.b16 %v216
      %v589 = vunpack.c.h.b16 %v216
      %v590 = vunpack.c.l.b16 %v217
      %v591 = vunpack.c.h.b16 %v217
      %v592 = vunpack.c.l.b16 %v218
      %v593 = vunpack.c.h.b16 %v218
      %v594 = vunpack.c.l.b16 %v219
      %v595 = vunpack.c.l.b16 %v220
      %v596 = vunpack.c.h.b16 %v220
      %v597 = vunpack.c.l.b16 %v221
      %v598 = vunpack.c.h.b16 %v221
      %v599 = vunpack.c.l.b16 %v222
      %v600 = vunpack.c.h.b16 %v222
      %v601 = vunpack.c.l.b16 %v223
      %v602 = vunpack.c.l.b16 %v224
      %v603 = vunpack.c.h.b16 %v224
      %v604 = vunpack.c.l.b16 %v225
      %v605 = vunpack.c.h.b16 %v225
      %v606 = vunpack.c.l.b16 %v226
      %v607 = vunpack.c.h.b16 %v226
      %v608 = vunpack.c.l.b16 %v227
      %v609 = vunpack.c.l.b16 %v228
      %v610 = vunpack.c.h.b16 %v228
      %v611 = vunpack.c.l.b16 %v229
      %v612 = vunpack.c.h.b16 %v229
      %v613 = vunpack.c.l.b16 %v230
      %v614 = vunpack.c.h.b16 %v230
      %v615 = vunpack.c.l.b16 %v231
      %v616 = vunpack.c.l.b16 %v232
      %v617 = vunpack.c.h.b16 %v232
      %v618 = vunpack.c.l.b16 %v233
      %v619 = vunpack.c.h.b16 %v233
      %v620 = vunpack.c.l.b16 %v234
      %v621 = vunpack.c.h.b16 %v234
      %v622 = vunpack.c.l.b16 %v235
      %v623 = vunpack.c.l.b16 %v236
      %v624 = vunpack.c.h.b16 %v236
      %v625 = vunpack.c.l.b16 %v237
      %v626 = vunpack.c.h.b16 %v237
      %v627 = vunpack.c.l.b16 %v238
      %v628 = vunpack.c.h.b16 %v238
      %v629 = vunpack.c.l.b16 %v239
      %v630 = vunpack.c.l.b16 %v240
      %v631 = vunpack.c.h.b16 %v240
      %v632 = vunpack.c.l.b16 %v241
      %v633 = vunpack.c.h.b16 %v241
      %v634 = vunpack.c.l.b16 %v242
      %v635 = vunpack.c.h.b16 %v242
      %v636 = vunpack.c.l.b16 %v243
      %v637 = vunpack.c.l.b16 %v244
      %v638 = vunpack.c.h.b16 %v244
      %v639 = vunpack.c.l.b16 %v245
      %v640 = vunpack.c.h.b16 %v245
      %v641 = vunpack.c.l.b16 %v246
      %v642 = vunpack.c.h.b16 %v246
      %v643 = vunpack.c.l.b16 %v247
      %v644 = vunpack.c.l.b16 %v248
      %v645 = vunpack.c.h.b16 %v248
      %v646 = vunpack.c.l.b16 %v249
      %v647 = vunpack.c.h.b16 %v249
      %v648 = vunpack.c.l.b16 %v250
      %v649 = vunpack.c.h.b16 %v250
      %v650 = vunpack.c.l.b16 %v251
      %v651 = vunpack.c.l.b16 %v252
      %v652 = vunpack.c.h.b16 %v252
      %v653 = vunpack.c.l.b16 %v253
      %v654 = vunpack.c.h.b16 %v253
      %v655 = vunpack.c.l.b16 %v254
      %v656 = vunpack.c.h.b16 %v254
      %v657 = vunpack.c.l.b16 %v255
      %v658 = vunpack.c.l.b16 %v256
      %v659 = vunpack.c.h.b16 %v256
      %v660 = vunpack.c.l.b16 %v257
      %v661 = vunpack.c.h.b16 %v257
      %v662 = vunpack.c.l.b16 %v258
      %v663 = vunpack.c.h.b16 %v258
      %v664 = vunpack.c.l.b16 %v259
      %v665 = vunpack.c.l.b16 %v260
      %v666 = vunpack.c.h.b16 %v260
      %v667 = vunpack.c.l.b16 %v261
      %v668 = vunpack.c.h.b16 %v261
      %v669 = vunpack.c.l.b16 %v262
      %v670 = vunpack.c.h.b16 %v262
      %v671 = vunpack.c.l.b16 %v263
      %v672 = vunpack.c.l.b16 %v264
      %v673 = vunpack.c.h.b16 %v264
      %v674 = vunpack.c.l.b16 %v265
      %v675 = vunpack.c.h.b16 %v265
      %v676 = vunpack.c.l.b16 %v266
      %v677 = vunpack.c.h.b16 %v266
      %v678 = vunpack.c.l.b16 %v267
      %v679 = vunpack.c.l.b16 %v268
      %v680 = vunpack.c.h.b16 %v268
      %v681 = vunpack.c.l.b16 %v269
      %v682 = vunpack.c.h.b16 %v269
      %v683 = vunpack.c.l.b16 %v270
      %v684 = vunpack.c.h.b16 %v270
      %v685 = vunpack.c.l.b16 %v271
      %v686 = vunpack.c.l.b16 %v272
      %v687 = vunpack.c.h.b16 %v272
      %v688 = vunpack.c.l.b16 %v273
      %v689 = vunpack.c.h.b16 %v273
      %v690 = vunpack.c.l.b16 %v274
      %v691 = vunpack.c.h.b16 %v274
      %v692 = vunpack.c.l.b16 %v275
      %v693 = vunpack.c.l.b16 %v276
      %v694 = vunpack.c.h.b16 %v276
      %v695 = vunpack.c.l.b16 %v277
      %v696 = vunpack.c.h.b16 %v277
      %v697 = vunpack.c.l.b16 %v278
      %v698 = vunpack.c.h.b16 %v278
      %v699 = vunpack.c.l.b16 %v279
      %v700 = vunpack.c.l.b16 %v280
      %v701 = vunpack.c.h.b16 %v280
      %v702 = vunpack.c.l.b16 %v281
      %v703 = vunpack.c.h.b16 %v281
      %v704 = vunpack.c.l.b16 %v282
      %v705 = vunpack.c.h.b16 %v282
      %v706 = vunpack.c.l.b16 %v283
      %v707 = vunpack.c.l.b16 %v284
      %v708 = vunpack.c.h.b16 %v284
      %v709 = vunpack.c.l.b16 %v285
      %v710 = vunpack.c.h.b16 %v285
      %v711 = vunpack.c.l.b16 %v286
      %v712 = vunpack.c.h.b16 %v286
      %v713 = vunpack.c.l.b16 %v287
      %v714 = vunpack.c.l.b16 %v288
      %v715 = vunpack.c.h.b16 %v288
      %v716 = vunpack.c.l.b16 %v289
      %v717 = vunpack.c.h.b16 %v289
      %v718 = vunpack.c.l.b16 %v290
      %v719 = vunpack.c.h.b16 %v290
      %v720 = vunpack.c.l.b16 %v291
      %v721 = vunpack.c.l.b16 %v292
      %v722 = vunpack.c.h.b16 %v292
      %v723 = vunpack.c.l.b16 %v293
      %v724 = vunpack.c.h.b16 %v293
      %v725 = vunpack.c.l.b16 %v294
      %v726 = vunpack.c.h.b16 %v294
      %v727 = vunpack.c.l.b16 %v295
      %v728 = vunpack.c.l.b16 %v296
      %v729 = vunpack.c.h.b16 %v296
      %v730 = vunpack.c.l.b16 %v297
      %v731 = vunpack.c.h.b16 %v297
      %v732 = vunpack.c.l.b16 %v298
      %v733 = vunpack.c.h.b16 %v298
      %v734 = vunpack.c.l.b16 %v299
      %v735 = vunpack.c.l.b16 %v300
      %v736 = vunpack.c.h.b16 %v300
      %v737 = vunpack.c.l.b16 %v301
      %v738 = vunpack.c.h.b16 %v301
      %v739 = vunpack.c.l.b16 %v302
      %v740 = vunpack.c.h.b16 %v302
      %v741 = vunpack.c.l.b16 %v303
      %v742 = vunpack.c.l.b16 %v304
      %v743 = vunpack.c.h.b16 %v304
      %v744 = vunpack.c.l.b16 %v305
      %v745 = vunpack.c.h.b16 %v305
      %v746 = vunpack.c.l.b16 %v306
      %v747 = vunpack.c.h.b16 %v306
      %v748 = vunpack.c.l.b16 %v307
      %v749 = vunpack.c.l.b16 %v308
      %v750 = vunpack.c.h.b16 %v308
      %v751 = vunpack.c.l.b16 %v309
      %v752 = vunpack.c.h.b16 %v309
      %v753 = vunpack.c.l.b16 %v310
      %v754 = vunpack.c.h.b16 %v310
      %v755 = vunpack.c.l.b16 %v311
      %v756 = vunpack.c.l.b16 %v312
      %v757 = vunpack.c.h.b16 %v312
      %v758 = vunpack.c.l.b16 %v313
      %v759 = vunpack.c.h.b16 %v313
      %v760 = vunpack.c.l.b16 %v314
      %v761 = vunpack.c.h.b16 %v314
      %v762 = vunpack.c.l.b16 %v315
      %v763 = vunpack.c.l.b16 %v316
      %v764 = vunpack.c.h.b16 %v316
      %v765 = vunpack.c.l.b16 %v317
      %v766 = vunpack.c.h.b16 %v317
      %v767 = vunpack.c.l.b16 %v318
      %v768 = vunpack.c.h.b16 %v318
      %v769 = vunpack.c.l.b16 %v319
      %v770 = vpack.c.b16 %v553, %v546
      %v771 = vpack.c.b16 %v554, %v547
      %v772 = vpack.c.b16 %v555, %v548
      %v773 = vpack.c.b16 %v556, %v549
      %v774 = vpack.c.b16 %v557, %v550
      %v775 = vpack.c.b16 %v558, %v551
      %v776 = vpack.c.b16 %v559, %v552
      %v777 = vpack.c.b16 %v567, %v560
      %v778 = vpack.c.b16 %v568, %v561
      %v779 = vpack.c.b16 %v569, %v562
      %v780 = vpack.c.b16 %v570, %v563
      %v781 = vpack.c.b16 %v571, %v564
      %v782 = vpack.c.b16 %v572, %v565
      %v783 = vpack.c.b16 %v573, %v566
      %v784 = vpack.c.b16 %v581, %v574
      %v785 = vpack.c.b16 %v582, %v575
      %v786 = vpack.c.b16 %v583, %v576
      %v787 = vpack.c.b16 %v584, %v577
      %v788 = vpack.c.b16 %v585, %v578
      %v789 = vpack.c.b16 %v586, %v579
      %v790 = vpack.c.b16 %v587, %v580
      %v791 = vpack.c.b16 %v595, %v588
      %v792 = vpack.c.b16 %v596, %v589
      %v793 = vpack.c.b16 %v597, %v590
      %v794 = vpack.c.b16 %v598, %v591
      %v795 = vpack.c.b16 %v599, %v592
      %v796 = vpack.c.b16 %v600, %v593
      %v797 = vpack.c.b16 %v601, %v594
      %v798 = vpack.c.b16 %v609, %v602
      %v799 = vpack.c.b16 %v610, %v603
      %v800 = vpack.c.b16 %v611, %v604
      %v801 = vpack.c.b16 %v612, %v605
      %v802 = vpack.c.b16 %v613, %v606
      %v803 = vpack.c.b16 %v614, %v607
      %v804 = vpack.c.b16 %v615, %v608
      %v805 = vpack.c.b16 %v623, %v616
      %v806 = vpack.c.b16 %v624, %v617
      %v807 = vpack.c.b16 %v625, %v618
      %v808 = vpack.c.b16 %v626, %v619
      %v809 = vpack.c.b16 %v627, %v620
      %v810 = vpack.c.b16 %v628, %v621
      %v811 = vpack.c.b16 %v629, %v622
      %v812 = vpack.c.b16 %v637, %v630
      %v813 = vpack.c.b16 %v638, %v631
      %v814 = vpack.c.b16 %v639, %v632
      %v815 = vpack.c.b16 %v640, %v633
      %v816 = vpack.c.b16 %v641, %v634
      %v817 = vpack.c.b16 %v642, %v635
      %v818 = vpack.c.b16 %v643, %v636
      %v819 = vpack.c.b16 %v651, %v644
      %v820 = vpack.c.b16 %v652, %v645
      %v821 = vpack.c.b16 %v653, %v646
      %v822 = vpack.c.b16 %v654, %v647
      %v823 = vpack.c.b16 %v655, %v648
      %v824 = vpack.c.b16 %v656, %v649
      %v825 = vpack.c.b16 %v657, %v650
      %v826 = vpack.c.b16 %v665, %v658
      %v827 = vpack.c.b16 %v666, %v659
      %v828 = vpack.c.b16 %v667, %v660
      %v829 = vpack.c.b16 %v668, %v661
      %v830 = vpack.c.b16 %v669, %v662
      %v831 = vpack.c.b16 %v670, %v663
      %v832 = vpack.c.b16 %v671, %v664
      %v833 = vpack.c.b16 %v679, %v672
      %v834 = vpack.c.b16 %v680, %v673
      %v835 = vpack.c.b16 %v681, %v674
      %v836 = vpack.c.b16 %v682, %v675
      %v837 = vpack.c.b16 %v683, %v676
      %v838 = vpack.c.b16 %v684, %v677
      %v839 = vpack.c.b16 %v685, %v678
      %v840 = vpack.c.b16 %v693, %v686
      %v841 = vpack.c.b16 %v694, %v687
      %v842 = vpack.c.b16 %v695, %v688
      %v843 = vpack.c.b16 %v696, %v689
      %v844 = vpack.c.b16 %v697, %v690
      %v845 = vpack.c.b16 %v698, %v691
      %v846 = vpack.c.b16 %v699, %v692
      %v847 = vpack.c.b16 %v707, %v700
      %v848 = vpack.c.b16 %v708, %v701
      %v849 = vpack.c.b16 %v709, %v702
      %v850 = vpack.c.b16 %v710, %v703
      %v851 = vpack.c.b16 %v711, %v704
      %v852 = vpack.c.b16 %v712, %v705
      %v853 = vpack.c.b16 %v713, %v706
      %v854 = vpack.c.b16 %v721, %v714
      %v855 = vpack.c.b16 %v722, %v715
      %v856 = vpack.c.b16 %v723, %v716
      %v857 = vpack.c.b16 %v724, %v717
      %v858 = vpack.c.b16 %v725, %v718
      %v859 = vpack.c.b16 %v726, %v719
      %v860 = vpack.c.b16 %v727, %v720
      %v861 = vpack.c.b16 %v735, %v728
      %v862 = vpack.c.b16 %v736, %v729
      %v863 = vpack.c.b16 %v737, %v730
      %v864 = vpack.c.b16 %v738, %v731
      %v865 = vpack.c.b16 %v739, %v732
      %v866 = vpack.c.b16 %v740, %v733
      %v867 = vpack.c.b16 %v741, %v734
      %v868 = vpack.c.b16 %v749, %v742
      %v869 = vpack.c.b16 %v750, %v743
      %v870 = vpack.c.b16 %v751, %v744
      %v871 = vpack.c.b16 %v752, %v745
      %v872 = vpack.c.b16 %v753, %v746
      %v873 = vpack.c.b16 %v754, %v747
      %v874 = vpack.c.b16 %v755, %v748
      %v875 = vpack.c.b16 %v763, %v756
      %v876 = vpack.c.b16 %v764, %v757
      %v877 = vpack.c.b16 %v765, %v758
      %v878 = vpack.c.b16 %v766, %v759
      %v879 = vpack.c.b16 %v767, %v760
      %v880 = vpack.c.b16 %v768, %v761
      %v881 = vpack.c.b16 %v769, %v762
      %v1076 = vunpack.c.l.b16 %v320
      %v1077 = vunpack.c.l.b16 %v321
      %v1078 = vunpack.c.l.b16 %v322
      %v1079 = vunpack.c.l.b16 %v323
      %v1080 = vunpack.c.l.b16 %v324
      %v1081 = vunpack.c.l.b16 %v325
      %v1082 = vunpack.c.l.b16 %v326
      %v1083 = vunpack.c.l.b16 %v327
      %v1084 = vunpack.c.l.b16 %v328
      %v1085 = vunpack.c.l.b16 %v329
      %v1086 = vunpack.c.l.b16 %v330
      %v1087 = vunpack.c.l.b16 %v331
      %v1088 = vunpack.c.l.b16 %v332
      %v1089 = vunpack.c.l.b16 %v333
      %v1090 = vunpack.c.l.b16 %v334
      %v1091 = vunpack.c.l.b16 %v335
      %v1092 = vunpack.c.l.b16 %v336
      %v1093 = vunpack.c.l.b16 %v337
      %v1094 = vunpack.c.l.b16 %v338
      %v1095 = vunpack.c.l.b16 %v339
      %v1096 = vunpack.c.l.b16 %v340
      %v1097 = vunpack.c.l.b16 %v341
      %v1098 = vunpack.c.l.b16 %v342
      %v1099 = vunpack.c.l.b16 %v343
      %v1100 = vunpack.c.l.b16 %v344
      %v1101 = vunpack.c.l.b16 %v345
      %v1102 = vunpack.c.l.b16 %v346
      %v1103 = vunpack.c.l.b16 %v347
      %v1104 = vunpack.c.l.b16 %v348
      %v1105 = vunpack.c.l.b16 %v349
      %v1106 = vunpack.c.l.b16 %v350
      %v1107 = vunpack.c.l.b16 %v351
      %v1108 = vunpack.c.l.b16 %v352
      %v1109 = vunpack.c.l.b16 %v353
      %v1110 = vunpack.c.l.b16 %v354
      %v1111 = vunpack.c.l.b16 %v355
      %v1112 = vunpack.c.l.b16 %v356
      %v1113 = vunpack.c.l.b16 %v357
      %v1114 = vunpack.c.l.b16 %v358
      %v1115 = vunpack.c.l.b16 %v359
      %v1116 = vunpack.c.l.b16 %v360
      %v1117 = vunpack.c.l.b16 %v361
      %v1118 = vunpack.c.l.b16 %v362
      %v1119 = vunpack.c.l.b16 %v363
      %v1120 = vunpack.c.l.b16 %v364
      %v1121 = vunpack.c.l.b16 %v365
      %v1122 = vunpack.c.l.b16 %v366
      %v1123 = vunpack.c.l.b16 %v367
      %v1124 = vunpack.c.l.b16 %v368
      %v1125 = vunpack.c.l.b16 %v369
      %v1126 = vunpack.c.l.b16 %v370
      %v1127 = vunpack.c.l.b16 %v371
      %v1128 = vunpack.c.l.b16 %v372
      %v1129 = vunpack.c.l.b16 %v373
      %v1130 = vunpack.c.l.b16 %v374
      %v1131 = vunpack.c.l.b16 %v375
      %v1132 = vunpack.c.l.b16 %v376
      %v1133 = vunpack.c.l.b16 %v377
      %v1134 = vunpack.c.l.b16 %v378
      %v1135 = vunpack.c.l.b16 %v379
      %v1136 = vunpack.c.l.b16 %v380
      %v1137 = vunpack.c.l.b16 %v381
      %v1138 = vunpack.c.l.b16 %v382
      %v1139 = vunpack.c.l.b16 %v383
      %v1140 = vunpack.c.l.b16 %v384
      %v1141 = vunpack.c.l.b16 %v385
      %v1142 = vunpack.c.l.b16 %v386
      %v1143 = vunpack.c.l.b16 %v387
      %v1144 = vunpack.c.l.b16 %v388
      %v1145 = vunpack.c.l.b16 %v389
      %v1146 = vunpack.c.l.b16 %v390
      %v1147 = vunpack.c.l.b16 %v391
      %v1148 = vunpack.c.l.b16 %v392
      %v1149 = vunpack.c.l.b16 %v393
      %v1150 = vunpack.c.l.b16 %v394
      %v1151 = vunpack.c.l.b16 %v395
      %v1152 = vunpack.c.l.b16 %v396
      %v1153 = vunpack.c.l.b16 %v397
      %v1154 = vunpack.c.l.b16 %v398
      %v1155 = vunpack.c.l.b16 %v399
      %v1156 = vunpack.c.l.b16 %v400
      %v1157 = vunpack.c.l.b16 %v401
      %v1158 = vunpack.c.l.b16 %v402
      %v1159 = vunpack.c.l.b16 %v403
      %v1160 = vunpack.c.l.b16 %v404
      %v1161 = vunpack.c.l.b16 %v405
      %v1162 = vunpack.c.l.b16 %v406
      %v1163 = vunpack.c.l.b16 %v407
      %v1164 = vunpack.c.l.b16 %v408
      %v1165 = vunpack.c.l.b16 %v409
      %v1166 = vunpack.c.l.b16 %v410
      %v1167 = vunpack.c.l.b16 %v411
      %v1168 = vunpack.c.l.b16 %v412
      %v1169 = vunpack.c.l.b16 %v413
      %v1170 = vunpack.c.l.b16 %v414
      %v1171 = vunpack.c.l.b16 %v415
      %v1172 = vunpack.c.l.b16 %v416
      %v1173 = vunpack.c.l.b16 %v417
      %v1174 = vpack.c.b16 %v1077, %v1076
      %v1175 = vpack.c.b16 %v1079, %v1078
      %v1176 = vpack.c.b16 %v1081, %v1080
      %v1177 = vpack.c.b16 %v1083, %v1082
      %v1178 = vpack.c.b16 %v1085, %v1084
      %v1179 = vpack.c.b16 %v1087, %v1086
      %v1180 = vpack.c.b16 %v1089, %v1088
      %v1181 = vpack.c.b16 %v1091, %v1090
      %v1182 = vpack.c.b16 %v1093, %v1092
      %v1183 = vpack.c.b16 %v1095, %v1094
      %v1184 = vpack.c.b16 %v1097, %v1096
      %v1185 = vpack.c.b16 %v1099, %v1098
      %v1186 = vpack.c.b16 %v1101, %v1100
      %v1187 = vpack.c.b16 %v1103, %v1102
      %v1188 = vpack.c.b16 %v1105, %v1104
      %v1189 = vpack.c.b16 %v1107, %v1106
      %v1190 = vpack.c.b16 %v1109, %v1108
      %v1191 = vpack.c.b16 %v1111, %v1110
      %v1192 = vpack.c.b16 %v1113, %v1112
      %v1193 = vpack.c.b16 %v1115, %v1114
      %v1194 = vpack.c.b16 %v1117, %v1116
      %v1195 = vpack.c.b16 %v1119, %v1118
      %v1196 = vpack.c.b16 %v1121, %v1120
      %v1197 = vpack.c.b16 %v1123, %v1122
      %v1198 = vpack.c.b16 %v1125, %v1124
      %v1199 = vpack.c.b16 %v1127, %v1126
      %v1200 = vpack.c.b16 %v1129, %v1128
      %v1201 = vpack.c.b16 %v1131, %v1130
      %v1202 = vpack.c.b16 %v1133, %v1132
      %v1203 = vpack.c.b16 %v1135, %v1134
      %v1204 = vpack.c.b16 %v1137, %v1136
      %v1205 = vpack.c.b16 %v1139, %v1138
      %v1206 = vpack.c.b16 %v1141, %v1140
      %v1207 = vpack.c.b16 %v1143, %v1142
      %v1208 = vpack.c.b16 %v1145, %v1144
      %v1209 = vpack.c.b16 %v1147, %v1146
      %v1210 = vpack.c.b16 %v1149, %v1148
      %v1211 = vpack.c.b16 %v1151, %v1150
      %v1212 = vpack.c.b16 %v1153, %v1152
      %v1213 = vpack.c.b16 %v1155, %v1154
      %v1214 = vpack.c.b16 %v1157, %v1156
      %v1215 = vpack.c.b16 %v1159, %v1158
      %v1216 = vpack.c.b16 %v1161, %v1160
      %v1217 = vpack.c.b16 %v1163, %v1162
      %v1218 = vpack.c.b16 %v1165, %v1164
      %v1219 = vpack.c.b16 %v1167, %v1166
      %v1220 = vpack.c.b16 %v1169, %v1168
      %v1221 = vpack.c.b16 %v1171, %v1170
      %v1222 = vpack.c.b16 %v1173, %v1172
      %vm1272 = vcmask 130048
      %v1274 = vsel %vm1272, %v776, 0
      %v1277 = vsel %vm1272, %v783, 0
      %v1280 = vsel %vm1272, %v790, 0
      %v1283 = vsel %vm1272, %v797, 0
      %v1286 = vsel %vm1272, %v804, 0
      %v1289 = vsel %vm1272, %v811, 0
      %v1292 = vsel %vm1272, %v818, 0
      %v1295 = vsel %vm1272, %v825, 0
      %v1298 = vsel %vm1272, %v832, 0
      %v1301 = vsel %vm1272, %v839, 0
      %v1304 = vsel %vm1272, %v846, 0
      %v1307 = vsel %vm1272, %v853, 0
      %v1310 = vsel %vm1272, %v860, 0
      %v1313 = vsel %vm1272, %v867, 0
      %v1316 = vsel %vm1272, %v874, 0
      %v1319 = vsel %vm1272, %v881, 0
      %1321 = vmatprep.subr.bf16.mxu0 0
      %1322 = vmatpush1.bf16.msra.mxu0 %v1174
      %1323 = vmatprep.subr.bf16.mxu0 0
      %1324 = vmatpush1.bf16.msra.mxu0 %v1175
      %1325 = vmatprep.subr.bf16.mxu0 0
      %1326 = vmatpush1.bf16.msra.mxu0 %v1176
      %1327 = vmatprep.subr.bf16.mxu0 0
      %1328 = vmatpush1.bf16.msra.mxu0 %v1177
      %1329 = vmatprep.subr.bf16.mxu0 0
      %1330 = vmatpush1.bf16.msra.mxu0 %v1178
      %1331 = vmatprep.subr.bf16.mxu0 0
      %1332 = vmatpush1.bf16.msra.mxu0 %v1179
      %1333 = vmatprep.subr.bf16.mxu0 0
      %1334 = vmatpush1.bf16.msra.mxu0 %v1180
      %1335 = vmatprep.subr.bf16.mxu0 0
      %1336 = vmatpush1.bf16.msra.mxu0 %v1181
      %1337 = vmatprep.subr.bf16.mxu0 0
      %1338 = vmatpush1.bf16.msra.mxu0 %v1182
      %1339 = vmatprep.subr.bf16.mxu0 0
      %1340 = vmatpush1.bf16.msra.mxu0 %v1183
      %1341 = vmatprep.subr.bf16.mxu0 0
      %1342 = vmatpush1.bf16.msra.mxu0 %v1184
      %1343 = vmatprep.subr.bf16.mxu0 0
      %1344 = vmatpush1.bf16.msra.mxu0 %v1185
      %1345 = vmatprep.subr.bf16.mxu0 0
      %1346 = vmatpush1.bf16.msra.mxu0 %v1186
      %1347 = vmatprep.subr.bf16.mxu0 0
      %1348 = vmatpush1.bf16.msra.mxu0 %v1187
      %1349 = vmatprep.subr.bf16.mxu0 0
      %1350 = vmatpush1.bf16.msra.mxu0 %v1188
      %1351 = vmatprep.subr.bf16.mxu0 0
      %1352 = vmatpush1.bf16.msra.mxu0 %v1189
      %1353 = vmatprep.mubr.bf16.mxu0 %v771
      %1354 = vmatmul.mubr.bf16.gmra.mrb[0].mxu0 %v770
      %v1355 = vpop.f32.mrb[0].mxu0
      %v1356 = vadd.f32 0.0, %v1355
      %v1357 = vpop.f32.mrb[0].mxu0
      %v1358 = vpop.f32.mrb[0].mxu0
      %v1359 = vadd.f32 0.0, %v1358
      %v1360 = vpop.f32.mrb[0].mxu0
      %1361 = vmatprep.mubr.bf16.mxu0 %v778
      %1362 = vmatmul.mubr.bf16.gmra.mrb[0].mxu0 %v777
      %v1363 = vpop.f32.mrb[0].mxu0
      %v1364 = vadd.f32 0.0, %v1363
      %v1365 = vpop.f32.mrb[0].mxu0
      %v1366 = vpop.f32.mrb[0].mxu0
      %v1367 = vadd.f32 0.0, %v1366
      %v1368 = vpop.f32.mrb[0].mxu0
      %1369 = vmatprep.mubr.bf16.mxu0 %v785
      %1370 = vmatmul.mubr.bf16.gmra.mrb[0].mxu0 %v784
      %v1371 = vpop.f32.mrb[0].mxu0
      %v1372 = vadd.f32 0.0, %v1371
      %v1373 = vpop.f32.mrb[0].mxu0
      %v1374 = vpop.f32.mrb[0].mxu0
      %v1375 = vadd.f32 0.0, %v1374
      %v1376 = vpop.f32.mrb[0].mxu0
      %1377 = vmatprep.mubr.bf16.mxu0 %v792
      %1378 = vmatmul.mubr.bf16.gmra.mrb[0].mxu0 %v791
      %v1379 = vpop.f32.mrb[0].mxu0
      %v1380 = vadd.f32 0.0, %v1379
      %v1381 = vpop.f32.mrb[0].mxu0
      %v1382 = vpop.f32.mrb[0].mxu0
      %v1383 = vadd.f32 0.0, %v1382
      %v1384 = vpop.f32.mrb[0].mxu0
      %1385 = vmatprep.mubr.bf16.mxu0 %v799
      %1386 = vmatmul.mubr.bf16.gmra.mrb[0].mxu0 %v798
      %v1387 = vpop.f32.mrb[0].mxu0
      %v1388 = vadd.f32 0.0, %v1387
      %v1389 = vpop.f32.mrb[0].mxu0
      %v1390 = vpop.f32.mrb[0].mxu0
      %v1391 = vadd.f32 0.0, %v1390
      %v1392 = vpop.f32.mrb[0].mxu0
      %1393 = vmatprep.mubr.bf16.mxu0 %v806
      %1394 = vmatmul.mubr.bf16.gmra.mrb[0].mxu0 %v805
      %v1395 = vpop.f32.mrb[0].mxu0
      %v1396 = vadd.f32 0.0, %v1395
      %v1397 = vpop.f32.mrb[0].mxu0
      %v1398 = vpop.f32.mrb[0].mxu0
      %v1399 = vadd.f32 0.0, %v1398
      %v1400 = vpop.f32.mrb[0].mxu0
      %1401 = vmatprep.mubr.bf16.mxu0 %v813
      %1402 = vmatmul.mubr.bf16.gmra.mrb[0].mxu0 %v812
      %v1403 = vpop.f32.mrb[0].mxu0
      %v1404 = vadd.f32 0.0, %v1403
      %v1405 = vpop.f32.mrb[0].mxu0
      %v1406 = vpop.f32.mrb[0].mxu0
      %v1407 = vadd.f32 0.0, %v1406
      %v1408 = vpop.f32.mrb[0].mxu0
      %1409 = vmatprep.mubr.bf16.mxu0 %v820
      %1410 = vmatmul.mubr.bf16.gmra.mrb[0].mxu0 %v819
      %v1411 = vpop.f32.mrb[0].mxu0
      %v1412 = vadd.f32 0.0, %v1411
      %v1413 = vpop.f32.mrb[0].mxu0
      %v1414 = vpop.f32.mrb[0].mxu0
      %v1415 = vadd.f32 0.0, %v1414
      %v1416 = vpop.f32.mrb[0].mxu0
      %1417 = vmatprep.mubr.bf16.mxu0 %v827
      %1418 = vmatmul.mubr.bf16.gmra.mrb[0].mxu0 %v826
      %v1419 = vpop.f32.mrb[0].mxu0
      %v1420 = vadd.f32 0.0, %v1419
      %v1421 = vpop.f32.mrb[0].mxu0
      %v1422 = vpop.f32.mrb[0].mxu0
      %v1423 = vadd.f32 0.0, %v1422
      %v1424 = vpop.f32.mrb[0].mxu0
      %1425 = vmatprep.mubr.bf16.mxu0 %v834
      %1426 = vmatmul.mubr.bf16.gmra.mrb[0].mxu0 %v833
      %v1427 = vpop.f32.mrb[0].mxu0
      %v1428 = vadd.f32 0.0, %v1427
      %v1429 = vpop.f32.mrb[0].mxu0
      %v1430 = vpop.f32.mrb[0].mxu0
      %v1431 = vadd.f32 0.0, %v1430
      %v1432 = vpop.f32.mrb[0].mxu0
      %1433 = vmatprep.mubr.bf16.mxu0 %v841
      %1434 = vmatmul.mubr.bf16.gmra.mrb[0].mxu0 %v840
      %v1435 = vpop.f32.mrb[0].mxu0
      %v1436 = vadd.f32 0.0, %v1435
      %v1437 = vpop.f32.mrb[0].mxu0
      %v1438 = vpop.f32.mrb[0].mxu0
      %v1439 = vadd.f32 0.0, %v1438
      %v1440 = vpop.f32.mrb[0].mxu0
      %1441 = vmatprep.mubr.bf16.mxu0 %v848
      %1442 = vmatmul.mubr.bf16.gmra.mrb[0].mxu0 %v847
      %v1443 = vpop.f32.mrb[0].mxu0
      %v1444 = vadd.f32 0.0, %v1443
      %v1445 = vpop.f32.mrb[0].mxu0
      %v1446 = vpop.f32.mrb[0].mxu0
      %v1447 = vadd.f32 0.0, %v1446
      %v1448 = vpop.f32.mrb[0].mxu0
      %1449 = vmatprep.mubr.bf16.mxu0 %v855
      %1450 = vmatmul.mubr.bf16.gmra.mrb[0].mxu0 %v854
      %v1451 = vpop.f32.mrb[0].mxu0
      %v1452 = vadd.f32 0.0, %v1451
      %v1453 = vpop.f32.mrb[0].mxu0
      %v1454 = vpop.f32.mrb[0].mxu0
      %v1455 = vadd.f32 0.0, %v1454
      %v1456 = vpop.f32.mrb[0].mxu0
      %1457 = vmatprep.mubr.bf16.mxu0 %v862
      %1458 = vmatmul.mubr.bf16.gmra.mrb[0].mxu0 %v861
      %v1459 = vpop.f32.mrb[0].mxu0
      %v1460 = vadd.f32 0.0, %v1459
      %v1461 = vpop.f32.mrb[0].mxu0
      %v1462 = vpop.f32.mrb[0].mxu0
      %v1463 = vadd.f32 0.0, %v1462
      %v1464 = vpop.f32.mrb[0].mxu0
      %1465 = vmatprep.mubr.bf16.mxu0 %v869
      %1466 = vmatmul.mubr.bf16.gmra.mrb[0].mxu0 %v868
      %v1467 = vpop.f32.mrb[0].mxu0
      %v1468 = vadd.f32 0.0, %v1467
      %v1469 = vpop.f32.mrb[0].mxu0
      %v1470 = vpop.f32.mrb[0].mxu0
      %v1471 = vadd.f32 0.0, %v1470
      %v1472 = vpop.f32.mrb[0].mxu0
      %1473 = vmatprep.mubr.bf16.mxu0 %v876
      %1474 = vmatmul.mubr.bf16.gmra.mrb[0].mxu0 %v875
      %v1475 = vpop.f32.mrb[0].mxu0
      %v1476 = vadd.f32 0.0, %v1475
      %v1477 = vpop.f32.mrb[0].mxu0
      %v1478 = vpop.f32.mrb[0].mxu0
      %v1479 = vadd.f32 0.0, %v1478
      %v1480 = vpop.f32.mrb[0].mxu0
      %1481 = vdwg.mxu0
      %1482 = vmatprep.subr.bf16.mxu0 0
      %1483 = vmatpush1.bf16.msra.mxu0 %v1190
      %1484 = vmatprep.subr.bf16.mxu0 0
      %1485 = vmatpush1.bf16.msra.mxu0 %v1191
      %1486 = vmatprep.subr.bf16.mxu0 0
      %1487 = vmatpush1.bf16.msra.mxu0 %v1192
      %1488 = vmatprep.subr.bf16.mxu0 0
      %1489 = vmatpush1.bf16.msra.mxu0 %v1193
      %1490 = vmatprep.subr.bf16.mxu0 0
      %1491 = vmatpush1.bf16.msra.mxu0 %v1194
      %1492 = vmatprep.subr.bf16.mxu0 0
      %1493 = vmatpush1.bf16.msra.mxu0 %v1195
      %1494 = vmatprep.subr.bf16.mxu0 0
      %1495 = vmatpush1.bf16.msra.mxu0 %v1196
      %1496 = vmatprep.subr.bf16.mxu0 0
      %1497 = vmatpush1.bf16.msra.mxu0 %v1197
      %1498 = vmatprep.subr.bf16.mxu0 0
      %1499 = vmatpush1.bf16.msra.mxu0 %v1198
      %1500 = vmatprep.subr.bf16.mxu0 0
      %1501 = vmatpush1.bf16.msra.mxu0 %v1199
      %1502 = vmatprep.subr.bf16.mxu0 0
      %1503 = vmatpush1.bf16.msra.mxu0 %v1200
      %1504 = vmatprep.subr.bf16.mxu0 0
      %1505 = vmatpush1.bf16.msra.mxu0 %v1201
      %1506 = vmatprep.subr.bf16.mxu0 0
      %1507 = vmatpush1.bf16.msra.mxu0 %v1202
      %1508 = vmatprep.subr.bf16.mxu0 0
      %1509 = vmatpush1.bf16.msra.mxu0 %v1203
      %1510 = vmatprep.subr.bf16.mxu0 0
      %1511 = vmatpush1.bf16.msra.mxu0 %v1204
      %1512 = vmatprep.subr.bf16.mxu0 0
      %1513 = vmatpush1.bf16.msra.mxu0 %v1205
      %1514 = vmatprep.mubr.bf16.mxu0 %v773
      %1515 = vmatmul.mubr.bf16.gmra.mrb[0].mxu0 %v772
      %v1516 = vpop.f32.mrb[0].mxu0
      %v1517 = vadd.f32 %v1356, %v1516
      %v1518 = vpop.f32.mrb[0].mxu0
      %v1519 = vpop.f32.mrb[0].mxu0
      %v1520 = vadd.f32 %v1359, %v1519
      %v1521 = vpop.f32.mrb[0].mxu0
      %1522 = vmatprep.mubr.bf16.mxu0 %v780
      %1523 = vmatmul.mubr.bf16.gmra.mrb[0].mxu0 %v779
      %v1524 = vpop.f32.mrb[0].mxu0
      %v1525 = vadd.f32 %v1364, %v1524
      %v1526 = vpop.f32.mrb[0].mxu0
      %v1527 = vpop.f32.mrb[0].mxu0
      %v1528 = vadd.f32 %v1367, %v1527
      %v1529 = vpop.f32.mrb[0].mxu0
      %1530 = vmatprep.mubr.bf16.mxu0 %v787
      %1531 = vmatmul.mubr.bf16.gmra.mrb[0].mxu0 %v786
      %v1532 = vpop.f32.mrb[0].mxu0
      %v1533 = vadd.f32 %v1372, %v1532
      %v1534 = vpop.f32.mrb[0].mxu0
      %v1535 = vpop.f32.mrb[0].mxu0
      %v1536 = vadd.f32 %v1375, %v1535
      %v1537 = vpop.f32.mrb[0].mxu0
      %1538 = vmatprep.mubr.bf16.mxu0 %v794
      %1539 = vmatmul.mubr.bf16.gmra.mrb[0].mxu0 %v793
      %v1540 = vpop.f32.mrb[0].mxu0
      %v1541 = vadd.f32 %v1380, %v1540
      %v1542 = vpop.f32.mrb[0].mxu0
      %v1543 = vpop.f32.mrb[0].mxu0
      %v1544 = vadd.f32 %v1383, %v1543
      %v1545 = vpop.f32.mrb[0].mxu0
      %1546 = vmatprep.mubr.bf16.mxu0 %v801
      %1547 = vmatmul.mubr.bf16.gmra.mrb[0].mxu0 %v800
      %v1548 = vpop.f32.mrb[0].mxu0
      %v1549 = vadd.f32 %v1388, %v1548
      %v1550 = vpop.f32.mrb[0].mxu0
      %v1551 = vpop.f32.mrb[0].mxu0
      %v1552 = vadd.f32 %v1391, %v1551
      %v1553 = vpop.f32.mrb[0].mxu0
      %1554 = vmatprep.mubr.bf16.mxu0 %v808
      %1555 = vmatmul.mubr.bf16.gmra.mrb[0].mxu0 %v807
      %v1556 = vpop.f32.mrb[0].mxu0
      %v1557 = vadd.f32 %v1396, %v1556
      %v1558 = vpop.f32.mrb[0].mxu0
      %v1559 = vpop.f32.mrb[0].mxu0
      %v1560 = vadd.f32 %v1399, %v1559
      %v1561 = vpop.f32.mrb[0].mxu0
      %1562 = vmatprep.mubr.bf16.mxu0 %v815
      %1563 = vmatmul.mubr.bf16.gmra.mrb[0].mxu0 %v814
      %v1564 = vpop.f32.mrb[0].mxu0
      %v1565 = vadd.f32 %v1404, %v1564
      %v1566 = vpop.f32.mrb[0].mxu0
      %v1567 = vpop.f32.mrb[0].mxu0
      %v1568 = vadd.f32 %v1407, %v1567
      %v1569 = vpop.f32.mrb[0].mxu0
      %1570 = vmatprep.mubr.bf16.mxu0 %v822
      %1571 = vmatmul.mubr.bf16.gmra.mrb[0].mxu0 %v821
      %v1572 = vpop.f32.mrb[0].mxu0
      %v1573 = vadd.f32 %v1412, %v1572
      %v1574 = vpop.f32.mrb[0].mxu0
      %v1575 = vpop.f32.mrb[0].mxu0
      %v1576 = vadd.f32 %v1415, %v1575
      %v1577 = vpop.f32.mrb[0].mxu0
      %1578 = vmatprep.mubr.bf16.mxu0 %v829
      %1579 = vmatmul.mubr.bf16.gmra.mrb[0].mxu0 %v828
      %v1580 = vpop.f32.mrb[0].mxu0
      %v1581 = vadd.f32 %v1420, %v1580
      %v1582 = vpop.f32.mrb[0].mxu0
      %v1583 = vpop.f32.mrb[0].mxu0
      %v1584 = vadd.f32 %v1423, %v1583
      %v1585 = vpop.f32.mrb[0].mxu0
      %1586 = vmatprep.mubr.bf16.mxu0 %v836
      %1587 = vmatmul.mubr.bf16.gmra.mrb[0].mxu0 %v835
      %v1588 = vpop.f32.mrb[0].mxu0
      %v1589 = vadd.f32 %v1428, %v1588
      %v1590 = vpop.f32.mrb[0].mxu0
      %v1591 = vpop.f32.mrb[0].mxu0
      %v1592 = vadd.f32 %v1431, %v1591
      %v1593 = vpop.f32.mrb[0].mxu0
      %1594 = vmatprep.mubr.bf16.mxu0 %v843
      %1595 = vmatmul.mubr.bf16.gmra.mrb[0].mxu0 %v842
      %v1596 = vpop.f32.mrb[0].mxu0
      %v1597 = vadd.f32 %v1436, %v1596
      %v1598 = vpop.f32.mrb[0].mxu0
      %v1599 = vpop.f32.mrb[0].mxu0
      %v1600 = vadd.f32 %v1439, %v1599
      %v1601 = vpop.f32.mrb[0].mxu0
      %1602 = vmatprep.mubr.bf16.mxu0 %v850
      %1603 = vmatmul.mubr.bf16.gmra.mrb[0].mxu0 %v849
      %v1604 = vpop.f32.mrb[0].mxu0
      %v1605 = vadd.f32 %v1444, %v1604
      %v1606 = vpop.f32.mrb[0].mxu0
      %v1607 = vpop.f32.mrb[0].mxu0
      %v1608 = vadd.f32 %v1447, %v1607
      %v1609 = vpop.f32.mrb[0].mxu0
      %1610 = vmatprep.mubr.bf16.mxu0 %v857
      %1611 = vmatmul.mubr.bf16.gmra.mrb[0].mxu0 %v856
      %v1612 = vpop.f32.mrb[0].mxu0
      %v1613 = vadd.f32 %v1452, %v1612
      %v1614 = vpop.f32.mrb[0].mxu0
      %v1615 = vpop.f32.mrb[0].mxu0
      %v1616 = vadd.f32 %v1455, %v1615
      %v1617 = vpop.f32.mrb[0].mxu0
      %1618 = vmatprep.mubr.bf16.mxu0 %v864
      %1619 = vmatmul.mubr.bf16.gmra.mrb[0].mxu0 %v863
      %v1620 = vpop.f32.mrb[0].mxu0
      %v1621 = vadd.f32 %v1460, %v1620
      %v1622 = vpop.f32.mrb[0].mxu0
      %v1623 = vpop.f32.mrb[0].mxu0
      %v1624 = vadd.f32 %v1463, %v1623
      %v1625 = vpop.f32.mrb[0].mxu0
      %1626 = vmatprep.mubr.bf16.mxu0 %v871
      %1627 = vmatmul.mubr.bf16.gmra.mrb[0].mxu0 %v870
      %v1628 = vpop.f32.mrb[0].mxu0
      %v1629 = vadd.f32 %v1468, %v1628
      %v1630 = vpop.f32.mrb[0].mxu0
      %v1631 = vpop.f32.mrb[0].mxu0
      %v1632 = vadd.f32 %v1471, %v1631
      %v1633 = vpop.f32.mrb[0].mxu0
      %1634 = vmatprep.mubr.bf16.mxu0 %v878
      %1635 = vmatmul.mubr.bf16.gmra.mrb[0].mxu0 %v877
      %v1636 = vpop.f32.mrb[0].mxu0
      %v1637 = vadd.f32 %v1476, %v1636
      %v1638 = vpop.f32.mrb[0].mxu0
      %v1639 = vpop.f32.mrb[0].mxu0
      %v1640 = vadd.f32 %v1479, %v1639
      %v1641 = vpop.f32.mrb[0].mxu0
      %1642 = vdwg.mxu0
      %1643 = vmatprep.subr.bf16.mxu0 0
      %1644 = vmatpush1.bf16.msra.mxu0 %v1206
      %1645 = vmatprep.subr.bf16.mxu0 0
      %1646 = vmatpush1.bf16.msra.mxu0 %v1207
      %1647 = vmatprep.subr.bf16.mxu0 0
      %1648 = vmatpush1.bf16.msra.mxu0 %v1208
      %1649 = vmatprep.subr.bf16.mxu0 0
      %1650 = vmatpush1.bf16.msra.mxu0 %v1209
      %1651 = vmatprep.subr.bf16.mxu0 0
      %1652 = vmatpush1.bf16.msra.mxu0 %v1210
      %1653 = vmatprep.subr.bf16.mxu0 0
      %1654 = vmatpush1.bf16.msra.mxu0 %v1211
      %1655 = vmatprep.subr.bf16.mxu0 0
      %1656 = vmatpush1.bf16.msra.mxu0 %v1212
      %1657 = vmatprep.subr.bf16.mxu0 0
      %1658 = vmatpush1.bf16.msra.mxu0 %v1213
      %1659 = vmatprep.subr.bf16.mxu0 0
      %1660 = vmatpush1.bf16.msra.mxu0 %v1214
      %1661 = vmatprep.subr.bf16.mxu0 0
      %1662 = vmatpush1.bf16.msra.mxu0 %v1215
      %1663 = vmatprep.subr.bf16.mxu0 0
      %1664 = vmatpush1.bf16.msra.mxu0 %v1216
      %1665 = vmatprep.subr.bf16.mxu0 0
      %1666 = vmatpush1.bf16.msra.mxu0 %v1217
      %1667 = vmatprep.subr.bf16.mxu0 0
      %1668 = vmatpush1.bf16.msra.mxu0 %v1218
      %1669 = vmatprep.subr.bf16.mxu0 0
      %1670 = vmatpush1.bf16.msra.mxu0 %v1219
      %1671 = vmatprep.subr.bf16.mxu0 0
      %1672 = vmatpush1.bf16.msra.mxu0 %v1220
      %1673 = vmatprep.subr.bf16.mxu0 0
      %1674 = vmatpush1.bf16.msra.mxu0 %v1221
      %1675 = vmatprep.mubr.bf16.mxu0 %v775
      %1676 = vmatmul.mubr.bf16.gmra.mrb[0].mxu0 %v774
      %v1677 = vpop.f32.mrb[0].mxu0
      %v1678 = vadd.f32 %v1517, %v1677
      %v1679 = vpop.f32.mrb[0].mxu0
      %v1680 = vpop.f32.mrb[0].mxu0
      %v1681 = vadd.f32 %v1520, %v1680
      %v1682 = vpop.f32.mrb[0].mxu0
      %1683 = vmatprep.mubr.bf16.mxu0 %v782
      %1684 = vmatmul.mubr.bf16.gmra.mrb[0].mxu0 %v781
      %v1685 = vpop.f32.mrb[0].mxu0
      %v1686 = vadd.f32 %v1525, %v1685
      %v1687 = vpop.f32.mrb[0].mxu0
      %v1688 = vpop.f32.mrb[0].mxu0
      %v1689 = vadd.f32 %v1528, %v1688
      %v1690 = vpop.f32.mrb[0].mxu0
      %1691 = vmatprep.mubr.bf16.mxu0 %v789
      %1692 = vmatmul.mubr.bf16.gmra.mrb[0].mxu0 %v788
      %v1693 = vpop.f32.mrb[0].mxu0
      %v1694 = vadd.f32 %v1533, %v1693
      %v1695 = vpop.f32.mrb[0].mxu0
      %v1696 = vpop.f32.mrb[0].mxu0
      %v1697 = vadd.f32 %v1536, %v1696
      %v1698 = vpop.f32.mrb[0].mxu0
      %1699 = vmatprep.mubr.bf16.mxu0 %v796
      %1700 = vmatmul.mubr.bf16.gmra.mrb[0].mxu0 %v795
      %v1701 = vpop.f32.mrb[0].mxu0
      %v1702 = vadd.f32 %v1541, %v1701
      %v1703 = vpop.f32.mrb[0].mxu0
      %v1704 = vpop.f32.mrb[0].mxu0
      %v1705 = vadd.f32 %v1544, %v1704
      %v1706 = vpop.f32.mrb[0].mxu0
      %1707 = vmatprep.mubr.bf16.mxu0 %v803
      %1708 = vmatmul.mubr.bf16.gmra.mrb[0].mxu0 %v802
      %v1709 = vpop.f32.mrb[0].mxu0
      %v1710 = vadd.f32 %v1549, %v1709
      %v1711 = vpop.f32.mrb[0].mxu0
      %v1712 = vpop.f32.mrb[0].mxu0
      %v1713 = vadd.f32 %v1552, %v1712
      %v1714 = vpop.f32.mrb[0].mxu0
      %1715 = vmatprep.mubr.bf16.mxu0 %v810
      %1716 = vmatmul.mubr.bf16.gmra.mrb[0].mxu0 %v809
      %v1717 = vpop.f32.mrb[0].mxu0
      %v1718 = vadd.f32 %v1557, %v1717
      %v1719 = vpop.f32.mrb[0].mxu0
      %v1720 = vpop.f32.mrb[0].mxu0
      %v1721 = vadd.f32 %v1560, %v1720
      %v1722 = vpop.f32.mrb[0].mxu0
      %1723 = vmatprep.mubr.bf16.mxu0 %v817
      %1724 = vmatmul.mubr.bf16.gmra.mrb[0].mxu0 %v816
      %v1725 = vpop.f32.mrb[0].mxu0
      %v1726 = vadd.f32 %v1565, %v1725
      %v1727 = vpop.f32.mrb[0].mxu0
      %v1728 = vpop.f32.mrb[0].mxu0
      %v1729 = vadd.f32 %v1568, %v1728
      %v1730 = vpop.f32.mrb[0].mxu0
      %1731 = vmatprep.mubr.bf16.mxu0 %v824
      %1732 = vmatmul.mubr.bf16.gmra.mrb[0].mxu0 %v823
      %v1733 = vpop.f32.mrb[0].mxu0
      %v1734 = vadd.f32 %v1573, %v1733
      %v1735 = vpop.f32.mrb[0].mxu0
      %v1736 = vpop.f32.mrb[0].mxu0
      %v1737 = vadd.f32 %v1576, %v1736
      %v1738 = vpop.f32.mrb[0].mxu0
      %1739 = vmatprep.mubr.bf16.mxu0 %v831
      %1740 = vmatmul.mubr.bf16.gmra.mrb[0].mxu0 %v830
      %v1741 = vpop.f32.mrb[0].mxu0
      %v1742 = vadd.f32 %v1581, %v1741
      %v1743 = vpop.f32.mrb[0].mxu0
      %v1744 = vpop.f32.mrb[0].mxu0
      %v1745 = vadd.f32 %v1584, %v1744
      %v1746 = vpop.f32.mrb[0].mxu0
      %1747 = vmatprep.mubr.bf16.mxu0 %v838
      %1748 = vmatmul.mubr.bf16.gmra.mrb[0].mxu0 %v837
      %v1749 = vpop.f32.mrb[0].mxu0
      %v1750 = vadd.f32 %v1589, %v1749
      %v1751 = vpop.f32.mrb[0].mxu0
      %v1752 = vpop.f32.mrb[0].mxu0
      %v1753 = vadd.f32 %v1592, %v1752
      %v1754 = vpop.f32.mrb[0].mxu0
      %1755 = vmatprep.mubr.bf16.mxu0 %v845
      %1756 = vmatmul.mubr.bf16.gmra.mrb[0].mxu0 %v844
      %v1757 = vpop.f32.mrb[0].mxu0
      %v1758 = vadd.f32 %v1597, %v1757
      %v1759 = vpop.f32.mrb[0].mxu0
      %v1760 = vpop.f32.mrb[0].mxu0
      %v1761 = vadd.f32 %v1600, %v1760
      %v1762 = vpop.f32.mrb[0].mxu0
      %1763 = vmatprep.mubr.bf16.mxu0 %v852
      %1764 = vmatmul.mubr.bf16.gmra.mrb[0].mxu0 %v851
      %v1765 = vpop.f32.mrb[0].mxu0
      %v1766 = vadd.f32 %v1605, %v1765
      %v1767 = vpop.f32.mrb[0].mxu0
      %v1768 = vpop.f32.mrb[0].mxu0
      %v1769 = vadd.f32 %v1608, %v1768
      %v1770 = vpop.f32.mrb[0].mxu0
      %1771 = vmatprep.mubr.bf16.mxu0 %v859
      %1772 = vmatmul.mubr.bf16.gmra.mrb[0].mxu0 %v858
      %v1773 = vpop.f32.mrb[0].mxu0
      %v1774 = vadd.f32 %v1613, %v1773
      %v1775 = vpop.f32.mrb[0].mxu0
      %v1776 = vpop.f32.mrb[0].mxu0
      %v1777 = vadd.f32 %v1616, %v1776
      %v1778 = vpop.f32.mrb[0].mxu0
      %1779 = vmatprep.mubr.bf16.mxu0 %v866
      %1780 = vmatmul.mubr.bf16.gmra.mrb[0].mxu0 %v865
      %v1781 = vpop.f32.mrb[0].mxu0
      %v1782 = vadd.f32 %v1621, %v1781
      %v1783 = vpop.f32.mrb[0].mxu0
      %v1784 = vpop.f32.mrb[0].mxu0
      %v1785 = vadd.f32 %v1624, %v1784
      %v1786 = vpop.f32.mrb[0].mxu0
      %1787 = vmatprep.mubr.bf16.mxu0 %v873
      %1788 = vmatmul.mubr.bf16.gmra.mrb[0].mxu0 %v872
      %v1789 = vpop.f32.mrb[0].mxu0
      %v1790 = vadd.f32 %v1629, %v1789
      %v1791 = vpop.f32.mrb[0].mxu0
      %v1792 = vpop.f32.mrb[0].mxu0
      %v1793 = vadd.f32 %v1632, %v1792
      %v1794 = vpop.f32.mrb[0].mxu0
      %1795 = vmatprep.mubr.bf16.mxu0 %v880
      %1796 = vmatmul.mubr.bf16.gmra.mrb[0].mxu0 %v879
      %v1797 = vpop.f32.mrb[0].mxu0
      %v1798 = vadd.f32 %v1637, %v1797
      %v1799 = vpop.f32.mrb[0].mxu0
      %v1800 = vpop.f32.mrb[0].mxu0
      %v1801 = vadd.f32 %v1640, %v1800
      %v1802 = vpop.f32.mrb[0].mxu0
      %1803 = vdwg.mxu0
      %1804 = vmatprep.subr.bf16.mxu0 0
      %1805 = vmatpush1.bf16.msra.mxu0 %v1222
      %1806 = vmatprep.subr.bf16.mxu0 0
      %1807 = vmatpush1.bf16.msra.mxu0 0
      %1808 = vmatprep.subr.bf16.mxu0 0
      %1809 = vmatpush1.bf16.msra.mxu0 0
      %1810 = vmatprep.subr.bf16.mxu0 0
      %1811 = vmatpush1.bf16.msra.mxu0 0
      %1812 = vmatprep.subr.bf16.mxu0 0
      %1813 = vmatpush1.bf16.msra.mxu0 0
      %1814 = vmatprep.subr.bf16.mxu0 0
      %1815 = vmatpush1.bf16.msra.mxu0 0
      %1816 = vmatprep.subr.bf16.mxu0 0
      %1817 = vmatpush1.bf16.msra.mxu0 0
      %1818 = vmatprep.subr.bf16.mxu0 0
      %1819 = vmatpush1.bf16.msra.mxu0 0
      %1820 = vmatprep.subr.bf16.mxu0 0
      %1821 = vmatpush1.bf16.msra.mxu0 0
      %1822 = vmatprep.subr.bf16.mxu0 0
      %1823 = vmatpush1.bf16.msra.mxu0 0
      %1824 = vmatprep.subr.bf16.mxu0 0
      %1825 = vmatpush1.bf16.msra.mxu0 0
      %1826 = vmatprep.subr.bf16.mxu0 0
      %1827 = vmatpush1.bf16.msra.mxu0 0
      %1828 = vmatprep.subr.bf16.mxu0 0
      %1829 = vmatpush1.bf16.msra.mxu0 0
      %1830 = vmatprep.subr.bf16.mxu0 0
      %1831 = vmatpush1.bf16.msra.mxu0 0
      %1832 = vmatprep.subr.bf16.mxu0 0
      %1833 = vmatpush1.bf16.msra.mxu0 0
      %1834 = vmatprep.subr.bf16.mxu0 0
      %1835 = vmatpush1.bf16.msra.mxu0 0
      %1836 = vmatprep.mubr.bf16.mxu0 0
      %1837 = vmatmul.mubr.bf16.gmra.mrb[0].mxu0 %v1274
      %v1838 = vpop.f32.mrb[0].mxu0
      %v1839 = vadd.f32 %v1678, %v1838
      %v1840 = vpop.f32.mrb[0].mxu0
      %v1841 = vpop.f32.mrb[0].mxu0
      %v1842 = vadd.f32 %v1681, %v1841
      %v1843 = vpop.f32.mrb[0].mxu0
      %1844 = vmatprep.mubr.bf16.mxu0 0
      %1845 = vmatmul.mubr.bf16.gmra.mrb[0].mxu0 %v1277
      %v1846 = vpop.f32.mrb[0].mxu0
      %v1847 = vadd.f32 %v1686, %v1846
      %v1848 = vpop.f32.mrb[0].mxu0
      %v1849 = vpop.f32.mrb[0].mxu0
      %v1850 = vadd.f32 %v1689, %v1849
      %v1851 = vpop.f32.mrb[0].mxu0
      %1852 = vmatprep.mubr.bf16.mxu0 0
      %1853 = vmatmul.mubr.bf16.gmra.mrb[0].mxu0 %v1280
      %v1854 = vpop.f32.mrb[0].mxu0
      %v1855 = vadd.f32 %v1694, %v1854
      %v1856 = vpop.f32.mrb[0].mxu0
      %v1857 = vpop.f32.mrb[0].mxu0
      %v1858 = vadd.f32 %v1697, %v1857
      %v1859 = vpop.f32.mrb[0].mxu0
      %1860 = vmatprep.mubr.bf16.mxu0 0
      %1861 = vmatmul.mubr.bf16.gmra.mrb[0].mxu0 %v1283
      %v1862 = vpop.f32.mrb[0].mxu0
      %v1863 = vadd.f32 %v1702, %v1862
      %v1864 = vpop.f32.mrb[0].mxu0
      %v1865 = vpop.f32.mrb[0].mxu0
      %v1866 = vadd.f32 %v1705, %v1865
      %v1867 = vpop.f32.mrb[0].mxu0
      %1868 = vmatprep.mubr.bf16.mxu0 0
      %1869 = vmatmul.mubr.bf16.gmra.mrb[0].mxu0 %v1286
      %v1870 = vpop.f32.mrb[0].mxu0
      %v1871 = vadd.f32 %v1710, %v1870
      %v1872 = vpop.f32.mrb[0].mxu0
      %v1873 = vpop.f32.mrb[0].mxu0
      %v1874 = vadd.f32 %v1713, %v1873
      %v1875 = vpop.f32.mrb[0].mxu0
      %1876 = vmatprep.mubr.bf16.mxu0 0
      %1877 = vmatmul.mubr.bf16.gmra.mrb[0].mxu0 %v1289
      %v1878 = vpop.f32.mrb[0].mxu0
      %v1879 = vadd.f32 %v1718, %v1878
      %v1880 = vpop.f32.mrb[0].mxu0
      %v1881 = vpop.f32.mrb[0].mxu0
      %v1882 = vadd.f32 %v1721, %v1881
      %v1883 = vpop.f32.mrb[0].mxu0
      %1884 = vmatprep.mubr.bf16.mxu0 0
      %1885 = vmatmul.mubr.bf16.gmra.mrb[0].mxu0 %v1292
      %v1886 = vpop.f32.mrb[0].mxu0
      %v1887 = vadd.f32 %v1726, %v1886
      %v1888 = vpop.f32.mrb[0].mxu0
      %v1889 = vpop.f32.mrb[0].mxu0
      %v1890 = vadd.f32 %v1729, %v1889
      %v1891 = vpop.f32.mrb[0].mxu0
      %1892 = vmatprep.mubr.bf16.mxu0 0
      %1893 = vmatmul.mubr.bf16.gmra.mrb[0].mxu0 %v1295
      %v1894 = vpop.f32.mrb[0].mxu0
      %v1895 = vadd.f32 %v1734, %v1894
      %v1896 = vpop.f32.mrb[0].mxu0
      %v1897 = vpop.f32.mrb[0].mxu0
      %v1898 = vadd.f32 %v1737, %v1897
      %v1899 = vpop.f32.mrb[0].mxu0
      %1900 = vmatprep.mubr.bf16.mxu0 0
      %1901 = vmatmul.mubr.bf16.gmra.mrb[0].mxu0 %v1298
      %v1902 = vpop.f32.mrb[0].mxu0
      %v1903 = vadd.f32 %v1742, %v1902
      %v1904 = vpop.f32.mrb[0].mxu0
      %v1905 = vpop.f32.mrb[0].mxu0
      %v1906 = vadd.f32 %v1745, %v1905
      %v1907 = vpop.f32.mrb[0].mxu0
      %1908 = vmatprep.mubr.bf16.mxu0 0
      %1909 = vmatmul.mubr.bf16.gmra.mrb[0].mxu0 %v1301
      %v1910 = vpop.f32.mrb[0].mxu0
      %v1911 = vadd.f32 %v1750, %v1910
      %v1912 = vpop.f32.mrb[0].mxu0
      %v1913 = vpop.f32.mrb[0].mxu0
      %v1914 = vadd.f32 %v1753, %v1913
      %v1915 = vpop.f32.mrb[0].mxu0
      %1916 = vmatprep.mubr.bf16.mxu0 0
      %1917 = vmatmul.mubr.bf16.gmra.mrb[0].mxu0 %v1304
      %v1918 = vpop.f32.mrb[0].mxu0
      %v1919 = vadd.f32 %v1758, %v1918
      %v1920 = vpop.f32.mrb[0].mxu0
      %v1921 = vpop.f32.mrb[0].mxu0
      %v1922 = vadd.f32 %v1761, %v1921
      %v1923 = vpop.f32.mrb[0].mxu0
      %1924 = vmatprep.mubr.bf16.mxu0 0
      %1925 = vmatmul.mubr.bf16.gmra.mrb[0].mxu0 %v1307
      %v1926 = vpop.f32.mrb[0].mxu0
      %v1927 = vadd.f32 %v1766, %v1926
      %v1928 = vpop.f32.mrb[0].mxu0
      %v1929 = vpop.f32.mrb[0].mxu0
      %v1930 = vadd.f32 %v1769, %v1929
      %v1931 = vpop.f32.mrb[0].mxu0
      %1932 = vmatprep.mubr.bf16.mxu0 0
      %1933 = vmatmul.mubr.bf16.gmra.mrb[0].mxu0 %v1310
      %v1934 = vpop.f32.mrb[0].mxu0
      %v1935 = vadd.f32 %v1774, %v1934
      %v1936 = vpop.f32.mrb[0].mxu0
      %v1937 = vpop.f32.mrb[0].mxu0
      %v1938 = vadd.f32 %v1777, %v1937
      %v1939 = vpop.f32.mrb[0].mxu0
      %1940 = vmatprep.mubr.bf16.mxu0 0
      %1941 = vmatmul.mubr.bf16.gmra.mrb[0].mxu0 %v1313
      %v1942 = vpop.f32.mrb[0].mxu0
      %v1943 = vadd.f32 %v1782, %v1942
      %v1944 = vpop.f32.mrb[0].mxu0
      %v1945 = vpop.f32.mrb[0].mxu0
      %v1946 = vadd.f32 %v1785, %v1945
      %v1947 = vpop.f32.mrb[0].mxu0
      %1948 = vmatprep.mubr.bf16.mxu0 0
      %1949 = vmatmul.mubr.bf16.gmra.mrb[0].mxu0 %v1316
      %v1950 = vpop.f32.mrb[0].mxu0
      %v1951 = vadd.f32 %v1790, %v1950
      %v1952 = vpop.f32.mrb[0].mxu0
      %v1953 = vpop.f32.mrb[0].mxu0
      %v1954 = vadd.f32 %v1793, %v1953
      %v1955 = vpop.f32.mrb[0].mxu0
      %1956 = vmatprep.mubr.bf16.mxu0 0
      %1957 = vmatmul.mubr.bf16.gmra.mrb[0].mxu0 %v1319
      %v1958 = vpop.f32.mrb[0].mxu0
      %v1959 = vadd.f32 %v1798, %v1958
      %v1960 = vpop.f32.mrb[0].mxu0
      %v1961 = vpop.f32.mrb[0].mxu0
      %v1962 = vadd.f32 %v1801, %v1961
      %v1963 = vpop.f32.mrb[0].mxu0
      %1964 = vdwg.mxu0
      %v1965 = vtanh.pop %v1839
      %v1966 = vtanh.pop %v1842
      %v1967 = vtanh.pop %v1847
      %v1968 = vtanh.pop %v1850
      %v1969 = vtanh.pop %v1855
      %v1970 = vtanh.pop %v1858
      %v1971 = vtanh.pop %v1863
      %v1972 = vtanh.pop %v1866
      %v1973 = vtanh.pop %v1871
      %v1974 = vtanh.pop %v1874
      %v1975 = vtanh.pop %v1879
      %v1976 = vtanh.pop %v1882
      %v1977 = vtanh.pop %v1887
      %v1978 = vtanh.pop %v1890
      %v1979 = vtanh.pop %v1895
      %v1980 = vtanh.pop %v1898
      %v1981 = vtanh.pop %v1903
      %v1982 = vtanh.pop %v1906
      %v1983 = vtanh.pop %v1911
      %v1984 = vtanh.pop %v1914
      %v1985 = vtanh.pop %v1919
      %v1986 = vtanh.pop %v1922
      %v1987 = vtanh.pop %v1927
      %v1988 = vtanh.pop %v1930
      %v1989 = vtanh.pop %v1935
      %v1990 = vtanh.pop %v1938
      %v1991 = vtanh.pop %v1943
      %v1992 = vtanh.pop %v1946
      %v1993 = vtanh.pop %v1951
      %v1994 = vtanh.pop %v1954
      %v1995 = vtanh.pop %v1959
      %v1996 = vtanh.pop %v1962
      %v1997 = vld [vmem:[%s185] sm:$0xff]
      %v1998 = vld [vmem:[%s185 + $0x8] sm:$0xff]
      %v1999 = vld [vmem:[%s185 + $0x10] sm:$0xff]
      %v2000 = vld [vmem:[%s185 + $0x18] sm:$0xff]
      %v2001 = vld [vmem:[%s185 + $0x20] sm:$0xff]
      %v2002 = vld [vmem:[%s185 + $0x28] sm:$0xff]
      %v2003 = vld [vmem:[%s185 + $0x30] sm:$0xff]
      %v2004 = vld [vmem:[%s185 + $0x38] sm:$0xff]
      %v2005 = vld [vmem:[%s185 + $0x40] sm:$0xff]
      %v2006 = vld [vmem:[%s185 + $0x48] sm:$0xff]
      %v2007 = vld [vmem:[%s185 + $0x50] sm:$0xff]
      %v2008 = vld [vmem:[%s185 + $0x58] sm:$0xff]
      %v2009 = vld [vmem:[%s185 + $0x60] sm:$0xff]
      %v2010 = vld [vmem:[%s185 + $0x68] sm:$0xff]
      %v2011 = vld [vmem:[%s185 + $0x70] sm:$0xff]
      %v2012 = vld [vmem:[%s185 + $0x78] sm:$0xff]
      %v2013 = vld [vmem:[%s185 + $0x80] sm:$0xff]
      %v2014 = vld [vmem:[%s185 + $0x88] sm:$0xff]
      %v2015 = vld [vmem:[%s185 + $0x90] sm:$0xff]
      %v2016 = vld [vmem:[%s185 + $0x98] sm:$0xff]
      %v2017 = vld [vmem:[%s185 + $0xa0] sm:$0xff]
      %v2018 = vld [vmem:[%s185 + $0xa8] sm:$0xff]
      %v2019 = vld [vmem:[%s185 + $0xb0] sm:$0xff]
      %v2020 = vld [vmem:[%s185 + $0xb8] sm:$0xff]
      %v2021 = vld [vmem:[%s185 + $0xc0] sm:$0xff]
      %v2022 = vld [vmem:[%s185 + $0xc8] sm:$0xff]
      %v2023 = vld [vmem:[%s185 + $0xd0] sm:$0xff]
      %v2024 = vld [vmem:[%s185 + $0xd8] sm:$0xff]
      %v2025 = vld [vmem:[%s185 + $0xe0] sm:$0xff]
      %v2026 = vld [vmem:[%s185 + $0xe8] sm:$0xff]
      %v2027 = vld [vmem:[%s185 + $0xf0] sm:$0xff]
      %v2028 = vld [vmem:[%s185 + $0xf8] sm:$0xff]
      %v2029 = vadd.f32 %v1965, %v1997
      %v2030 = vadd.f32 %v1966, %v1998
      %v2031 = vadd.f32 %v1967, %v1999
      %v2032 = vadd.f32 %v1968, %v2000
      %v2033 = vadd.f32 %v1969, %v2001
      %v2034 = vadd.f32 %v1970, %v2002
      %v2035 = vadd.f32 %v1971, %v2003
      %v2036 = vadd.f32 %v1972, %v2004
      %v2037 = vadd.f32 %v1973, %v2005
      %v2038 = vadd.f32 %v1974, %v2006
      %v2039 = vadd.f32 %v1975, %v2007
      %v2040 = vadd.f32 %v1976, %v2008
      %v2041 = vadd.f32 %v1977, %v2009
      %v2042 = vadd.f32 %v1978, %v2010
      %v2043 = vadd.f32 %v1979, %v2011
      %v2044 = vadd.f32 %v1980, %v2012
      %v2045 = vadd.f32 %v1981, %v2013
      %v2046 = vadd.f32 %v1982, %v2014
      %v2047 = vadd.f32 %v1983, %v2015
      %v2048 = vadd.f32 %v1984, %v2016
      %v2049 = vadd.f32 %v1985, %v2017
      %v2050 = vadd.f32 %v1986, %v2018
      %v2051 = vadd.f32 %v1987, %v2019
      %v2052 = vadd.f32 %v1988, %v2020
      %v2053 = vadd.f32 %v1989, %v2021
      %v2054 = vadd.f32 %v1990, %v2022
      %v2055 = vadd.f32 %v1991, %v2023
      %v2056 = vadd.f32 %v1992, %v2024
      %v2057 = vadd.f32 %v1993, %v2025
      %v2058 = vadd.f32 %v1994, %v2026
      %v2059 = vadd.f32 %v1995, %v2027
      %v2060 = vadd.f32 %v1996, %v2028
      %vm2061 = vcmask 23552
      %2062 = vst.msk [vmem:[%s190] sm:$0xff] %vm2061, %v2029
      %2063 = vst.msk [vmem:[%s190 + $0x8] sm:$0xff] %vm2061, %v2030
      %2064 = vst.msk [vmem:[%s190 + $0x10] sm:$0xff] %vm2061, %v2031
      %2065 = vst.msk [vmem:[%s190 + $0x18] sm:$0xff] %vm2061, %v2032
      %2066 = vst.msk [vmem:[%s190 + $0x20] sm:$0xff] %vm2061, %v2033
      %2067 = vst.msk [vmem:[%s190 + $0x28] sm:$0xff] %vm2061, %v2034
      %2068 = vst.msk [vmem:[%s190 + $0x30] sm:$0xff] %vm2061, %v2035
      %2069 = vst.msk [vmem:[%s190 + $0x38] sm:$0xff] %vm2061, %v2036
      %2070 = vst.msk [vmem:[%s190 + $0x40] sm:$0xff] %vm2061, %v2037
      %2071 = vst.msk [vmem:[%s190 + $0x48] sm:$0xff] %vm2061, %v2038
      %2072 = vst.msk [vmem:[%s190 + $0x50] sm:$0xff] %vm2061, %v2039
      %2073 = vst.msk [vmem:[%s190 + $0x58] sm:$0xff] %vm2061, %v2040
      %2074 = vst.msk [vmem:[%s190 + $0x60] sm:$0xff] %vm2061, %v2041
      %2075 = vst.msk [vmem:[%s190 + $0x68] sm:$0xff] %vm2061, %v2042
      %2076 = vst.msk [vmem:[%s190 + $0x70] sm:$0xff] %vm2061, %v2043
      %2077 = vst.msk [vmem:[%s190 + $0x78] sm:$0xff] %vm2061, %v2044
      %2078 = vst.msk [vmem:[%s190 + $0x80] sm:$0xff] %vm2061, %v2045
      %2079 = vst.msk [vmem:[%s190 + $0x88] sm:$0xff] %vm2061, %v2046
      %2080 = vst.msk [vmem:[%s190 + $0x90] sm:$0xff] %vm2061, %v2047
      %2081 = vst.msk [vmem:[%s190 + $0x98] sm:$0xff] %vm2061, %v2048
      %2082 = vst.msk [vmem:[%s190 + $0xa0] sm:$0xff] %vm2061, %v2049
      %2083 = vst.msk [vmem:[%s190 + $0xa8] sm:$0xff] %vm2061, %v2050
      %2084 = vst.msk [vmem:[%s190 + $0xb0] sm:$0xff] %vm2061, %v2051
      %2085 = vst.msk [vmem:[%s190 + $0xb8] sm:$0xff] %vm2061, %v2052
      %2086 = vst.msk [vmem:[%s190 + $0xc0] sm:$0xff] %vm2061, %v2053
      %2087 = vst.msk [vmem:[%s190 + $0xc8] sm:$0xff] %vm2061, %v2054
      %2088 = vst.msk [vmem:[%s190 + $0xd0] sm:$0xff] %vm2061, %v2055
      %2089 = vst.msk [vmem:[%s190 + $0xd8] sm:$0xff] %vm2061, %v2056
      %2090 = vst.msk [vmem:[%s190 + $0xe0] sm:$0xff] %vm2061, %v2057
      %2091 = vst.msk [vmem:[%s190 + $0xe8] sm:$0xff] %vm2061, %v2058
      %2092 = vst.msk [vmem:[%s190 + $0xf0] sm:$0xff] %vm2061, %v2059
      %2093 = vst.msk [vmem:[%s190 + $0xf8] sm:$0xff] %vm2061, %v2060
      %p2094 = scmp.lt.s32.totalorder %s14, 1
      %s2095 = scalar_select %p2094, %s14, 1
      %s2096 = smul.addr %s2095, 32
      %s2097 = smul.addr %s2096, 8
      %s2098 = scalar_lea.vmem %s3, %s2097
      // Predicated region
      $region33: #{generator_forward.9} parent=31 // pred_check
        %p2099 = pneg %p105
      $region34: #{generator_forward.9} parent=31 // pred_check_branch
        %2101 = sbr.rel (%p2099) target = $region36
      $region35: #{generator_forward.9} parent=31 // pred_region
        _
      $region36: #{generator_forward.9} parent=31 // pred_fallthru
        _
    $region32: #{generator_forward.9} parent=5 // pred_fallthru
      _
    %p2102 = scmp.le.s32.totalorder 2, %s9
    // Predicated region
    $region37: #{generator_forward.9} parent=5 // pred_check
      %p2103 = pneg %p2102
    $region38: #{generator_forward.9} parent=5 // pred_check_branch
      %2105 = sbr.rel (%p2103) target = $region40
    $region39: #{generator_forward.9} parent=5 // pred_region
      %s2106 = ssub.s32 %s9, 2
      // Predicated region
      $region41: #{generator_forward.9} parent=39 // pred_check
        %p2107 = pneg %p111
      $region42: #{generator_forward.9} parent=39 // pred_check_branch
        %2109 = sbr.rel (%p2107) target = $region44
      $region43: #{generator_forward.9} parent=39 // pred_region
        %p2110 = scmp.lt.s32.totalorder %s15, 1
        %s2111 = scalar_select %p2110, %s15, 1
        %s2112 = smul.addr %s2111, 32
        %s2113 = smul.addr %s2112, 8
        %s2114 = scalar_lea.vmem %s3, %s2113
      $region44: #{generator_forward.9} parent=39 // pred_fallthru
        _
    $region40: #{generator_forward.9} parent=5 // pred_fallthru
      _
  $region6: #{generator_forward.9} parent=0 // loop_footer
    %s13 = sadd.s32 1, %s9
  $region7: #{generator_forward.9} parent=0 // loop_footer_branch
    %8 = sbr.rel target = $region3
  $region8: #{generator_forward.9} parent=0 // loop_exit
    _

</llo_original>
